<compile_context>
chip_gen: v5e
topology: v5e:2x2
jax: 0.10.0
libtpu: 0.0.40
codegen_flags: <defaults>
</compile_context>

<pallas_src>
import jax
import jax.numpy as jnp
from jax.experimental import pallas as pl
from jax.experimental.pallas import tpu as pltpu

N_CONCEPTS = 8
IN_DIM = 64
SEQ = 49
FC_OUT = 128
BETA = 0.1
EPS = 1e-12  # F.normalize default eps


def _fused_kernel(x_ref, wbig_ref, g_ref, gt_ref, wft_ref, b_ref, o_ref):
    # x_ref:    (TB, SEQ*IN_DIM) f32/bf16  flattened input rows
    # wbig_ref: (SEQ*IN_DIM, SEQ*C) bf16   kron(I_SEQ, Wc^T)  (block diagonal)
    # g_ref:    (SEQ*C, SEQ) bf16          0/1 group-sum matrix
    # gt_ref:   (SEQ, SEQ*C) bf16          0/1 group-broadcast matrix
    # wft_ref:  (SEQ*C, FC_OUT) bf16       Wf^T (K on sublanes, N on lanes)
    # b_ref:    (1, FC_OUT) f32
    # o_ref:    (TB, FC_OUT) f32
    xb = x_ref[...].astype(jnp.bfloat16)  # no-op if x already bf16

    # Concept scores, already flattened: h[b, s*C + c] = <x[b, s, :], Wc[c, :]>
    h = jnp.dot(xb, wbig_ref[...], preferred_element_type=jnp.float32)  # (TB, SEQ*C)

    # F.threshold(h, beta, 0): keep only values strictly greater than beta.
    h = jnp.where(h > BETA, h, 0.0)

    # Per-token L2 norm over the C grouped lanes, via bf16 0/1 matmuls (f32 acc).
    ss = jnp.dot((h * h).astype(jnp.bfloat16), g_ref[...],
                 preferred_element_type=jnp.float32)                    # (TB, SEQ)
    inv = jax.lax.rsqrt(jnp.maximum(ss, EPS * EPS))                     # 1/max(||h||, eps)
    scale = jnp.dot(inv.astype(jnp.bfloat16), gt_ref[...],
                    preferred_element_type=jnp.float32)                 # (TB, SEQ*C)
    hn = (h * scale).astype(jnp.bfloat16)

    # fc + relu
    y = jnp.dot(hn, wft_ref[...], preferred_element_type=jnp.float32)   # (TB, FC_OUT)
    y = y + b_ref[...]
    o_ref[...] = jnp.maximum(y, 0.0).astype(o_ref.dtype)


def prepare_concept_params(wc, wf, bf):
    """One-time weight prep (hoist out of the per-call path when weights are static).

    wc: (C, IN_DIM), wf: (FC_OUT, SEQ*C), bf: (FC_OUT,).
    """
    C = wc.shape[0]
    eye = jnp.eye(SEQ, dtype=jnp.float32)
    wbig = jnp.kron(eye, wc.T.astype(jnp.float32)).astype(jnp.bfloat16)   # (K, SEQ*C)
    g = jnp.kron(eye, jnp.ones((C, 1), jnp.float32)).astype(jnp.bfloat16)  # (SEQ*C, SEQ)
    gt = g.T                                                              # (SEQ, SEQ*C)
    wft = wf.T.astype(jnp.bfloat16)                                       # (SEQ*C, FC_OUT)
    b2 = bf.reshape(1, FC_OUT).astype(jnp.float32)
    return wbig, g, gt, wft, b2


def _pick_tb(batch, block_b):
    # >= 2 grid steps whenever possible so v7x's two TensorCores both get work;
    # rows rounded up to a full sublane (8).
    if batch <= 8:
        return batch  # single block == full dim (allowed even if not multiple of 8)
    tb = ((pl.cdiv(batch, 2) + 7) // 8) * 8
    return min(block_b, tb)


def concept_model_forward(x, params, *, block_b=512):
    """x: (B, SEQ, IN_DIM) in f32 or bf16 (bf16 halves HBM traffic; numerics identical
    since the kernel rounds x to bf16 for the MXU anyway).  params from
    prepare_concept_params().  block_b can be raised to 1024 on v5e/v6e (128 MiB VMEM)
    with vmem_limit_bytes ~64 MiB; keep <=1024 and <=48 MiB on v7x.
    """
    wbig, g, gt, wft, b2 = params
    B = x.shape[0]
    C = wft.shape[0] // SEQ
    SC = SEQ * C
    K = SEQ * IN_DIM

    x_flat = x.reshape(B, K)  # layout-preserving (row-major), free
    tb = _pick_tb(B, block_b)
    grid = (pl.cdiv(B, tb),)  # ragged last block handled by Pallas; no pad copy

    # Grid-invariant operands: constant index_map + single buffer.
    def _w_spec(shape):
        return pl.BlockSpec(shape, lambda i: (0,) * len(shape),
                            pipeline_mode=pl.Buffered(1))

    out = pl.pallas_call(
        _fused_kernel,
        out_shape=jax.ShapeDtypeStruct((B, FC_OUT), jnp.float32),
        grid=grid,
        in_specs=[
            pl.BlockSpec((tb, K), lambda i: (i, 0)),
            _w_spec((K, SC)),
            _w_spec((SC, SEQ)),
            _w_spec((SEQ, SC)),
            _w_spec((SC, FC_OUT)),
            _w_spec((1, FC_OUT)),
        ],
        out_specs=pl.BlockSpec((tb, FC_OUT), lambda i: (i, 0)),
        compiler_params=pltpu.CompilerParams(
            dimension_semantics=("parallel",),
            vmem_limit_bytes=48 * 1024 * 1024),
    )(x_flat, wbig, g, gt, wft, b2)
    return out


def _reference(x, wc, wf, bf):
    # Mirrors the kernel's bf16 MXU operand rounding (f32 accumulation), including
    # the bf16 normalization matmuls, so a tight tolerance is meaningful.
    xb = x.astype(jnp.bfloat16).astype(jnp.float32)
    wcb = wc.astype(jnp.bfloat16).astype(jnp.float32)
    wfb = wf.astype(jnp.bfloat16).astype(jnp.float32)
    h = jnp.einsum("bsd,cd->bsc", xb, wcb)
    h = jnp.where(h > BETA, h, 0.0)
    sq = (h * h).astype(jnp.bfloat16).astype(jnp.float32)
    ss = jnp.sum(sq, axis=-1, keepdims=True)
    inv = jax.lax.rsqrt(jnp.maximum(ss, EPS * EPS))
    inv = inv.astype(jnp.bfloat16).astype(jnp.float32)
    h = h * inv
    hf = h.reshape(x.shape[0], -1).astype(jnp.bfloat16).astype(jnp.float32)
    y = hf @ wfb.T + bf
    return jnp.maximum(y, 0.0)


if __name__ == "__main__":
    key = jax.random.PRNGKey(0)
    kx, kwc, kwf, kbf = jax.random.split(key, 4)

    B = 2
    x = jax.random.normal(kx, (B, SEQ, IN_DIM), dtype=jnp.float32)

    # Deterministic parameter init (shapes follow the PyTorch module).
    wc = jax.random.normal(kwc, (N_CONCEPTS, IN_DIM), dtype=jnp.float32) * 0.1
    wf = jax.random.normal(kwf, (FC_OUT, SEQ * N_CONCEPTS), dtype=jnp.float32) * 0.05
    bf = jax.random.normal(kbf, (FC_OUT,), dtype=jnp.float32) * 0.01

    params = prepare_concept_params(wc, wf, bf)   # hoisted one-time prep

    out = concept_model_forward(x, params)
    out = jax.block_until_ready(out)

    ref = _reference(x, wc, wf, bf)
    assert out.shape == (B, FC_OUT)
    assert jnp.allclose(out, ref, atol=1e-3, rtol=1e-3), "mismatch vs reference"

    # bf16-ingest path (halves HBM traffic; kernel rounds x to bf16 anyway).
    out_bf16 = jax.block_until_ready(
        concept_model_forward(x.astype(jnp.bfloat16), params))
    assert jnp.allclose(out_bf16, ref, atol=1e-3, rtol=1e-3), "bf16-x mismatch"

    print("KERNEL_OK")
</pallas_src>

<mosaic_0001>
module attributes {stable_mosaic.version = 11 : i64} {
  func.func @_fused_kernel(%arg0: i32, %arg1: memref<2x3136xf32, #tpu.memory_space<vmem>>, %arg2: memref<3136x392xbf16, #tpu.memory_space<vmem>>, %arg3: memref<392x49xbf16, #tpu.memory_space<vmem>>, %arg4: memref<49x392xbf16, #tpu.memory_space<vmem>>, %arg5: memref<392x128xbf16, #tpu.memory_space<vmem>>, %arg6: memref<1x128xf32, #tpu.memory_space<vmem>>, %arg7: memref<2x128xf32, #tpu.memory_space<vmem>>) attributes {dimension_semantics = [#tpu.dimension_semantics<parallel>], iteration_bounds = array<i64: 1>, scalar_prefetch = 0 : i64, scratch_operands = 0 : i64, tpu.core_type = #tpu.core_type<tc>, window_params = [{transform_indices = @transform_0, window_bounds = array<i64: 2, 3136>}, {pipeline_mode = #tpu.pipeline_mode<synchronous>, transform_indices = @transform_1, window_bounds = array<i64: 3136, 392>}, {pipeline_mode = #tpu.pipeline_mode<synchronous>, transform_indices = @transform_2, window_bounds = array<i64: 392, 49>}, {pipeline_mode = #tpu.pipeline_mode<synchronous>, transform_indices = @transform_3, window_bounds = array<i64: 49, 392>}, {pipeline_mode = #tpu.pipeline_mode<synchronous>, transform_indices = @transform_4, window_bounds = array<i64: 392, 128>}, {pipeline_mode = #tpu.pipeline_mode<synchronous>, transform_indices = @transform_5, window_bounds = array<i64: 1, 128>}, {transform_indices = @transform_6, window_bounds = array<i64: 2, 128>}]} {
    %c0 = arith.constant 0 : index
    %c0_0 = arith.constant 0 : index
    %0 = vector.load %arg1[%c0, %c0_0] : memref<2x3136xf32, #tpu.memory_space<vmem>>, vector<2x3136xf32>
    %1 = arith.truncf %0 : vector<2x3136xf32> to vector<2x3136xbf16>
    %c0_1 = arith.constant 0 : index
    %c0_2 = arith.constant 0 : index
    %2 = vector.load %arg2[%c0_1, %c0_2] : memref<3136x392xbf16, #tpu.memory_space<vmem>>, vector<3136x392xbf16>
    %cst = arith.constant dense<0.000000e+00> : vector<2x392xf32>
    %3 = tpu.matmul %1, %2, %cst {dimension_numbers = #tpu.dot_dimension_numbers<[1], [0], [0], [1], [0, 0, 1, 1], [], []>} : vector<2x3136xbf16>, vector<3136x392xbf16>, vector<2x392xf32> -> vector<2x392xf32>
    %cst_3 = arith.constant 1.000000e-01 : f32
    %4 = vector.broadcast %cst_3 : f32 to vector<2x392xf32>
    %5 = arith.cmpf ogt, %3, %4 : vector<2x392xf32>
    %cst_4 = arith.constant 0.000000e+00 : f32
    %6 = vector.broadcast %cst_4 : f32 to vector<2x392xf32>
    %7 = arith.select %5, %3, %6 : vector<2x392xi1>, vector<2x392xf32>
    %8 = arith.mulf %7, %7 : vector<2x392xf32>
    %9 = arith.truncf %8 : vector<2x392xf32> to vector<2x392xbf16>
    %c0_5 = arith.constant 0 : index
    %c0_6 = arith.constant 0 : index
    %10 = vector.load %arg3[%c0_5, %c0_6] : memref<392x49xbf16, #tpu.memory_space<vmem>>, vector<392x49xbf16>
    %cst_7 = arith.constant dense<0.000000e+00> : vector<2x49xf32>
    %11 = tpu.matmul %9, %10, %cst_7 {dimension_numbers = #tpu.dot_dimension_numbers<[1], [0], [0], [1], [0, 0, 1, 1], [], []>} : vector<2x392xbf16>, vector<392x49xbf16>, vector<2x49xf32> -> vector<2x49xf32>
    %cst_8 = arith.constant 1.000000e-24 : f32
    %12 = vector.broadcast %cst_8 : f32 to vector<2x49xf32>
    %13 = arith.maximumf %11, %12 : vector<2x49xf32>
    %14 = math.rsqrt %13 : vector<2x49xf32>
    %15 = arith.truncf %14 : vector<2x49xf32> to vector<2x49xbf16>
    %c0_9 = arith.constant 0 : index
    %c0_10 = arith.constant 0 : index
    %16 = vector.load %arg4[%c0_9, %c0_10] : memref<49x392xbf16, #tpu.memory_space<vmem>>, vector<49x392xbf16>
    %cst_11 = arith.constant dense<0.000000e+00> : vector<2x392xf32>
    %17 = tpu.matmul %15, %16, %cst_11 {dimension_numbers = #tpu.dot_dimension_numbers<[1], [0], [0], [1], [0, 0, 1, 1], [], []>} : vector<2x49xbf16>, vector<49x392xbf16>, vector<2x392xf32> -> vector<2x392xf32>
    %18 = arith.mulf %7, %17 : vector<2x392xf32>
    %19 = arith.truncf %18 : vector<2x392xf32> to vector<2x392xbf16>
    %c0_12 = arith.constant 0 : index
    %c0_13 = arith.constant 0 : index
    %20 = vector.load %arg5[%c0_12, %c0_13] : memref<392x128xbf16, #tpu.memory_space<vmem>>, vector<392x128xbf16>
    %cst_14 = arith.constant dense<0.000000e+00> : vector<2x128xf32>
    %21 = tpu.matmul %19, %20, %cst_14 {dimension_numbers = #tpu.dot_dimension_numbers<[1], [0], [0], [1], [0, 0, 1, 1], [], []>} : vector<2x392xbf16>, vector<392x128xbf16>, vector<2x128xf32> -> vector<2x128xf32>
    %c0_15 = arith.constant 0 : index
    %c0_16 = arith.constant 0 : index
    %22 = vector.load %arg6[%c0_15, %c0_16] : memref<1x128xf32, #tpu.memory_space<vmem>>, vector<1x128xf32>
    %23 = vector.broadcast %22 : vector<1x128xf32> to vector<2x128xf32>
    %24 = arith.addf %21, %23 : vector<2x128xf32>
    %cst_17 = arith.constant 0.000000e+00 : f32
    %25 = vector.broadcast %cst_17 : f32 to vector<2x128xf32>
    %26 = arith.maximumf %24, %25 : vector<2x128xf32>
    %c0_18 = arith.constant 0 : index
    %c0_19 = arith.constant 0 : index
    %27 = vector.load %arg7[%c0_18, %c0_19] : memref<2x128xf32, #tpu.memory_space<vmem>>, vector<2x128xf32>
    tpu.vector_store %arg7[%c0_18, %c0_19], %26 {strides = array<i32>} : memref<2x128xf32, #tpu.memory_space<vmem>>, vector<2x128xf32>,
    return
  }
  func.func @transform_0(%arg0: i32) -> (i32, i32) {
    %c0_i32 = arith.constant 0 : i32
    %c0_i32_0 = arith.constant 0 : i32
    return %arg0, %c0_i32 : i32, i32
  }
  func.func @transform_1(%arg0: i32) -> (i32, i32) {
    %c0_i32 = arith.constant 0 : i32
    %c0_i32_0 = arith.constant 0 : i32
    %c0_i32_1 = arith.constant 0 : i32
    return %c0_i32, %c0_i32_0 : i32, i32
  }
  func.func @transform_2(%arg0: i32) -> (i32, i32) {
    %c0_i32 = arith.constant 0 : i32
    %c0_i32_0 = arith.constant 0 : i32
    %c0_i32_1 = arith.constant 0 : i32
    return %c0_i32, %c0_i32_0 : i32, i32
  }
  func.func @transform_3(%arg0: i32) -> (i32, i32) {
    %c0_i32 = arith.constant 0 : i32
    %c0_i32_0 = arith.constant 0 : i32
    %c0_i32_1 = arith.constant 0 : i32
    return %c0_i32, %c0_i32_0 : i32, i32
  }
  func.func @transform_4(%arg0: i32) -> (i32, i32) {
    %c0_i32 = arith.constant 0 : i32
    %c0_i32_0 = arith.constant 0 : i32
    %c0_i32_1 = arith.constant 0 : i32
    return %c0_i32, %c0_i32_0 : i32, i32
  }
  func.func @transform_5(%arg0: i32) -> (i32, i32) {
    %c0_i32 = arith.constant 0 : i32
    %c0_i32_0 = arith.constant 0 : i32
    %c0_i32_1 = arith.constant 0 : i32
    return %c0_i32, %c0_i32_0 : i32, i32
  }
  func.func @transform_6(%arg0: i32) -> (i32, i32) {
    %c0_i32 = arith.constant 0 : i32
    %c0_i32_0 = arith.constant 0 : i32
    return %arg0, %c0_i32 : i32, i32
  }
}

</mosaic_0001>

<llo_original>
// kernel: tpu_custom_call.1
$region0: #{tpu_custom_call.1}
  #allocation0 [shape = 'u32[]', space=smem, size = 0x4, offset = 0x4, fixed_abs, tag = 'smem constant byte address 0x4 - core index']
  #allocation1 [shape = 'u32[72,128]{1,0:T(1,128)}', space=vmem, size = 0x9000, scoped, tag = 'internal scratch']
  %s0 = inlined_call_operand.vmem [shape: f32[2,3136], index: 0, kind: input, shape index: {}]
  %s1 = inlined_call_operand.vmem [shape: bf16[3136,392], index: 1, kind: input, shape index: {}]
  %s2 = inlined_call_operand.vmem [shape: bf16[392,49], index: 2, kind: input, shape index: {}]
  %s3 = inlined_call_operand.vmem [shape: bf16[49,392], index: 3, kind: input, shape index: {}]
  %s4 = inlined_call_operand.vmem [shape: bf16[392,128], index: 4, kind: input, shape index: {}]
  %s5 = inlined_call_operand.vmem [shape: f32[1,128], index: 5, kind: input, shape index: {}]
  %s6 = inlined_call_operand.hbm [shape: f32[2,128], index: 6, kind: output, shape index: {}]
  %s7 = sld [smem:[#allocation0]]
  $region34: #{tpu_custom_call.1} parent=0
    _
  %s9 = ssub.s32 1, %s7
  %s10 = scalar_select 0, %s9, %s7
  $region1: #{tpu_custom_call.1} parent=0
    #allocation2 [shape = 'u8[1024]{0}', space=vmem, size = 0x400, scoped, tag = 'output window, operand 0, single buffered']
    #allocation3 [shape = 's32[1]{0}', space=sflag, size = 0x4, scoped, tag = 'scoped memory for tpu_custom_call.1']
    %11 = vsyncpa [#allocation3], 0
    // Predicated region
    $region2: #{tpu_custom_call.1} parent=1 // pred_check
      _
    $region3: #{tpu_custom_call.1} parent=1 // pred_check_branch
      %13 = sbr.rel (0) target = $region5
    $region4: #{tpu_custom_call.1} parent=1 // pred_region
      _
    $region5: #{tpu_custom_call.1} parent=1 // pred_fallthru
      _
    // Predicated region
    $region6: #{tpu_custom_call.1} parent=1 // pred_check
      _
    $region7: #{tpu_custom_call.1} parent=1 // pred_check_branch
      %15 = sbr.rel (0) target = $region9
    $region8: #{tpu_custom_call.1} parent=1 // pred_region
      _
    $region9: #{tpu_custom_call.1} parent=1 // pred_fallthru
      _
    // Predicated region
    $region10: #{tpu_custom_call.1} parent=1 // pred_check
      _
    $region11: #{tpu_custom_call.1} parent=1 // pred_check_branch
      %17 = sbr.rel (0) target = $region13
    $region12: #{tpu_custom_call.1} parent=1 // pred_region
      _
    $region13: #{tpu_custom_call.1} parent=1 // pred_fallthru
      _
    // Predicated region
    $region14: #{tpu_custom_call.1} parent=1 // pred_check
      _
    $region15: #{tpu_custom_call.1} parent=1 // pred_check_branch
      %19 = sbr.rel (0) target = $region17
    $region16: #{tpu_custom_call.1} parent=1 // pred_region
      _
    $region17: #{tpu_custom_call.1} parent=1 // pred_fallthru
      _
    // Predicated region
    $region18: #{tpu_custom_call.1} parent=1 // pred_check
      _
    $region19: #{tpu_custom_call.1} parent=1 // pred_check_branch
      %21 = sbr.rel (0) target = $region21
    $region20: #{tpu_custom_call.1} parent=1 // pred_region
      _
    $region21: #{tpu_custom_call.1} parent=1 // pred_fallthru
      _
    // Predicated region
    $region22: #{tpu_custom_call.1} parent=1 // pred_check
      _
    $region23: #{tpu_custom_call.1} parent=1 // pred_check_branch
      %23 = sbr.rel (0) target = $region25
    $region24: #{tpu_custom_call.1} parent=1 // pred_region
      _
    $region25: #{tpu_custom_call.1} parent=1 // pred_fallthru
      _
    %v25 = vld [vmem:[%s0] sm:$0xff]
    %v26 = vld [vmem:[%s0 + $0x8] sm:$0xff]
    %v27 = vld [vmem:[%s0 + $0x10] sm:$0xff]
    %v28 = vld [vmem:[%s0 + $0x18] sm:$0xff]
    %v29 = vld [vmem:[%s0 + $0x20] sm:$0xff]
    %v30 = vld [vmem:[%s0 + $0x28] sm:$0xff]
    %v31 = vld [vmem:[%s0 + $0x30] sm:$0x3]
    %39 = vst [vmem:[#allocation1] ss:$4 sm:$0xff] %v25
    %s40 = scalar_lea.vmem [#allocation1], 32
    %41 = vst [vmem:[%s40] ss:$4 sm:$0xff] %v26
    %v42 = vld.sshfl [vmem:[#allocation1] sm:$0xff pattern:$0x73625140]
    %v43 = vld.sshfl [vmem:[#allocation1 + $0x8] sm:$0xff pattern:$0x73625140]
    %v44 = vld.sshfl [vmem:[#allocation1 + $0x10] sm:$0xff pattern:$0x73625140]
    %v45 = vld.sshfl [vmem:[#allocation1 + $0x18] sm:$0xff pattern:$0x73625140]
    %v46 = vld.sshfl [vmem:[#allocation1 + $0x20] sm:$0xff pattern:$0x73625140]
    %v47 = vld.sshfl [vmem:[#allocation1 + $0x28] sm:$0xff pattern:$0x73625140]
    %v48 = vld.sshfl [vmem:[#allocation1 + $0x30] sm:$0xff pattern:$0x73625140]
    %v49 = vld.sshfl [vmem:[#allocation1 + $0x38] sm:$0xff pattern:$0x73625140]
    %50 = vst [vmem:[#allocation1] ss:$4 sm:$0xff] %v27
    %51 = vst [vmem:[%s40] ss:$4 sm:$0xff] %v28
    %v52 = vld.sshfl [vmem:[#allocation1] sm:$0xff pattern:$0x73625140]
    %v53 = vld.sshfl [vmem:[#allocation1 + $0x8] sm:$0xff pattern:$0x73625140]
    %v54 = vld.sshfl [vmem:[#allocation1 + $0x10] sm:$0xff pattern:$0x73625140]
    %v55 = vld.sshfl [vmem:[#allocation1 + $0x18] sm:$0xff pattern:$0x73625140]
    %v56 = vld.sshfl [vmem:[#allocation1 + $0x20] sm:$0xff pattern:$0x73625140]
    %v57 = vld.sshfl [vmem:[#allocation1 + $0x28] sm:$0xff pattern:$0x73625140]
    %v58 = vld.sshfl [vmem:[#allocation1 + $0x30] sm:$0xff pattern:$0x73625140]
    %v59 = vld.sshfl [vmem:[#allocation1 + $0x38] sm:$0xff pattern:$0x73625140]
    %60 = vst [vmem:[#allocation1] ss:$4 sm:$0xff] %v29
    %61 = vst [vmem:[%s40] ss:$4 sm:$0xff] %v30
    %v62 = vld.sshfl [vmem:[#allocation1] sm:$0xff pattern:$0x73625140]
    %v63 = vld.sshfl [vmem:[#allocation1 + $0x8] sm:$0xff pattern:$0x73625140]
    %v64 = vld.sshfl [vmem:[#allocation1 + $0x10] sm:$0xff pattern:$0x73625140]
    %v65 = vld.sshfl [vmem:[#allocation1 + $0x18] sm:$0xff pattern:$0x73625140]
    %v66 = vld.sshfl [vmem:[#allocation1 + $0x20] sm:$0xff pattern:$0x73625140]
    %v67 = vld.sshfl [vmem:[#allocation1 + $0x28] sm:$0xff pattern:$0x73625140]
    %v68 = vld.sshfl [vmem:[#allocation1 + $0x30] sm:$0xff pattern:$0x73625140]
    %v69 = vld.sshfl [vmem:[#allocation1 + $0x38] sm:$0xff pattern:$0x73625140]
    %70 = vst [vmem:[#allocation1] ss:$4 sm:$0xff] %v31
    %v71 = vld.sshfl [vmem:[#allocation1] sm:$0xff pattern:$0x73625140]
    %v97 = vpack.c.bf16 %v42, %v42
    %v98 = vpack.c.bf16 %v43, %v43
    %v99 = vpack.c.bf16 %v44, %v44
    %v100 = vpack.c.bf16 %v45, %v45
    %v101 = vpack.c.bf16 %v46, %v46
    %v102 = vpack.c.bf16 %v47, %v47
    %v103 = vpack.c.bf16 %v48, %v48
    %v104 = vpack.c.bf16 %v49, %v49
    %v105 = vpack.c.bf16 %v52, %v52
    %v106 = vpack.c.bf16 %v53, %v53
    %v107 = vpack.c.bf16 %v54, %v54
    %v108 = vpack.c.bf16 %v55, %v55
    %v109 = vpack.c.bf16 %v56, %v56
    %v110 = vpack.c.bf16 %v57, %v57
    %v111 = vpack.c.bf16 %v58, %v58
    %v112 = vpack.c.bf16 %v59, %v59
    %v113 = vpack.c.bf16 %v62, %v62
    %v114 = vpack.c.bf16 %v63, %v63
    %v115 = vpack.c.bf16 %v64, %v64
    %v116 = vpack.c.bf16 %v65, %v65
    %v117 = vpack.c.bf16 %v66, %v66
    %v118 = vpack.c.bf16 %v67, %v67
    %v119 = vpack.c.bf16 %v68, %v68
    %v120 = vpack.c.bf16 %v69, %v69
    %v121 = vpack.c.bf16 %v71, %v71
    %v122 = vld [vmem:[%s1] sm:$0xff]
    %v123 = vld [vmem:[%s1 + $0x8] sm:$0xff]
    %v124 = vld [vmem:[%s1 + $0x10] sm:$0xff]
    %v125 = vld [vmem:[%s1 + $0x18] sm:$0xff]
    %v126 = vld [vmem:[%s1 + $0x20] sm:$0xff]
    %v127 = vld [vmem:[%s1 + $0x28] sm:$0xff]
    %v128 = vld [vmem:[%s1 + $0x30] sm:$0xff]
    %v129 = vld [vmem:[%s1 + $0x38] sm:$0xff]
    %v130 = vld [vmem:[%s1 + $0x40] sm:$0xff]
    %v131 = vld [vmem:[%s1 + $0x48] sm:$0xff]
    %v132 = vld [vmem:[%s1 + $0x50] sm:$0xff]
    %v133 = vld [vmem:[%s1 + $0x58] sm:$0xff]
    %v134 = vld [vmem:[%s1 + $0x60] sm:$0xff]
    %v135 = vld [vmem:[%s1 + $0x68] sm:$0xff]
    %v136 = vld [vmem:[%s1 + $0x70] sm:$0xff]
    %v137 = vld [vmem:[%s1 + $0x78] sm:$0xff]
    %v138 = vld [vmem:[%s1 + $0x80] sm:$0xff]
    %v139 = vld [vmem:[%s1 + $0x88] sm:$0xff]
    %v140 = vld [vmem:[%s1 + $0x90] sm:$0xff]
    %v141 = vld [vmem:[%s1 + $0x98] sm:$0xff]
    %v142 = vld [vmem:[%s1 + $0xa0] sm:$0xff]
    %v143 = vld [vmem:[%s1 + $0xa8] sm:$0xff]
    %v144 = vld [vmem:[%s1 + $0xb0] sm:$0xff]
    %v145 = vld [vmem:[%s1 + $0xb8] sm:$0xff]
    %v146 = vld [vmem:[%s1 + $0xc0] sm:$0xff]
    %v147 = vld [vmem:[%s1 + $0xc8] sm:$0xff]
    %v148 = vld [vmem:[%s1 + $0xd0] sm:$0xff]
    %v149 = vld [vmem:[%s1 + $0xd8] sm:$0xff]
    %v150 = vld [vmem:[%s1 + $0xe0] sm:$0xff]
    %v151 = vld [vmem:[%s1 + $0xe8] sm:$0xff]
    %v152 = vld [vmem:[%s1 + $0xf0] sm:$0xff]
    %v153 = vld [vmem:[%s1 + $0xf8] sm:$0xff]
    %v154 = vld [vmem:[%s1 + $0x100] sm:$0xff]
    %v155 = vld [vmem:[%s1 + $0x108] sm:$0xff]
    %v156 = vld [vmem:[%s1 + $0x110] sm:$0xff]
    %v157 = vld [vmem:[%s1 + $0x118] sm:$0xff]
    %v158 = vld [vmem:[%s1 + $0x120] sm:$0xff]
    %v159 = vld [vmem:[%s1 + $0x128] sm:$0xff]
    %v160 = vld [vmem:[%s1 + $0x130] sm:$0xff]
    %v161 = vld [vmem:[%s1 + $0x138] sm:$0xff]
    %v162 = vld [vmem:[%s1 + $0x140] sm:$0xff]
    %v163 = vld [vmem:[%s1 + $0x148] sm:$0xff]
    %v164 = vld [vmem:[%s1 + $0x150] sm:$0xff]
    %v165 = vld [vmem:[%s1 + $0x158] sm:$0xff]
    %v166 = vld [vmem:[%s1 + $0x160] sm:$0xff]
    %v167 = vld [vmem:[%s1 + $0x168] sm:$0xff]
    %v168 = vld [vmem:[%s1 + $0x170] sm:$0xff]
    %v169 = vld [vmem:[%s1 + $0x178] sm:$0xff]
    %v170 = vld [vmem:[%s1 + $0x180] sm:$0xff]
    %v171 = vld [vmem:[%s1 + $0x188] sm:$0xff]
    %v172 = vld [vmem:[%s1 + $0x190] sm:$0xff]
    %v173 = vld [vmem:[%s1 + $0x198] sm:$0xff]
    %v174 = vld [vmem:[%s1 + $0x1a0] sm:$0xff]
    %v175 = vld [vmem:[%s1 + $0x1a8] sm:$0xff]
    %v176 = vld [vmem:[%s1 + $0x1b0] sm:$0xff]
    %v177 = vld [vmem:[%s1 + $0x1b8] sm:$0xff]
    %v178 = vld [vmem:[%s1 + $0x1c0] sm:$0xff]
    %v179 = vld [vmem:[%s1 + $0x1c8] sm:$0xff]
    %v180 = vld [vmem:[%s1 + $0x1d0] sm:$0xff]
    %v181 = vld [vmem:[%s1 + $0x1d8] sm:$0xff]
    %v182 = vld [vmem:[%s1 + $0x1e0] sm:$0xff]
    %v183 = vld [vmem:[%s1 + $0x1e8] sm:$0xff]
    %v184 = vld [vmem:[%s1 + $0x1f0] sm:$0xff]
    %v185 = vld [vmem:[%s1 + $0x1f8] sm:$0xff]
    %v186 = vld [vmem:[%s1 + $0x200] sm:$0xff]
    %v187 = vld [vmem:[%s1 + $0x208] sm:$0xff]
    %v188 = vld [vmem:[%s1 + $0x210] sm:$0xff]
    %v189 = vld [vmem:[%s1 + $0x218] sm:$0xff]
    %v190 = vld [vmem:[%s1 + $0x220] sm:$0xff]
    %v191 = vld [vmem:[%s1 + $0x228] sm:$0xff]
    %v192 = vld [vmem:[%s1 + $0x230] sm:$0xff]
    %v193 = vld [vmem:[%s1 + $0x238] sm:$0xff]
    %v194 = vld [vmem:[%s1 + $0x240] sm:$0xff]
    %v195 = vld [vmem:[%s1 + $0x248] sm:$0xff]
    %v196 = vld [vmem:[%s1 + $0x250] sm:$0xff]
    %v197 = vld [vmem:[%s1 + $0x258] sm:$0xff]
    %v198 = vld [vmem:[%s1 + $0x260] sm:$0xff]
    %v199 = vld [vmem:[%s1 + $0x268] sm:$0xff]
    %v200 = vld [vmem:[%s1 + $0x270] sm:$0xff]
    %v201 = vld [vmem:[%s1 + $0x278] sm:$0xff]
    %v202 = vld [vmem:[%s1 + $0x280] sm:$0xff]
    %v203 = vld [vmem:[%s1 + $0x288] sm:$0xff]
    %v204 = vld [vmem:[%s1 + $0x290] sm:$0xff]
    %v205 = vld [vmem:[%s1 + $0x298] sm:$0xff]
    %v206 = vld [vmem:[%s1 + $0x2a0] sm:$0xff]
    %v207 = vld [vmem:[%s1 + $0x2a8] sm:$0xff]
    %v208 = vld [vmem:[%s1 + $0x2b0] sm:$0xff]
    %v209 = vld [vmem:[%s1 + $0x2b8] sm:$0xff]
    %v210 = vld [vmem:[%s1 + $0x2c0] sm:$0xff]
    %v211 = vld [vmem:[%s1 + $0x2c8] sm:$0xff]
    %v212 = vld [vmem:[%s1 + $0x2d0] sm:$0xff]
    %v213 = vld [vmem:[%s1 + $0x2d8] sm:$0xff]
    %v214 = vld [vmem:[%s1 + $0x2e0] sm:$0xff]
    %v215 = vld [vmem:[%s1 + $0x2e8] sm:$0xff]
    %v216 = vld [vmem:[%s1 + $0x2f0] sm:$0xff]
    %v217 = vld [vmem:[%s1 + $0x2f8] sm:$0xff]
    %v218 = vld [vmem:[%s1 + $0x300] sm:$0xff]
    %v219 = vld [vmem:[%s1 + $0x308] sm:$0xff]
    %v220 = vld [vmem:[%s1 + $0x310] sm:$0xff]
    %v221 = vld [vmem:[%s1 + $0x318] sm:$0xff]
    %v222 = vld [vmem:[%s1 + $0x320] sm:$0xff]
    %v223 = vld [vmem:[%s1 + $0x328] sm:$0xff]
    %v224 = vld [vmem:[%s1 + $0x330] sm:$0xff]
    %v225 = vld [vmem:[%s1 + $0x338] sm:$0xff]
    %v226 = vld [vmem:[%s1 + $0x340] sm:$0xff]
    %v227 = vld [vmem:[%s1 + $0x348] sm:$0xff]
    %v228 = vld [vmem:[%s1 + $0x350] sm:$0xff]
    %v229 = vld [vmem:[%s1 + $0x358] sm:$0xff]
    %v230 = vld [vmem:[%s1 + $0x360] sm:$0xff]
    %v231 = vld [vmem:[%s1 + $0x368] sm:$0xff]
    %v232 = vld [vmem:[%s1 + $0x370] sm:$0xff]
    %v233 = vld [vmem:[%s1 + $0x378] sm:$0xff]
    %v234 = vld [vmem:[%s1 + $0x380] sm:$0xff]
    %v235 = vld [vmem:[%s1 + $0x388] sm:$0xff]
    %v236 = vld [vmem:[%s1 + $0x390] sm:$0xff]
    %v237 = vld [vmem:[%s1 + $0x398] sm:$0xff]
    %v238 = vld [vmem:[%s1 + $0x3a0] sm:$0xff]
    %v239 = vld [vmem:[%s1 + $0x3a8] sm:$0xff]
    %v240 = vld [vmem:[%s1 + $0x3b0] sm:$0xff]
    %v241 = vld [vmem:[%s1 + $0x3b8] sm:$0xff]
    %v242 = vld [vmem:[%s1 + $0x3c0] sm:$0xff]
    %v243 = vld [vmem:[%s1 + $0x3c8] sm:$0xff]
    %v244 = vld [vmem:[%s1 + $0x3d0] sm:$0xff]
    %v245 = vld [vmem:[%s1 + $0x3d8] sm:$0xff]
    %v246 = vld [vmem:[%s1 + $0x3e0] sm:$0xff]
    %v247 = vld [vmem:[%s1 + $0x3e8] sm:$0xff]
    %v248 = vld [vmem:[%s1 + $0x3f0] sm:$0xff]
    %v249 = vld [vmem:[%s1 + $0x3f8] sm:$0xff]
    %v250 = vld [vmem:[%s1 + $0x400] sm:$0xff]
    %v251 = vld [vmem:[%s1 + $0x408] sm:$0xff]
    %v252 = vld [vmem:[%s1 + $0x410] sm:$0xff]
    %v253 = vld [vmem:[%s1 + $0x418] sm:$0xff]
    %v254 = vld [vmem:[%s1 + $0x420] sm:$0xff]
    %v255 = vld [vmem:[%s1 + $0x428] sm:$0xff]
    %v256 = vld [vmem:[%s1 + $0x430] sm:$0xff]
    %v257 = vld [vmem:[%s1 + $0x438] sm:$0xff]
    %v258 = vld [vmem:[%s1 + $0x440] sm:$0xff]
    %v259 = vld [vmem:[%s1 + $0x448] sm:$0xff]
    %v260 = vld [vmem:[%s1 + $0x450] sm:$0xff]
    %v261 = vld [vmem:[%s1 + $0x458] sm:$0xff]
    %v262 = vld [vmem:[%s1 + $0x460] sm:$0xff]
    %v263 = vld [vmem:[%s1 + $0x468] sm:$0xff]
    %v264 = vld [vmem:[%s1 + $0x470] sm:$0xff]
    %v265 = vld [vmem:[%s1 + $0x478] sm:$0xff]
    %v266 = vld [vmem:[%s1 + $0x480] sm:$0xff]
    %v267 = vld [vmem:[%s1 + $0x488] sm:$0xff]
    %v268 = vld [vmem:[%s1 + $0x490] sm:$0xff]
    %v269 = vld [vmem:[%s1 + $0x498] sm:$0xff]
    %v270 = vld [vmem:[%s1 + $0x4a0] sm:$0xff]
    %v271 = vld [vmem:[%s1 + $0x4a8] sm:$0xff]
    %v272 = vld [vmem:[%s1 + $0x4b0] sm:$0xff]
    %v273 = vld [vmem:[%s1 + $0x4b8] sm:$0xff]
    %v274 = vld [vmem:[%s1 + $0x4c0] sm:$0xff]
    %v275 = vld [vmem:[%s1 + $0x4c8] sm:$0xff]
    %v276 = vld [vmem:[%s1 + $0x4d0] sm:$0xff]
    %v277 = vld [vmem:[%s1 + $0x4d8] sm:$0xff]
    %v278 = vld [vmem:[%s1 + $0x4e0] sm:$0xff]
    %v279 = vld [vmem:[%s1 + $0x4e8] sm:$0xff]
    %v280 = vld [vmem:[%s1 + $0x4f0] sm:$0xff]
    %v281 = vld [vmem:[%s1 + $0x4f8] sm:$0xff]
    %v282 = vld [vmem:[%s1 + $0x500] sm:$0xff]
    %v283 = vld [vmem:[%s1 + $0x508] sm:$0xff]
    %v284 = vld [vmem:[%s1 + $0x510] sm:$0xff]
    %v285 = vld [vmem:[%s1 + $0x518] sm:$0xff]
    %v286 = vld [vmem:[%s1 + $0x520] sm:$0xff]
    %v287 = vld [vmem:[%s1 + $0x528] sm:$0xff]
    %v288 = vld [vmem:[%s1 + $0x530] sm:$0xff]
    %v289 = vld [vmem:[%s1 + $0x538] sm:$0xff]
    %v290 = vld [vmem:[%s1 + $0x540] sm:$0xff]
    %v291 = vld [vmem:[%s1 + $0x548] sm:$0xff]
    %v292 = vld [vmem:[%s1 + $0x550] sm:$0xff]
    %v293 = vld [vmem:[%s1 + $0x558] sm:$0xff]
    %v294 = vld [vmem:[%s1 + $0x560] sm:$0xff]
    %v295 = vld [vmem:[%s1 + $0x568] sm:$0xff]
    %v296 = vld [vmem:[%s1 + $0x570] sm:$0xff]
    %v297 = vld [vmem:[%s1 + $0x578] sm:$0xff]
    %v298 = vld [vmem:[%s1 + $0x580] sm:$0xff]
    %v299 = vld [vmem:[%s1 + $0x588] sm:$0xff]
    %v300 = vld [vmem:[%s1 + $0x590] sm:$0xff]
    %v301 = vld [vmem:[%s1 + $0x598] sm:$0xff]
    %v302 = vld [vmem:[%s1 + $0x5a0] sm:$0xff]
    %v303 = vld [vmem:[%s1 + $0x5a8] sm:$0xff]
    %v304 = vld [vmem:[%s1 + $0x5b0] sm:$0xff]
    %v305 = vld [vmem:[%s1 + $0x5b8] sm:$0xff]
    %v306 = vld [vmem:[%s1 + $0x5c0] sm:$0xff]
    %v307 = vld [vmem:[%s1 + $0x5c8] sm:$0xff]
    %v308 = vld [vmem:[%s1 + $0x5d0] sm:$0xff]
    %v309 = vld [vmem:[%s1 + $0x5d8] sm:$0xff]
    %v310 = vld [vmem:[%s1 + $0x5e0] sm:$0xff]
    %v311 = vld [vmem:[%s1 + $0x5e8] sm:$0xff]
    %v312 = vld [vmem:[%s1 + $0x5f0] sm:$0xff]
    %v313 = vld [vmem:[%s1 + $0x5f8] sm:$0xff]
    %v314 = vld [vmem:[%s1 + $0x600] sm:$0xff]
    %v315 = vld [vmem:[%s1 + $0x608] sm:$0xff]
    %v316 = vld [vmem:[%s1 + $0x610] sm:$0xff]
    %v317 = vld [vmem:[%s1 + $0x618] sm:$0xff]
    %v318 = vld [vmem:[%s1 + $0x620] sm:$0xff]
    %v319 = vld [vmem:[%s1 + $0x628] sm:$0xff]
    %v320 = vld [vmem:[%s1 + $0x630] sm:$0xff]
    %v321 = vld [vmem:[%s1 + $0x638] sm:$0xff]
    %v322 = vld [vmem:[%s1 + $0x640] sm:$0xff]
    %v323 = vld [vmem:[%s1 + $0x648] sm:$0xff]
    %v324 = vld [vmem:[%s1 + $0x650] sm:$0xff]
    %v325 = vld [vmem:[%s1 + $0x658] sm:$0xff]
    %v326 = vld [vmem:[%s1 + $0x660] sm:$0xff]
    %v327 = vld [vmem:[%s1 + $0x668] sm:$0xff]
    %v328 = vld [vmem:[%s1 + $0x670] sm:$0xff]
    %v329 = vld [vmem:[%s1 + $0x678] sm:$0xff]
    %v330 = vld [vmem:[%s1 + $0x680] sm:$0xff]
    %v331 = vld [vmem:[%s1 + $0x688] sm:$0xff]
    %v332 = vld [vmem:[%s1 + $0x690] sm:$0xff]
    %v333 = vld [vmem:[%s1 + $0x698] sm:$0xff]
    %v334 = vld [vmem:[%s1 + $0x6a0] sm:$0xff]
    %v335 = vld [vmem:[%s1 + $0x6a8] sm:$0xff]
    %v336 = vld [vmem:[%s1 + $0x6b0] sm:$0xff]
    %v337 = vld [vmem:[%s1 + $0x6b8] sm:$0xff]
    %v338 = vld [vmem:[%s1 + $0x6c0] sm:$0xff]
    %v339 = vld [vmem:[%s1 + $0x6c8] sm:$0xff]
    %v340 = vld [vmem:[%s1 + $0x6d0] sm:$0xff]
    %v341 = vld [vmem:[%s1 + $0x6d8] sm:$0xff]
    %v342 = vld [vmem:[%s1 + $0x6e0] sm:$0xff]
    %v343 = vld [vmem:[%s1 + $0x6e8] sm:$0xff]
    %v344 = vld [vmem:[%s1 + $0x6f0] sm:$0xff]
    %v345 = vld [vmem:[%s1 + $0x6f8] sm:$0xff]
    %v346 = vld [vmem:[%s1 + $0x700] sm:$0xff]
    %v347 = vld [vmem:[%s1 + $0x708] sm:$0xff]
    %v348 = vld [vmem:[%s1 + $0x710] sm:$0xff]
    %v349 = vld [vmem:[%s1 + $0x718] sm:$0xff]
    %v350 = vld [vmem:[%s1 + $0x720] sm:$0xff]
    %v351 = vld [vmem:[%s1 + $0x728] sm:$0xff]
    %v352 = vld [vmem:[%s1 + $0x730] sm:$0xff]
    %v353 = vld [vmem:[%s1 + $0x738] sm:$0xff]
    %v354 = vld [vmem:[%s1 + $0x740] sm:$0xff]
    %v355 = vld [vmem:[%s1 + $0x748] sm:$0xff]
    %v356 = vld [vmem:[%s1 + $0x750] sm:$0xff]
    %v357 = vld [vmem:[%s1 + $0x758] sm:$0xff]
    %v358 = vld [vmem:[%s1 + $0x760] sm:$0xff]
    %v359 = vld [vmem:[%s1 + $0x768] sm:$0xff]
    %v360 = vld [vmem:[%s1 + $0x770] sm:$0xff]
    %v361 = vld [vmem:[%s1 + $0x778] sm:$0xff]
    %v362 = vld [vmem:[%s1 + $0x780] sm:$0xff]
    %v363 = vld [vmem:[%s1 + $0x788] sm:$0xff]
    %v364 = vld [vmem:[%s1 + $0x790] sm:$0xff]
    %v365 = vld [vmem:[%s1 + $0x798] sm:$0xff]
    %v366 = vld [vmem:[%s1 + $0x7a0] sm:$0xff]
    %v367 = vld [vmem:[%s1 + $0x7a8] sm:$0xff]
    %v368 = vld [vmem:[%s1 + $0x7b0] sm:$0xff]
    %v369 = vld [vmem:[%s1 + $0x7b8] sm:$0xff]
    %v370 = vld [vmem:[%s1 + $0x7c0] sm:$0xff]
    %v371 = vld [vmem:[%s1 + $0x7c8] sm:$0xff]
    %v372 = vld [vmem:[%s1 + $0x7d0] sm:$0xff]
    %v373 = vld [vmem:[%s1 + $0x7d8] sm:$0xff]
    %v374 = vld [vmem:[%s1 + $0x7e0] sm:$0xff]
    %v375 = vld [vmem:[%s1 + $0x7e8] sm:$0xff]
    %v376 = vld [vmem:[%s1 + $0x7f0] sm:$0xff]
    %v377 = vld [vmem:[%s1 + $0x7f8] sm:$0xff]
    %v378 = vld [vmem:[%s1 + $0x800] sm:$0xff]
    %v379 = vld [vmem:[%s1 + $0x808] sm:$0xff]
    %v380 = vld [vmem:[%s1 + $0x810] sm:$0xff]
    %v381 = vld [vmem:[%s1 + $0x818] sm:$0xff]
    %v382 = vld [vmem:[%s1 + $0x820] sm:$0xff]
    %v383 = vld [vmem:[%s1 + $0x828] sm:$0xff]
    %v384 = vld [vmem:[%s1 + $0x830] sm:$0xff]
    %v385 = vld [vmem:[%s1 + $0x838] sm:$0xff]
    %v386 = vld [vmem:[%s1 + $0x840] sm:$0xff]
    %v387 = vld [vmem:[%s1 + $0x848] sm:$0xff]
    %v388 = vld [vmem:[%s1 + $0x850] sm:$0xff]
    %v389 = vld [vmem:[%s1 + $0x858] sm:$0xff]
    %v390 = vld [vmem:[%s1 + $0x860] sm:$0xff]
    %v391 = vld [vmem:[%s1 + $0x868] sm:$0xff]
    %v392 = vld [vmem:[%s1 + $0x870] sm:$0xff]
    %v393 = vld [vmem:[%s1 + $0x878] sm:$0xff]
    %v394 = vld [vmem:[%s1 + $0x880] sm:$0xff]
    %v395 = vld [vmem:[%s1 + $0x888] sm:$0xff]
    %v396 = vld [vmem:[%s1 + $0x890] sm:$0xff]
    %v397 = vld [vmem:[%s1 + $0x898] sm:$0xff]
    %v398 = vld [vmem:[%s1 + $0x8a0] sm:$0xff]
    %v399 = vld [vmem:[%s1 + $0x8a8] sm:$0xff]
    %v400 = vld [vmem:[%s1 + $0x8b0] sm:$0xff]
    %v401 = vld [vmem:[%s1 + $0x8b8] sm:$0xff]
    %v402 = vld [vmem:[%s1 + $0x8c0] sm:$0xff]
    %v403 = vld [vmem:[%s1 + $0x8c8] sm:$0xff]
    %v404 = vld [vmem:[%s1 + $0x8d0] sm:$0xff]
    %v405 = vld [vmem:[%s1 + $0x8d8] sm:$0xff]
    %v406 = vld [vmem:[%s1 + $0x8e0] sm:$0xff]
    %v407 = vld [vmem:[%s1 + $0x8e8] sm:$0xff]
    %v408 = vld [vmem:[%s1 + $0x8f0] sm:$0xff]
    %v409 = vld [vmem:[%s1 + $0x8f8] sm:$0xff]
    %v410 = vld [vmem:[%s1 + $0x900] sm:$0xff]
    %v411 = vld [vmem:[%s1 + $0x908] sm:$0xff]
    %v412 = vld [vmem:[%s1 + $0x910] sm:$0xff]
    %v413 = vld [vmem:[%s1 + $0x918] sm:$0xff]
    %v414 = vld [vmem:[%s1 + $0x920] sm:$0xff]
    %v415 = vld [vmem:[%s1 + $0x928] sm:$0xff]
    %v416 = vld [vmem:[%s1 + $0x930] sm:$0xff]
    %v417 = vld [vmem:[%s1 + $0x938] sm:$0xff]
    %v418 = vld [vmem:[%s1 + $0x940] sm:$0xff]
    %v419 = vld [vmem:[%s1 + $0x948] sm:$0xff]
    %v420 = vld [vmem:[%s1 + $0x950] sm:$0xff]
    %v421 = vld [vmem:[%s1 + $0x958] sm:$0xff]
    %v422 = vld [vmem:[%s1 + $0x960] sm:$0xff]
    %v423 = vld [vmem:[%s1 + $0x968] sm:$0xff]
    %v424 = vld [vmem:[%s1 + $0x970] sm:$0xff]
    %v425 = vld [vmem:[%s1 + $0x978] sm:$0xff]
    %v426 = vld [vmem:[%s1 + $0x980] sm:$0xff]
    %v427 = vld [vmem:[%s1 + $0x988] sm:$0xff]
    %v428 = vld [vmem:[%s1 + $0x990] sm:$0xff]
    %v429 = vld [vmem:[%s1 + $0x998] sm:$0xff]
    %v430 = vld [vmem:[%s1 + $0x9a0] sm:$0xff]
    %v431 = vld [vmem:[%s1 + $0x9a8] sm:$0xff]
    %v432 = vld [vmem:[%s1 + $0x9b0] sm:$0xff]
    %v433 = vld [vmem:[%s1 + $0x9b8] sm:$0xff]
    %v434 = vld [vmem:[%s1 + $0x9c0] sm:$0xff]
    %v435 = vld [vmem:[%s1 + $0x9c8] sm:$0xff]
    %v436 = vld [vmem:[%s1 + $0x9d0] sm:$0xff]
    %v437 = vld [vmem:[%s1 + $0x9d8] sm:$0xff]
    %v438 = vld [vmem:[%s1 + $0x9e0] sm:$0xff]
    %v439 = vld [vmem:[%s1 + $0x9e8] sm:$0xff]
    %v440 = vld [vmem:[%s1 + $0x9f0] sm:$0xff]
    %v441 = vld [vmem:[%s1 + $0x9f8] sm:$0xff]
    %v442 = vld [vmem:[%s1 + $0xa00] sm:$0xff]
    %v443 = vld [vmem:[%s1 + $0xa08] sm:$0xff]
    %v444 = vld [vmem:[%s1 + $0xa10] sm:$0xff]
    %v445 = vld [vmem:[%s1 + $0xa18] sm:$0xff]
    %v446 = vld [vmem:[%s1 + $0xa20] sm:$0xff]
    %v447 = vld [vmem:[%s1 + $0xa28] sm:$0xff]
    %v448 = vld [vmem:[%s1 + $0xa30] sm:$0xff]
    %v449 = vld [vmem:[%s1 + $0xa38] sm:$0xff]
    %v450 = vld [vmem:[%s1 + $0xa40] sm:$0xff]
    %v451 = vld [vmem:[%s1 + $0xa48] sm:$0xff]
    %v452 = vld [vmem:[%s1 + $0xa50] sm:$0xff]
    %v453 = vld [vmem:[%s1 + $0xa58] sm:$0xff]
    %v454 = vld [vmem:[%s1 + $0xa60] sm:$0xff]
    %v455 = vld [vmem:[%s1 + $0xa68] sm:$0xff]
    %v456 = vld [vmem:[%s1 + $0xa70] sm:$0xff]
    %v457 = vld [vmem:[%s1 + $0xa78] sm:$0xff]
    %v458 = vld [vmem:[%s1 + $0xa80] sm:$0xff]
    %v459 = vld [vmem:[%s1 + $0xa88] sm:$0xff]
    %v460 = vld [vmem:[%s1 + $0xa90] sm:$0xff]
    %v461 = vld [vmem:[%s1 + $0xa98] sm:$0xff]
    %v462 = vld [vmem:[%s1 + $0xaa0] sm:$0xff]
    %v463 = vld [vmem:[%s1 + $0xaa8] sm:$0xff]
    %v464 = vld [vmem:[%s1 + $0xab0] sm:$0xff]
    %v465 = vld [vmem:[%s1 + $0xab8] sm:$0xff]
    %v466 = vld [vmem:[%s1 + $0xac0] sm:$0xff]
    %v467 = vld [vmem:[%s1 + $0xac8] sm:$0xff]
    %v468 = vld [vmem:[%s1 + $0xad0] sm:$0xff]
    %v469 = vld [vmem:[%s1 + $0xad8] sm:$0xff]
    %v470 = vld [vmem:[%s1 + $0xae0] sm:$0xff]
    %v471 = vld [vmem:[%s1 + $0xae8] sm:$0xff]
    %v472 = vld [vmem:[%s1 + $0xaf0] sm:$0xff]
    %v473 = vld [vmem:[%s1 + $0xaf8] sm:$0xff]
    %v474 = vld [vmem:[%s1 + $0xb00] sm:$0xff]
    %v475 = vld [vmem:[%s1 + $0xb08] sm:$0xff]
    %v476 = vld [vmem:[%s1 + $0xb10] sm:$0xff]
    %v477 = vld [vmem:[%s1 + $0xb18] sm:$0xff]
    %v478 = vld [vmem:[%s1 + $0xb20] sm:$0xff]
    %v479 = vld [vmem:[%s1 + $0xb28] sm:$0xff]
    %v480 = vld [vmem:[%s1 + $0xb30] sm:$0xff]
    %v481 = vld [vmem:[%s1 + $0xb38] sm:$0xff]
    %v482 = vld [vmem:[%s1 + $0xb40] sm:$0xff]
    %v483 = vld [vmem:[%s1 + $0xb48] sm:$0xff]
    %v484 = vld [vmem:[%s1 + $0xb50] sm:$0xff]
    %v485 = vld [vmem:[%s1 + $0xb58] sm:$0xff]
    %v486 = vld [vmem:[%s1 + $0xb60] sm:$0xff]
    %v487 = vld [vmem:[%s1 + $0xb68] sm:$0xff]
    %v488 = vld [vmem:[%s1 + $0xb70] sm:$0xff]
    %v489 = vld [vmem:[%s1 + $0xb78] sm:$0xff]
    %v490 = vld [vmem:[%s1 + $0xb80] sm:$0xff]
    %v491 = vld [vmem:[%s1 + $0xb88] sm:$0xff]
    %v492 = vld [vmem:[%s1 + $0xb90] sm:$0xff]
    %v493 = vld [vmem:[%s1 + $0xb98] sm:$0xff]
    %v494 = vld [vmem:[%s1 + $0xba0] sm:$0xff]
    %v495 = vld [vmem:[%s1 + $0xba8] sm:$0xff]
    %v496 = vld [vmem:[%s1 + $0xbb0] sm:$0xff]
    %v497 = vld [vmem:[%s1 + $0xbb8] sm:$0xff]
    %v498 = vld [vmem:[%s1 + $0xbc0] sm:$0xff]
    %v499 = vld [vmem:[%s1 + $0xbc8] sm:$0xff]
    %v500 = vld [vmem:[%s1 + $0xbd0] sm:$0xff]
    %v501 = vld [vmem:[%s1 + $0xbd8] sm:$0xff]
    %v502 = vld [vmem:[%s1 + $0xbe0] sm:$0xff]
    %v503 = vld [vmem:[%s1 + $0xbe8] sm:$0xff]
    %v504 = vld [vmem:[%s1 + $0xbf0] sm:$0xff]
    %v505 = vld [vmem:[%s1 + $0xbf8] sm:$0xff]
    %v506 = vld [vmem:[%s1 + $0xc00] sm:$0xff]
    %v507 = vld [vmem:[%s1 + $0xc08] sm:$0xff]
    %v508 = vld [vmem:[%s1 + $0xc10] sm:$0xff]
    %v509 = vld [vmem:[%s1 + $0xc18] sm:$0xff]
    %v510 = vld [vmem:[%s1 + $0xc20] sm:$0xff]
    %v511 = vld [vmem:[%s1 + $0xc28] sm:$0xff]
    %v512 = vld [vmem:[%s1 + $0xc30] sm:$0xff]
    %v513 = vld [vmem:[%s1 + $0xc38] sm:$0xff]
    %v514 = vld [vmem:[%s1 + $0xc40] sm:$0xff]
    %v515 = vld [vmem:[%s1 + $0xc48] sm:$0xff]
    %v516 = vld [vmem:[%s1 + $0xc50] sm:$0xff]
    %v517 = vld [vmem:[%s1 + $0xc58] sm:$0xff]
    %v518 = vld [vmem:[%s1 + $0xc60] sm:$0xff]
    %v519 = vld [vmem:[%s1 + $0xc68] sm:$0xff]
    %v520 = vld [vmem:[%s1 + $0xc70] sm:$0xff]
    %v521 = vld [vmem:[%s1 + $0xc78] sm:$0xff]
    %v522 = vld [vmem:[%s1 + $0xc80] sm:$0xff]
    %v523 = vld [vmem:[%s1 + $0xc88] sm:$0xff]
    %v524 = vld [vmem:[%s1 + $0xc90] sm:$0xff]
    %v525 = vld [vmem:[%s1 + $0xc98] sm:$0xff]
    %v526 = vld [vmem:[%s1 + $0xca0] sm:$0xff]
    %v527 = vld [vmem:[%s1 + $0xca8] sm:$0xff]
    %v528 = vld [vmem:[%s1 + $0xcb0] sm:$0xff]
    %v529 = vld [vmem:[%s1 + $0xcb8] sm:$0xff]
    %v530 = vld [vmem:[%s1 + $0xcc0] sm:$0xff]
    %v531 = vld [vmem:[%s1 + $0xcc8] sm:$0xff]
    %v532 = vld [vmem:[%s1 + $0xcd0] sm:$0xff]
    %v533 = vld [vmem:[%s1 + $0xcd8] sm:$0xff]
    %v534 = vld [vmem:[%s1 + $0xce0] sm:$0xff]
    %v535 = vld [vmem:[%s1 + $0xce8] sm:$0xff]
    %v536 = vld [vmem:[%s1 + $0xcf0] sm:$0xff]
    %v537 = vld [vmem:[%s1 + $0xcf8] sm:$0xff]
    %v538 = vld [vmem:[%s1 + $0xd00] sm:$0xff]
    %v539 = vld [vmem:[%s1 + $0xd08] sm:$0xff]
    %v540 = vld [vmem:[%s1 + $0xd10] sm:$0xff]
    %v541 = vld [vmem:[%s1 + $0xd18] sm:$0xff]
    %v542 = vld [vmem:[%s1 + $0xd20] sm:$0xff]
    %v543 = vld [vmem:[%s1 + $0xd28] sm:$0xff]
    %v544 = vld [vmem:[%s1 + $0xd30] sm:$0xff]
    %v545 = vld [vmem:[%s1 + $0xd38] sm:$0xff]
    %v546 = vld [vmem:[%s1 + $0xd40] sm:$0xff]
    %v547 = vld [vmem:[%s1 + $0xd48] sm:$0xff]
    %v548 = vld [vmem:[%s1 + $0xd50] sm:$0xff]
    %v549 = vld [vmem:[%s1 + $0xd58] sm:$0xff]
    %v550 = vld [vmem:[%s1 + $0xd60] sm:$0xff]
    %v551 = vld [vmem:[%s1 + $0xd68] sm:$0xff]
    %v552 = vld [vmem:[%s1 + $0xd70] sm:$0xff]
    %v553 = vld [vmem:[%s1 + $0xd78] sm:$0xff]
    %v554 = vld [vmem:[%s1 + $0xd80] sm:$0xff]
    %v555 = vld [vmem:[%s1 + $0xd88] sm:$0xff]
    %v556 = vld [vmem:[%s1 + $0xd90] sm:$0xff]
    %v557 = vld [vmem:[%s1 + $0xd98] sm:$0xff]
    %v558 = vld [vmem:[%s1 + $0xda0] sm:$0xff]
    %v559 = vld [vmem:[%s1 + $0xda8] sm:$0xff]
    %v560 = vld [vmem:[%s1 + $0xdb0] sm:$0xff]
    %v561 = vld [vmem:[%s1 + $0xdb8] sm:$0xff]
    %v562 = vld [vmem:[%s1 + $0xdc0] sm:$0xff]
    %v563 = vld [vmem:[%s1 + $0xdc8] sm:$0xff]
    %v564 = vld [vmem:[%s1 + $0xdd0] sm:$0xff]
    %v565 = vld [vmem:[%s1 + $0xdd8] sm:$0xff]
    %v566 = vld [vmem:[%s1 + $0xde0] sm:$0xff]
    %v567 = vld [vmem:[%s1 + $0xde8] sm:$0xff]
    %v568 = vld [vmem:[%s1 + $0xdf0] sm:$0xff]
    %v569 = vld [vmem:[%s1 + $0xdf8] sm:$0xff]
    %v570 = vld [vmem:[%s1 + $0xe00] sm:$0xff]
    %v571 = vld [vmem:[%s1 + $0xe08] sm:$0xff]
    %v572 = vld [vmem:[%s1 + $0xe10] sm:$0xff]
    %v573 = vld [vmem:[%s1 + $0xe18] sm:$0xff]
    %v574 = vld [vmem:[%s1 + $0xe20] sm:$0xff]
    %v575 = vld [vmem:[%s1 + $0xe28] sm:$0xff]
    %v576 = vld [vmem:[%s1 + $0xe30] sm:$0xff]
    %v577 = vld [vmem:[%s1 + $0xe38] sm:$0xff]
    %v578 = vld [vmem:[%s1 + $0xe40] sm:$0xff]
    %v579 = vld [vmem:[%s1 + $0xe48] sm:$0xff]
    %v580 = vld [vmem:[%s1 + $0xe50] sm:$0xff]
    %v581 = vld [vmem:[%s1 + $0xe58] sm:$0xff]
    %v582 = vld [vmem:[%s1 + $0xe60] sm:$0xff]
    %v583 = vld [vmem:[%s1 + $0xe68] sm:$0xff]
    %v584 = vld [vmem:[%s1 + $0xe70] sm:$0xff]
    %v585 = vld [vmem:[%s1 + $0xe78] sm:$0xff]
    %v586 = vld [vmem:[%s1 + $0xe80] sm:$0xff]
    %v587 = vld [vmem:[%s1 + $0xe88] sm:$0xff]
    %v588 = vld [vmem:[%s1 + $0xe90] sm:$0xff]
    %v589 = vld [vmem:[%s1 + $0xe98] sm:$0xff]
    %v590 = vld [vmem:[%s1 + $0xea0] sm:$0xff]
    %v591 = vld [vmem:[%s1 + $0xea8] sm:$0xff]
    %v592 = vld [vmem:[%s1 + $0xeb0] sm:$0xff]
    %v593 = vld [vmem:[%s1 + $0xeb8] sm:$0xff]
    %v594 = vld [vmem:[%s1 + $0xec0] sm:$0xff]
    %v595 = vld [vmem:[%s1 + $0xec8] sm:$0xff]
    %v596 = vld [vmem:[%s1 + $0xed0] sm:$0xff]
    %v597 = vld [vmem:[%s1 + $0xed8] sm:$0xff]
    %v598 = vld [vmem:[%s1 + $0xee0] sm:$0xff]
    %v599 = vld [vmem:[%s1 + $0xee8] sm:$0xff]
    %v600 = vld [vmem:[%s1 + $0xef0] sm:$0xff]
    %v601 = vld [vmem:[%s1 + $0xef8] sm:$0xff]
    %v602 = vld [vmem:[%s1 + $0xf00] sm:$0xff]
    %v603 = vld [vmem:[%s1 + $0xf08] sm:$0xff]
    %v604 = vld [vmem:[%s1 + $0xf10] sm:$0xff]
    %v605 = vld [vmem:[%s1 + $0xf18] sm:$0xff]
    %v606 = vld [vmem:[%s1 + $0xf20] sm:$0xff]
    %v607 = vld [vmem:[%s1 + $0xf28] sm:$0xff]
    %v608 = vld [vmem:[%s1 + $0xf30] sm:$0xff]
    %v609 = vld [vmem:[%s1 + $0xf38] sm:$0xff]
    %v610 = vld [vmem:[%s1 + $0xf40] sm:$0xff]
    %v611 = vld [vmem:[%s1 + $0xf48] sm:$0xff]
    %v612 = vld [vmem:[%s1 + $0xf50] sm:$0xff]
    %v613 = vld [vmem:[%s1 + $0xf58] sm:$0xff]
    %v614 = vld [vmem:[%s1 + $0xf60] sm:$0xff]
    %v615 = vld [vmem:[%s1 + $0xf68] sm:$0xff]
    %v616 = vld [vmem:[%s1 + $0xf70] sm:$0xff]
    %v617 = vld [vmem:[%s1 + $0xf78] sm:$0xff]
    %v618 = vld [vmem:[%s1 + $0xf80] sm:$0xff]
    %v619 = vld [vmem:[%s1 + $0xf88] sm:$0xff]
    %v620 = vld [vmem:[%s1 + $0xf90] sm:$0xff]
    %v621 = vld [vmem:[%s1 + $0xf98] sm:$0xff]
    %v622 = vld [vmem:[%s1 + $0xfa0] sm:$0xff]
    %v623 = vld [vmem:[%s1 + $0xfa8] sm:$0xff]
    %v624 = vld [vmem:[%s1 + $0xfb0] sm:$0xff]
    %v625 = vld [vmem:[%s1 + $0xfb8] sm:$0xff]
    %v626 = vld [vmem:[%s1 + $0xfc0] sm:$0xff]
    %v627 = vld [vmem:[%s1 + $0xfc8] sm:$0xff]
    %v628 = vld [vmem:[%s1 + $0xfd0] sm:$0xff]
    %v629 = vld [vmem:[%s1 + $0xfd8] sm:$0xff]
    %v630 = vld [vmem:[%s1 + $0xfe0] sm:$0xff]
    %v631 = vld [vmem:[%s1 + $0xfe8] sm:$0xff]
    %v632 = vld [vmem:[%s1 + $0xff0] sm:$0xff]
    %v633 = vld [vmem:[%s1 + $0xff8] sm:$0xff]
    %v634 = vld [vmem:[%s1 + $0x1000] sm:$0xff]
    %v635 = vld [vmem:[%s1 + $0x1008] sm:$0xff]
    %v636 = vld [vmem:[%s1 + $0x1010] sm:$0xff]
    %v637 = vld [vmem:[%s1 + $0x1018] sm:$0xff]
    %v638 = vld [vmem:[%s1 + $0x1020] sm:$0xff]
    %v639 = vld [vmem:[%s1 + $0x1028] sm:$0xff]
    %v640 = vld [vmem:[%s1 + $0x1030] sm:$0xff]
    %v641 = vld [vmem:[%s1 + $0x1038] sm:$0xff]
    %v642 = vld [vmem:[%s1 + $0x1040] sm:$0xff]
    %v643 = vld [vmem:[%s1 + $0x1048] sm:$0xff]
    %v644 = vld [vmem:[%s1 + $0x1050] sm:$0xff]
    %v645 = vld [vmem:[%s1 + $0x1058] sm:$0xff]
    %v646 = vld [vmem:[%s1 + $0x1060] sm:$0xff]
    %v647 = vld [vmem:[%s1 + $0x1068] sm:$0xff]
    %v648 = vld [vmem:[%s1 + $0x1070] sm:$0xff]
    %v649 = vld [vmem:[%s1 + $0x1078] sm:$0xff]
    %v650 = vld [vmem:[%s1 + $0x1080] sm:$0xff]
    %v651 = vld [vmem:[%s1 + $0x1088] sm:$0xff]
    %v652 = vld [vmem:[%s1 + $0x1090] sm:$0xff]
    %v653 = vld [vmem:[%s1 + $0x1098] sm:$0xff]
    %v654 = vld [vmem:[%s1 + $0x10a0] sm:$0xff]
    %v655 = vld [vmem:[%s1 + $0x10a8] sm:$0xff]
    %v656 = vld [vmem:[%s1 + $0x10b0] sm:$0xff]
    %v657 = vld [vmem:[%s1 + $0x10b8] sm:$0xff]
    %v658 = vld [vmem:[%s1 + $0x10c0] sm:$0xff]
    %v659 = vld [vmem:[%s1 + $0x10c8] sm:$0xff]
    %v660 = vld [vmem:[%s1 + $0x10d0] sm:$0xff]
    %v661 = vld [vmem:[%s1 + $0x10d8] sm:$0xff]
    %v662 = vld [vmem:[%s1 + $0x10e0] sm:$0xff]
    %v663 = vld [vmem:[%s1 + $0x10e8] sm:$0xff]
    %v664 = vld [vmem:[%s1 + $0x10f0] sm:$0xff]
    %v665 = vld [vmem:[%s1 + $0x10f8] sm:$0xff]
    %v666 = vld [vmem:[%s1 + $0x1100] sm:$0xff]
    %v667 = vld [vmem:[%s1 + $0x1108] sm:$0xff]
    %v668 = vld [vmem:[%s1 + $0x1110] sm:$0xff]
    %v669 = vld [vmem:[%s1 + $0x1118] sm:$0xff]
    %v670 = vld [vmem:[%s1 + $0x1120] sm:$0xff]
    %v671 = vld [vmem:[%s1 + $0x1128] sm:$0xff]
    %v672 = vld [vmem:[%s1 + $0x1130] sm:$0xff]
    %v673 = vld [vmem:[%s1 + $0x1138] sm:$0xff]
    %v674 = vld [vmem:[%s1 + $0x1140] sm:$0xff]
    %v675 = vld [vmem:[%s1 + $0x1148] sm:$0xff]
    %v676 = vld [vmem:[%s1 + $0x1150] sm:$0xff]
    %v677 = vld [vmem:[%s1 + $0x1158] sm:$0xff]
    %v678 = vld [vmem:[%s1 + $0x1160] sm:$0xff]
    %v679 = vld [vmem:[%s1 + $0x1168] sm:$0xff]
    %v680 = vld [vmem:[%s1 + $0x1170] sm:$0xff]
    %v681 = vld [vmem:[%s1 + $0x1178] sm:$0xff]
    %v682 = vld [vmem:[%s1 + $0x1180] sm:$0xff]
    %v683 = vld [vmem:[%s1 + $0x1188] sm:$0xff]
    %v684 = vld [vmem:[%s1 + $0x1190] sm:$0xff]
    %v685 = vld [vmem:[%s1 + $0x1198] sm:$0xff]
    %v686 = vld [vmem:[%s1 + $0x11a0] sm:$0xff]
    %v687 = vld [vmem:[%s1 + $0x11a8] sm:$0xff]
    %v688 = vld [vmem:[%s1 + $0x11b0] sm:$0xff]
    %v689 = vld [vmem:[%s1 + $0x11b8] sm:$0xff]
    %v690 = vld [vmem:[%s1 + $0x11c0] sm:$0xff]
    %v691 = vld [vmem:[%s1 + $0x11c8] sm:$0xff]
    %v692 = vld [vmem:[%s1 + $0x11d0] sm:$0xff]
    %v693 = vld [vmem:[%s1 + $0x11d8] sm:$0xff]
    %v694 = vld [vmem:[%s1 + $0x11e0] sm:$0xff]
    %v695 = vld [vmem:[%s1 + $0x11e8] sm:$0xff]
    %v696 = vld [vmem:[%s1 + $0x11f0] sm:$0xff]
    %v697 = vld [vmem:[%s1 + $0x11f8] sm:$0xff]
    %v698 = vld [vmem:[%s1 + $0x1200] sm:$0xff]
    %v699 = vld [vmem:[%s1 + $0x1208] sm:$0xff]
    %v700 = vld [vmem:[%s1 + $0x1210] sm:$0xff]
    %v701 = vld [vmem:[%s1 + $0x1218] sm:$0xff]
    %v702 = vld [vmem:[%s1 + $0x1220] sm:$0xff]
    %v703 = vld [vmem:[%s1 + $0x1228] sm:$0xff]
    %v704 = vld [vmem:[%s1 + $0x1230] sm:$0xff]
    %v705 = vld [vmem:[%s1 + $0x1238] sm:$0xff]
    %v706 = vld [vmem:[%s1 + $0x1240] sm:$0xff]
    %v707 = vld [vmem:[%s1 + $0x1248] sm:$0xff]
    %v708 = vld [vmem:[%s1 + $0x1250] sm:$0xff]
    %v709 = vld [vmem:[%s1 + $0x1258] sm:$0xff]
    %v710 = vld [vmem:[%s1 + $0x1260] sm:$0xff]
    %v711 = vld [vmem:[%s1 + $0x1268] sm:$0xff]
    %v712 = vld [vmem:[%s1 + $0x1270] sm:$0xff]
    %v713 = vld [vmem:[%s1 + $0x1278] sm:$0xff]
    %v714 = vld [vmem:[%s1 + $0x1280] sm:$0xff]
    %v715 = vld [vmem:[%s1 + $0x1288] sm:$0xff]
    %v716 = vld [vmem:[%s1 + $0x1290] sm:$0xff]
    %v717 = vld [vmem:[%s1 + $0x1298] sm:$0xff]
    %v718 = vld [vmem:[%s1 + $0x12a0] sm:$0xff]
    %v719 = vld [vmem:[%s1 + $0x12a8] sm:$0xff]
    %v720 = vld [vmem:[%s1 + $0x12b0] sm:$0xff]
    %v721 = vld [vmem:[%s1 + $0x12b8] sm:$0xff]
    %v722 = vld [vmem:[%s1 + $0x12c0] sm:$0xff]
    %v723 = vld [vmem:[%s1 + $0x12c8] sm:$0xff]
    %v724 = vld [vmem:[%s1 + $0x12d0] sm:$0xff]
    %v725 = vld [vmem:[%s1 + $0x12d8] sm:$0xff]
    %v726 = vld [vmem:[%s1 + $0x12e0] sm:$0xff]
    %v727 = vld [vmem:[%s1 + $0x12e8] sm:$0xff]
    %v728 = vld [vmem:[%s1 + $0x12f0] sm:$0xff]
    %v729 = vld [vmem:[%s1 + $0x12f8] sm:$0xff]
    %v730 = vld [vmem:[%s1 + $0x1300] sm:$0xff]
    %v731 = vld [vmem:[%s1 + $0x1308] sm:$0xff]
    %v732 = vld [vmem:[%s1 + $0x1310] sm:$0xff]
    %v733 = vld [vmem:[%s1 + $0x1318] sm:$0xff]
    %v734 = vld [vmem:[%s1 + $0x1320] sm:$0xff]
    %v735 = vld [vmem:[%s1 + $0x1328] sm:$0xff]
    %v736 = vld [vmem:[%s1 + $0x1330] sm:$0xff]
    %v737 = vld [vmem:[%s1 + $0x1338] sm:$0xff]
    %v738 = vld [vmem:[%s1 + $0x1340] sm:$0xff]
    %v739 = vld [vmem:[%s1 + $0x1348] sm:$0xff]
    %v740 = vld [vmem:[%s1 + $0x1350] sm:$0xff]
    %v741 = vld [vmem:[%s1 + $0x1358] sm:$0xff]
    %v742 = vld [vmem:[%s1 + $0x1360] sm:$0xff]
    %v743 = vld [vmem:[%s1 + $0x1368] sm:$0xff]
    %v744 = vld [vmem:[%s1 + $0x1370] sm:$0xff]
    %v745 = vld [vmem:[%s1 + $0x1378] sm:$0xff]
    %v746 = vld [vmem:[%s1 + $0x1380] sm:$0xff]
    %v747 = vld [vmem:[%s1 + $0x1388] sm:$0xff]
    %v748 = vld [vmem:[%s1 + $0x1390] sm:$0xff]
    %v749 = vld [vmem:[%s1 + $0x1398] sm:$0xff]
    %v750 = vld [vmem:[%s1 + $0x13a0] sm:$0xff]
    %v751 = vld [vmem:[%s1 + $0x13a8] sm:$0xff]
    %v752 = vld [vmem:[%s1 + $0x13b0] sm:$0xff]
    %v753 = vld [vmem:[%s1 + $0x13b8] sm:$0xff]
    %v754 = vld [vmem:[%s1 + $0x13c0] sm:$0xff]
    %v755 = vld [vmem:[%s1 + $0x13c8] sm:$0xff]
    %v756 = vld [vmem:[%s1 + $0x13d0] sm:$0xff]
    %v757 = vld [vmem:[%s1 + $0x13d8] sm:$0xff]
    %v758 = vld [vmem:[%s1 + $0x13e0] sm:$0xff]
    %v759 = vld [vmem:[%s1 + $0x13e8] sm:$0xff]
    %v760 = vld [vmem:[%s1 + $0x13f0] sm:$0xff]
    %v761 = vld [vmem:[%s1 + $0x13f8] sm:$0xff]
    %v762 = vld [vmem:[%s1 + $0x1400] sm:$0xff]
    %v763 = vld [vmem:[%s1 + $0x1408] sm:$0xff]
    %v764 = vld [vmem:[%s1 + $0x1410] sm:$0xff]
    %v765 = vld [vmem:[%s1 + $0x1418] sm:$0xff]
    %v766 = vld [vmem:[%s1 + $0x1420] sm:$0xff]
    %v767 = vld [vmem:[%s1 + $0x1428] sm:$0xff]
    %v768 = vld [vmem:[%s1 + $0x1430] sm:$0xff]
    %v769 = vld [vmem:[%s1 + $0x1438] sm:$0xff]
    %v770 = vld [vmem:[%s1 + $0x1440] sm:$0xff]
    %v771 = vld [vmem:[%s1 + $0x1448] sm:$0xff]
    %v772 = vld [vmem:[%s1 + $0x1450] sm:$0xff]
    %v773 = vld [vmem:[%s1 + $0x1458] sm:$0xff]
    %v774 = vld [vmem:[%s1 + $0x1460] sm:$0xff]
    %v775 = vld [vmem:[%s1 + $0x1468] sm:$0xff]
    %v776 = vld [vmem:[%s1 + $0x1470] sm:$0xff]
    %v777 = vld [vmem:[%s1 + $0x1478] sm:$0xff]
    %v778 = vld [vmem:[%s1 + $0x1480] sm:$0xff]
    %v779 = vld [vmem:[%s1 + $0x1488] sm:$0xff]
    %v780 = vld [vmem:[%s1 + $0x1490] sm:$0xff]
    %v781 = vld [vmem:[%s1 + $0x1498] sm:$0xff]
    %v782 = vld [vmem:[%s1 + $0x14a0] sm:$0xff]
    %v783 = vld [vmem:[%s1 + $0x14a8] sm:$0xff]
    %v784 = vld [vmem:[%s1 + $0x14b0] sm:$0xff]
    %v785 = vld [vmem:[%s1 + $0x14b8] sm:$0xff]
    %v786 = vld [vmem:[%s1 + $0x14c0] sm:$0xff]
    %v787 = vld [vmem:[%s1 + $0x14c8] sm:$0xff]
    %v788 = vld [vmem:[%s1 + $0x14d0] sm:$0xff]
    %v789 = vld [vmem:[%s1 + $0x14d8] sm:$0xff]
    %v790 = vld [vmem:[%s1 + $0x14e0] sm:$0xff]
    %v791 = vld [vmem:[%s1 + $0x14e8] sm:$0xff]
    %v792 = vld [vmem:[%s1 + $0x14f0] sm:$0xff]
    %v793 = vld [vmem:[%s1 + $0x14f8] sm:$0xff]
    %v794 = vld [vmem:[%s1 + $0x1500] sm:$0xff]
    %v795 = vld [vmem:[%s1 + $0x1508] sm:$0xff]
    %v796 = vld [vmem:[%s1 + $0x1510] sm:$0xff]
    %v797 = vld [vmem:[%s1 + $0x1518] sm:$0xff]
    %v798 = vld [vmem:[%s1 + $0x1520] sm:$0xff]
    %v799 = vld [vmem:[%s1 + $0x1528] sm:$0xff]
    %v800 = vld [vmem:[%s1 + $0x1530] sm:$0xff]
    %v801 = vld [vmem:[%s1 + $0x1538] sm:$0xff]
    %v802 = vld [vmem:[%s1 + $0x1540] sm:$0xff]
    %v803 = vld [vmem:[%s1 + $0x1548] sm:$0xff]
    %v804 = vld [vmem:[%s1 + $0x1550] sm:$0xff]
    %v805 = vld [vmem:[%s1 + $0x1558] sm:$0xff]
    %v806 = vld [vmem:[%s1 + $0x1560] sm:$0xff]
    %v807 = vld [vmem:[%s1 + $0x1568] sm:$0xff]
    %v808 = vld [vmem:[%s1 + $0x1570] sm:$0xff]
    %v809 = vld [vmem:[%s1 + $0x1578] sm:$0xff]
    %v810 = vld [vmem:[%s1 + $0x1580] sm:$0xff]
    %v811 = vld [vmem:[%s1 + $0x1588] sm:$0xff]
    %v812 = vld [vmem:[%s1 + $0x1590] sm:$0xff]
    %v813 = vld [vmem:[%s1 + $0x1598] sm:$0xff]
    %v814 = vld [vmem:[%s1 + $0x15a0] sm:$0xff]
    %v815 = vld [vmem:[%s1 + $0x15a8] sm:$0xff]
    %v816 = vld [vmem:[%s1 + $0x15b0] sm:$0xff]
    %v817 = vld [vmem:[%s1 + $0x15b8] sm:$0xff]
    %v818 = vld [vmem:[%s1 + $0x15c0] sm:$0xff]
    %v819 = vld [vmem:[%s1 + $0x15c8] sm:$0xff]
    %v820 = vld [vmem:[%s1 + $0x15d0] sm:$0xff]
    %v821 = vld [vmem:[%s1 + $0x15d8] sm:$0xff]
    %v822 = vld [vmem:[%s1 + $0x15e0] sm:$0xff]
    %v823 = vld [vmem:[%s1 + $0x15e8] sm:$0xff]
    %v824 = vld [vmem:[%s1 + $0x15f0] sm:$0xff]
    %v825 = vld [vmem:[%s1 + $0x15f8] sm:$0xff]
    %v826 = vld [vmem:[%s1 + $0x1600] sm:$0xff]
    %v827 = vld [vmem:[%s1 + $0x1608] sm:$0xff]
    %v828 = vld [vmem:[%s1 + $0x1610] sm:$0xff]
    %v829 = vld [vmem:[%s1 + $0x1618] sm:$0xff]
    %v830 = vld [vmem:[%s1 + $0x1620] sm:$0xff]
    %v831 = vld [vmem:[%s1 + $0x1628] sm:$0xff]
    %v832 = vld [vmem:[%s1 + $0x1630] sm:$0xff]
    %v833 = vld [vmem:[%s1 + $0x1638] sm:$0xff]
    %v834 = vld [vmem:[%s1 + $0x1640] sm:$0xff]
    %v835 = vld [vmem:[%s1 + $0x1648] sm:$0xff]
    %v836 = vld [vmem:[%s1 + $0x1650] sm:$0xff]
    %v837 = vld [vmem:[%s1 + $0x1658] sm:$0xff]
    %v838 = vld [vmem:[%s1 + $0x1660] sm:$0xff]
    %v839 = vld [vmem:[%s1 + $0x1668] sm:$0xff]
    %v840 = vld [vmem:[%s1 + $0x1670] sm:$0xff]
    %v841 = vld [vmem:[%s1 + $0x1678] sm:$0xff]
    %v842 = vld [vmem:[%s1 + $0x1680] sm:$0xff]
    %v843 = vld [vmem:[%s1 + $0x1688] sm:$0xff]
    %v844 = vld [vmem:[%s1 + $0x1690] sm:$0xff]
    %v845 = vld [vmem:[%s1 + $0x1698] sm:$0xff]
    %v846 = vld [vmem:[%s1 + $0x16a0] sm:$0xff]
    %v847 = vld [vmem:[%s1 + $0x16a8] sm:$0xff]
    %v848 = vld [vmem:[%s1 + $0x16b0] sm:$0xff]
    %v849 = vld [vmem:[%s1 + $0x16b8] sm:$0xff]
    %v850 = vld [vmem:[%s1 + $0x16c0] sm:$0xff]
    %v851 = vld [vmem:[%s1 + $0x16c8] sm:$0xff]
    %v852 = vld [vmem:[%s1 + $0x16d0] sm:$0xff]
    %v853 = vld [vmem:[%s1 + $0x16d8] sm:$0xff]
    %v854 = vld [vmem:[%s1 + $0x16e0] sm:$0xff]
    %v855 = vld [vmem:[%s1 + $0x16e8] sm:$0xff]
    %v856 = vld [vmem:[%s1 + $0x16f0] sm:$0xff]
    %v857 = vld [vmem:[%s1 + $0x16f8] sm:$0xff]
    %v858 = vld [vmem:[%s1 + $0x1700] sm:$0xff]
    %v859 = vld [vmem:[%s1 + $0x1708] sm:$0xff]
    %v860 = vld [vmem:[%s1 + $0x1710] sm:$0xff]
    %v861 = vld [vmem:[%s1 + $0x1718] sm:$0xff]
    %v862 = vld [vmem:[%s1 + $0x1720] sm:$0xff]
    %v863 = vld [vmem:[%s1 + $0x1728] sm:$0xff]
    %v864 = vld [vmem:[%s1 + $0x1730] sm:$0xff]
    %v865 = vld [vmem:[%s1 + $0x1738] sm:$0xff]
    %v866 = vld [vmem:[%s1 + $0x1740] sm:$0xff]
    %v867 = vld [vmem:[%s1 + $0x1748] sm:$0xff]
    %v868 = vld [vmem:[%s1 + $0x1750] sm:$0xff]
    %v869 = vld [vmem:[%s1 + $0x1758] sm:$0xff]
    %v870 = vld [vmem:[%s1 + $0x1760] sm:$0xff]
    %v871 = vld [vmem:[%s1 + $0x1768] sm:$0xff]
    %v872 = vld [vmem:[%s1 + $0x1770] sm:$0xff]
    %v873 = vld [vmem:[%s1 + $0x1778] sm:$0xff]
    %v874 = vld [vmem:[%s1 + $0x1780] sm:$0xff]
    %v875 = vld [vmem:[%s1 + $0x1788] sm:$0xff]
    %v876 = vld [vmem:[%s1 + $0x1790] sm:$0xff]
    %v877 = vld [vmem:[%s1 + $0x1798] sm:$0xff]
    %v878 = vld [vmem:[%s1 + $0x17a0] sm:$0xff]
    %v879 = vld [vmem:[%s1 + $0x17a8] sm:$0xff]
    %v880 = vld [vmem:[%s1 + $0x17b0] sm:$0xff]
    %v881 = vld [vmem:[%s1 + $0x17b8] sm:$0xff]
    %v882 = vld [vmem:[%s1 + $0x17c0] sm:$0xff]
    %v883 = vld [vmem:[%s1 + $0x17c8] sm:$0xff]
    %v884 = vld [vmem:[%s1 + $0x17d0] sm:$0xff]
    %v885 = vld [vmem:[%s1 + $0x17d8] sm:$0xff]
    %v886 = vld [vmem:[%s1 + $0x17e0] sm:$0xff]
    %v887 = vld [vmem:[%s1 + $0x17e8] sm:$0xff]
    %v888 = vld [vmem:[%s1 + $0x17f0] sm:$0xff]
    %v889 = vld [vmem:[%s1 + $0x17f8] sm:$0xff]
    %v890 = vld [vmem:[%s1 + $0x1800] sm:$0xff]
    %v891 = vld [vmem:[%s1 + $0x1808] sm:$0xff]
    %v892 = vld [vmem:[%s1 + $0x1810] sm:$0xff]
    %v893 = vld [vmem:[%s1 + $0x1818] sm:$0xff]
    %v894 = vld [vmem:[%s1 + $0x1820] sm:$0xff]
    %v895 = vld [vmem:[%s1 + $0x1828] sm:$0xff]
    %v896 = vld [vmem:[%s1 + $0x1830] sm:$0xff]
    %v897 = vld [vmem:[%s1 + $0x1838] sm:$0xff]
    %v898 = vld [vmem:[%s1 + $0x1840] sm:$0xff]
    %v899 = vld [vmem:[%s1 + $0x1848] sm:$0xff]
    %v900 = vld [vmem:[%s1 + $0x1850] sm:$0xff]
    %v901 = vld [vmem:[%s1 + $0x1858] sm:$0xff]
    %v902 = vld [vmem:[%s1 + $0x1860] sm:$0xff]
    %v903 = vld [vmem:[%s1 + $0x1868] sm:$0xff]
    %v904 = vld [vmem:[%s1 + $0x1870] sm:$0xff]
    %v905 = vld [vmem:[%s1 + $0x1878] sm:$0xff]
    %v1690 = vunpack.c.l.b16 %v122
    %v1691 = vunpack.c.h.b16 %v122
    %v1692 = vunpack.c.l.b16 %v123
    %v1693 = vunpack.c.h.b16 %v123
    %v1694 = vunpack.c.l.b16 %v124
    %v1695 = vunpack.c.h.b16 %v124
    %v1696 = vunpack.c.l.b16 %v125
    %v1697 = vunpack.c.h.b16 %v125
    %v1698 = vunpack.c.l.b16 %v126
    %v1699 = vunpack.c.h.b16 %v126
    %v1700 = vunpack.c.l.b16 %v127
    %v1701 = vunpack.c.h.b16 %v127
    %v1702 = vunpack.c.l.b16 %v128
    %v1703 = vunpack.c.h.b16 %v128
    %v1704 = vunpack.c.l.b16 %v129
    %v1705 = vunpack.c.h.b16 %v129
    %v1706 = vunpack.c.l.b16 %v130
    %v1707 = vunpack.c.h.b16 %v130
    %v1708 = vunpack.c.l.b16 %v131
    %v1709 = vunpack.c.h.b16 %v131
    %v1710 = vunpack.c.l.b16 %v132
    %v1711 = vunpack.c.h.b16 %v132
    %v1712 = vunpack.c.l.b16 %v133
    %v1713 = vunpack.c.h.b16 %v133
    %v1714 = vunpack.c.l.b16 %v134
    %v1715 = vunpack.c.h.b16 %v134
    %v1716 = vunpack.c.l.b16 %v135
    %v1717 = vunpack.c.h.b16 %v135
    %v1718 = vunpack.c.l.b16 %v136
    %v1719 = vunpack.c.h.b16 %v136
    %v1720 = vunpack.c.l.b16 %v137
    %v1721 = vunpack.c.h.b16 %v137
    %v1722 = vunpack.c.l.b16 %v138
    %v1723 = vunpack.c.h.b16 %v138
    %v1724 = vunpack.c.l.b16 %v139
    %v1725 = vunpack.c.h.b16 %v139
    %v1726 = vunpack.c.l.b16 %v140
    %v1727 = vunpack.c.h.b16 %v140
    %v1728 = vunpack.c.l.b16 %v141
    %v1729 = vunpack.c.h.b16 %v141
    %v1730 = vunpack.c.l.b16 %v142
    %v1731 = vunpack.c.h.b16 %v142
    %v1732 = vunpack.c.l.b16 %v143
    %v1733 = vunpack.c.h.b16 %v143
    %v1734 = vunpack.c.l.b16 %v144
    %v1735 = vunpack.c.h.b16 %v144
    %v1736 = vunpack.c.l.b16 %v145
    %v1737 = vunpack.c.h.b16 %v145
    %v1738 = vunpack.c.l.b16 %v146
    %v1739 = vunpack.c.h.b16 %v146
    %v1740 = vunpack.c.l.b16 %v147
    %v1741 = vunpack.c.h.b16 %v147
    %v1742 = vunpack.c.l.b16 %v148
    %v1743 = vunpack.c.h.b16 %v148
    %v1744 = vunpack.c.l.b16 %v149
    %v1745 = vunpack.c.h.b16 %v149
    %v1746 = vunpack.c.l.b16 %v150
    %v1747 = vunpack.c.h.b16 %v150
    %v1748 = vunpack.c.l.b16 %v151
    %v1749 = vunpack.c.h.b16 %v151
    %v1750 = vunpack.c.l.b16 %v152
    %v1751 = vunpack.c.h.b16 %v152
    %v1752 = vunpack.c.l.b16 %v153
    %v1753 = vunpack.c.h.b16 %v153
    %v1754 = vunpack.c.l.b16 %v154
    %v1755 = vunpack.c.h.b16 %v154
    %v1756 = vunpack.c.l.b16 %v155
    %v1757 = vunpack.c.h.b16 %v155
    %v1758 = vunpack.c.l.b16 %v156
    %v1759 = vunpack.c.h.b16 %v156
    %v1760 = vunpack.c.l.b16 %v157
    %v1761 = vunpack.c.h.b16 %v157
    %v1762 = vunpack.c.l.b16 %v158
    %v1763 = vunpack.c.h.b16 %v158
    %v1764 = vunpack.c.l.b16 %v159
    %v1765 = vunpack.c.h.b16 %v159
    %v1766 = vunpack.c.l.b16 %v160
    %v1767 = vunpack.c.h.b16 %v160
    %v1768 = vunpack.c.l.b16 %v161
    %v1769 = vunpack.c.h.b16 %v161
    %v1770 = vunpack.c.l.b16 %v162
    %v1771 = vunpack.c.h.b16 %v162
    %v1772 = vunpack.c.l.b16 %v163
    %v1773 = vunpack.c.h.b16 %v163
    %v1774 = vunpack.c.l.b16 %v164
    %v1775 = vunpack.c.h.b16 %v164
    %v1776 = vunpack.c.l.b16 %v165
    %v1777 = vunpack.c.h.b16 %v165
    %v1778 = vunpack.c.l.b16 %v166
    %v1779 = vunpack.c.h.b16 %v166
    %v1780 = vunpack.c.l.b16 %v167
    %v1781 = vunpack.c.h.b16 %v167
    %v1782 = vunpack.c.l.b16 %v168
    %v1783 = vunpack.c.h.b16 %v168
    %v1784 = vunpack.c.l.b16 %v169
    %v1785 = vunpack.c.h.b16 %v169
    %v1786 = vunpack.c.l.b16 %v170
    %v1787 = vunpack.c.h.b16 %v170
    %v1788 = vunpack.c.l.b16 %v171
    %v1789 = vunpack.c.h.b16 %v171
    %v1790 = vunpack.c.l.b16 %v172
    %v1791 = vunpack.c.h.b16 %v172
    %v1792 = vunpack.c.l.b16 %v173
    %v1793 = vunpack.c.h.b16 %v173
    %v1794 = vunpack.c.l.b16 %v174
    %v1795 = vunpack.c.h.b16 %v174
    %v1796 = vunpack.c.l.b16 %v175
    %v1797 = vunpack.c.h.b16 %v175
    %v1798 = vunpack.c.l.b16 %v176
    %v1799 = vunpack.c.h.b16 %v176
    %v1800 = vunpack.c.l.b16 %v177
    %v1801 = vunpack.c.h.b16 %v177
    %v1802 = vunpack.c.l.b16 %v178
    %v1803 = vunpack.c.h.b16 %v178
    %v1804 = vunpack.c.l.b16 %v179
    %v1805 = vunpack.c.h.b16 %v179
    %v1806 = vunpack.c.l.b16 %v180
    %v1807 = vunpack.c.h.b16 %v180
    %v1808 = vunpack.c.l.b16 %v181
    %v1809 = vunpack.c.h.b16 %v181
    %v1810 = vunpack.c.l.b16 %v182
    %v1811 = vunpack.c.h.b16 %v182
    %v1812 = vunpack.c.l.b16 %v183
    %v1813 = vunpack.c.h.b16 %v183
    %v1814 = vunpack.c.l.b16 %v184
    %v1815 = vunpack.c.h.b16 %v184
    %v1816 = vunpack.c.l.b16 %v185
    %v1817 = vunpack.c.h.b16 %v185
    %v1818 = vunpack.c.l.b16 %v186
    %v1819 = vunpack.c.h.b16 %v186
    %v1820 = vunpack.c.l.b16 %v187
    %v1821 = vunpack.c.h.b16 %v187
    %v1822 = vunpack.c.l.b16 %v188
    %v1823 = vunpack.c.h.b16 %v188
    %v1824 = vunpack.c.l.b16 %v189
    %v1825 = vunpack.c.h.b16 %v189
    %v1826 = vunpack.c.l.b16 %v190
    %v1827 = vunpack.c.h.b16 %v190
    %v1828 = vunpack.c.l.b16 %v191
    %v1829 = vunpack.c.h.b16 %v191
    %v1830 = vunpack.c.l.b16 %v192
    %v1831 = vunpack.c.h.b16 %v192
    %v1832 = vunpack.c.l.b16 %v193
    %v1833 = vunpack.c.h.b16 %v193
    %v1834 = vunpack.c.l.b16 %v194
    %v1835 = vunpack.c.h.b16 %v194
    %v1836 = vunpack.c.l.b16 %v195
    %v1837 = vunpack.c.h.b16 %v195
    %v1838 = vunpack.c.l.b16 %v196
    %v1839 = vunpack.c.h.b16 %v196
    %v1840 = vunpack.c.l.b16 %v197
    %v1841 = vunpack.c.h.b16 %v197
    %v1842 = vunpack.c.l.b16 %v198
    %v1843 = vunpack.c.h.b16 %v198
    %v1844 = vunpack.c.l.b16 %v199
    %v1845 = vunpack.c.h.b16 %v199
    %v1846 = vunpack.c.l.b16 %v200
    %v1847 = vunpack.c.h.b16 %v200
    %v1848 = vunpack.c.l.b16 %v201
    %v1849 = vunpack.c.h.b16 %v201
    %v1850 = vunpack.c.l.b16 %v202
    %v1851 = vunpack.c.h.b16 %v202
    %v1852 = vunpack.c.l.b16 %v203
    %v1853 = vunpack.c.h.b16 %v203
    %v1854 = vunpack.c.l.b16 %v204
    %v1855 = vunpack.c.h.b16 %v204
    %v1856 = vunpack.c.l.b16 %v205
    %v1857 = vunpack.c.h.b16 %v205
    %v1858 = vunpack.c.l.b16 %v206
    %v1859 = vunpack.c.h.b16 %v206
    %v1860 = vunpack.c.l.b16 %v207
    %v1861 = vunpack.c.h.b16 %v207
    %v1862 = vunpack.c.l.b16 %v208
    %v1863 = vunpack.c.h.b16 %v208
    %v1864 = vunpack.c.l.b16 %v209
    %v1865 = vunpack.c.h.b16 %v209
    %v1866 = vunpack.c.l.b16 %v210
    %v1867 = vunpack.c.h.b16 %v210
    %v1868 = vunpack.c.l.b16 %v211
    %v1869 = vunpack.c.h.b16 %v211
    %v1870 = vunpack.c.l.b16 %v212
    %v1871 = vunpack.c.h.b16 %v212
    %v1872 = vunpack.c.l.b16 %v213
    %v1873 = vunpack.c.h.b16 %v213
    %v1874 = vunpack.c.l.b16 %v214
    %v1875 = vunpack.c.h.b16 %v214
    %v1876 = vunpack.c.l.b16 %v215
    %v1877 = vunpack.c.h.b16 %v215
    %v1878 = vunpack.c.l.b16 %v216
    %v1879 = vunpack.c.h.b16 %v216
    %v1880 = vunpack.c.l.b16 %v217
    %v1881 = vunpack.c.h.b16 %v217
    %v1882 = vunpack.c.l.b16 %v218
    %v1883 = vunpack.c.h.b16 %v218
    %v1884 = vunpack.c.l.b16 %v219
    %v1885 = vunpack.c.h.b16 %v219
    %v1886 = vunpack.c.l.b16 %v220
    %v1887 = vunpack.c.h.b16 %v220
    %v1888 = vunpack.c.l.b16 %v221
    %v1889 = vunpack.c.h.b16 %v221
    %v1890 = vunpack.c.l.b16 %v222
    %v1891 = vunpack.c.h.b16 %v222
    %v1892 = vunpack.c.l.b16 %v223
    %v1893 = vunpack.c.h.b16 %v223
    %v1894 = vunpack.c.l.b16 %v224
    %v1895 = vunpack.c.h.b16 %v224
    %v1896 = vunpack.c.l.b16 %v225
    %v1897 = vunpack.c.h.b16 %v225
    %v1898 = vunpack.c.l.b16 %v226
    %v1899 = vunpack.c.h.b16 %v226
    %v1900 = vunpack.c.l.b16 %v227
    %v1901 = vunpack.c.h.b16 %v227
    %v1902 = vunpack.c.l.b16 %v228
    %v1903 = vunpack.c.h.b16 %v228
    %v1904 = vunpack.c.l.b16 %v229
    %v1905 = vunpack.c.h.b16 %v229
    %v1906 = vunpack.c.l.b16 %v230
    %v1907 = vunpack.c.h.b16 %v230
    %v1908 = vunpack.c.l.b16 %v231
    %v1909 = vunpack.c.h.b16 %v231
    %v1910 = vunpack.c.l.b16 %v232
    %v1911 = vunpack.c.h.b16 %v232
    %v1912 = vunpack.c.l.b16 %v233
    %v1913 = vunpack.c.h.b16 %v233
    %v1914 = vunpack.c.l.b16 %v234
    %v1915 = vunpack.c.h.b16 %v234
    %v1916 = vunpack.c.l.b16 %v235
    %v1917 = vunpack.c.h.b16 %v235
    %v1918 = vunpack.c.l.b16 %v236
    %v1919 = vunpack.c.h.b16 %v236
    %v1920 = vunpack.c.l.b16 %v237
    %v1921 = vunpack.c.h.b16 %v237
    %v1922 = vunpack.c.l.b16 %v238
    %v1923 = vunpack.c.h.b16 %v238
    %v1924 = vunpack.c.l.b16 %v239
    %v1925 = vunpack.c.h.b16 %v239
    %v1926 = vunpack.c.l.b16 %v240
    %v1927 = vunpack.c.h.b16 %v240
    %v1928 = vunpack.c.l.b16 %v241
    %v1929 = vunpack.c.h.b16 %v241
    %v1930 = vunpack.c.l.b16 %v242
    %v1931 = vunpack.c.h.b16 %v242
    %v1932 = vunpack.c.l.b16 %v243
    %v1933 = vunpack.c.h.b16 %v243
    %v1934 = vunpack.c.l.b16 %v244
    %v1935 = vunpack.c.h.b16 %v244
    %v1936 = vunpack.c.l.b16 %v245
    %v1937 = vunpack.c.h.b16 %v245
    %v1938 = vunpack.c.l.b16 %v246
    %v1939 = vunpack.c.h.b16 %v246
    %v1940 = vunpack.c.l.b16 %v247
    %v1941 = vunpack.c.h.b16 %v247
    %v1942 = vunpack.c.l.b16 %v248
    %v1943 = vunpack.c.h.b16 %v248
    %v1944 = vunpack.c.l.b16 %v249
    %v1945 = vunpack.c.h.b16 %v249
    %v1946 = vunpack.c.l.b16 %v250
    %v1947 = vunpack.c.h.b16 %v250
    %v1948 = vunpack.c.l.b16 %v251
    %v1949 = vunpack.c.h.b16 %v251
    %v1950 = vunpack.c.l.b16 %v252
    %v1951 = vunpack.c.h.b16 %v252
    %v1952 = vunpack.c.l.b16 %v253
    %v1953 = vunpack.c.h.b16 %v253
    %v1954 = vunpack.c.l.b16 %v254
    %v1955 = vunpack.c.h.b16 %v254
    %v1956 = vunpack.c.l.b16 %v255
    %v1957 = vunpack.c.h.b16 %v255
    %v1958 = vunpack.c.l.b16 %v256
    %v1959 = vunpack.c.h.b16 %v256
    %v1960 = vunpack.c.l.b16 %v257
    %v1961 = vunpack.c.h.b16 %v257
    %v1962 = vunpack.c.l.b16 %v258
    %v1963 = vunpack.c.h.b16 %v258
    %v1964 = vunpack.c.l.b16 %v259
    %v1965 = vunpack.c.h.b16 %v259
    %v1966 = vunpack.c.l.b16 %v260
    %v1967 = vunpack.c.h.b16 %v260
    %v1968 = vunpack.c.l.b16 %v261
    %v1969 = vunpack.c.h.b16 %v261
    %v1970 = vunpack.c.l.b16 %v262
    %v1971 = vunpack.c.h.b16 %v262
    %v1972 = vunpack.c.l.b16 %v263
    %v1973 = vunpack.c.h.b16 %v263
    %v1974 = vunpack.c.l.b16 %v264
    %v1975 = vunpack.c.h.b16 %v264
    %v1976 = vunpack.c.l.b16 %v265
    %v1977 = vunpack.c.h.b16 %v265
    %v1978 = vunpack.c.l.b16 %v266
    %v1979 = vunpack.c.h.b16 %v266
    %v1980 = vunpack.c.l.b16 %v267
    %v1981 = vunpack.c.h.b16 %v267
    %v1982 = vunpack.c.l.b16 %v268
    %v1983 = vunpack.c.h.b16 %v268
    %v1984 = vunpack.c.l.b16 %v269
    %v1985 = vunpack.c.h.b16 %v269
    %v1986 = vunpack.c.l.b16 %v270
    %v1987 = vunpack.c.h.b16 %v270
    %v1988 = vunpack.c.l.b16 %v271
    %v1989 = vunpack.c.h.b16 %v271
    %v1990 = vunpack.c.l.b16 %v272
    %v1991 = vunpack.c.h.b16 %v272
    %v1992 = vunpack.c.l.b16 %v273
    %v1993 = vunpack.c.h.b16 %v273
    %v1994 = vunpack.c.l.b16 %v274
    %v1995 = vunpack.c.h.b16 %v274
    %v1996 = vunpack.c.l.b16 %v275
    %v1997 = vunpack.c.h.b16 %v275
    %v1998 = vunpack.c.l.b16 %v276
    %v1999 = vunpack.c.h.b16 %v276
    %v2000 = vunpack.c.l.b16 %v277
    %v2001 = vunpack.c.h.b16 %v277
    %v2002 = vunpack.c.l.b16 %v278
    %v2003 = vunpack.c.h.b16 %v278
    %v2004 = vunpack.c.l.b16 %v279
    %v2005 = vunpack.c.h.b16 %v279
    %v2006 = vunpack.c.l.b16 %v280
    %v2007 = vunpack.c.h.b16 %v280
    %v2008 = vunpack.c.l.b16 %v281
    %v2009 = vunpack.c.h.b16 %v281
    %v2010 = vunpack.c.l.b16 %v282
    %v2011 = vunpack.c.h.b16 %v282
    %v2012 = vunpack.c.l.b16 %v283
    %v2013 = vunpack.c.h.b16 %v283
    %v2014 = vunpack.c.l.b16 %v284
    %v2015 = vunpack.c.h.b16 %v284
    %v2016 = vunpack.c.l.b16 %v285
    %v2017 = vunpack.c.h.b16 %v285
    %v2018 = vunpack.c.l.b16 %v286
    %v2019 = vunpack.c.h.b16 %v286
    %v2020 = vunpack.c.l.b16 %v287
    %v2021 = vunpack.c.h.b16 %v287
    %v2022 = vunpack.c.l.b16 %v288
    %v2023 = vunpack.c.h.b16 %v288
    %v2024 = vunpack.c.l.b16 %v289
    %v2025 = vunpack.c.h.b16 %v289
    %v2026 = vunpack.c.l.b16 %v290
    %v2027 = vunpack.c.h.b16 %v290
    %v2028 = vunpack.c.l.b16 %v291
    %v2029 = vunpack.c.h.b16 %v291
    %v2030 = vunpack.c.l.b16 %v292
    %v2031 = vunpack.c.h.b16 %v292
    %v2032 = vunpack.c.l.b16 %v293
    %v2033 = vunpack.c.h.b16 %v293
    %v2034 = vunpack.c.l.b16 %v294
    %v2035 = vunpack.c.h.b16 %v294
    %v2036 = vunpack.c.l.b16 %v295
    %v2037 = vunpack.c.h.b16 %v295
    %v2038 = vunpack.c.l.b16 %v296
    %v2039 = vunpack.c.h.b16 %v296
    %v2040 = vunpack.c.l.b16 %v297
    %v2041 = vunpack.c.h.b16 %v297
    %v2042 = vunpack.c.l.b16 %v298
    %v2043 = vunpack.c.h.b16 %v298
    %v2044 = vunpack.c.l.b16 %v299
    %v2045 = vunpack.c.h.b16 %v299
    %v2046 = vunpack.c.l.b16 %v300
    %v2047 = vunpack.c.h.b16 %v300
    %v2048 = vunpack.c.l.b16 %v301
    %v2049 = vunpack.c.h.b16 %v301
    %v2050 = vunpack.c.l.b16 %v302
    %v2051 = vunpack.c.h.b16 %v302
    %v2052 = vunpack.c.l.b16 %v303
    %v2053 = vunpack.c.h.b16 %v303
    %v2054 = vunpack.c.l.b16 %v304
    %v2055 = vunpack.c.h.b16 %v304
    %v2056 = vunpack.c.l.b16 %v305
    %v2057 = vunpack.c.h.b16 %v305
    %v2058 = vunpack.c.l.b16 %v306
    %v2059 = vunpack.c.h.b16 %v306
    %v2060 = vunpack.c.l.b16 %v307
    %v2061 = vunpack.c.h.b16 %v307
    %v2062 = vunpack.c.l.b16 %v308
    %v2063 = vunpack.c.h.b16 %v308
    %v2064 = vunpack.c.l.b16 %v309
    %v2065 = vunpack.c.h.b16 %v309
    %v2066 = vunpack.c.l.b16 %v310
    %v2067 = vunpack.c.h.b16 %v310
    %v2068 = vunpack.c.l.b16 %v311
    %v2069 = vunpack.c.h.b16 %v311
    %v2070 = vunpack.c.l.b16 %v312
    %v2071 = vunpack.c.h.b16 %v312
    %v2072 = vunpack.c.l.b16 %v313
    %v2073 = vunpack.c.h.b16 %v313
    %v2074 = vunpack.c.l.b16 %v314
    %v2075 = vunpack.c.h.b16 %v314
    %v2076 = vunpack.c.l.b16 %v315
    %v2077 = vunpack.c.h.b16 %v315
    %v2078 = vunpack.c.l.b16 %v316
    %v2079 = vunpack.c.h.b16 %v316
    %v2080 = vunpack.c.l.b16 %v317
    %v2081 = vunpack.c.h.b16 %v317
    %v2082 = vunpack.c.l.b16 %v318
    %v2083 = vunpack.c.h.b16 %v318
    %v2084 = vunpack.c.l.b16 %v319
    %v2085 = vunpack.c.h.b16 %v319
    %v2086 = vunpack.c.l.b16 %v320
    %v2087 = vunpack.c.h.b16 %v320
    %v2088 = vunpack.c.l.b16 %v321
    %v2089 = vunpack.c.h.b16 %v321
    %v2090 = vunpack.c.l.b16 %v322
    %v2091 = vunpack.c.h.b16 %v322
    %v2092 = vunpack.c.l.b16 %v323
    %v2093 = vunpack.c.h.b16 %v323
    %v2094 = vunpack.c.l.b16 %v324
    %v2095 = vunpack.c.h.b16 %v324
    %v2096 = vunpack.c.l.b16 %v325
    %v2097 = vunpack.c.h.b16 %v325
    %v2098 = vunpack.c.l.b16 %v326
    %v2099 = vunpack.c.h.b16 %v326
    %v2100 = vunpack.c.l.b16 %v327
    %v2101 = vunpack.c.h.b16 %v327
    %v2102 = vunpack.c.l.b16 %v328
    %v2103 = vunpack.c.h.b16 %v328
    %v2104 = vunpack.c.l.b16 %v329
    %v2105 = vunpack.c.h.b16 %v329
    %v2106 = vunpack.c.l.b16 %v330
    %v2107 = vunpack.c.h.b16 %v330
    %v2108 = vunpack.c.l.b16 %v331
    %v2109 = vunpack.c.h.b16 %v331
    %v2110 = vunpack.c.l.b16 %v332
    %v2111 = vunpack.c.h.b16 %v332
    %v2112 = vunpack.c.l.b16 %v333
    %v2113 = vunpack.c.h.b16 %v333
    %v2114 = vunpack.c.l.b16 %v334
    %v2115 = vunpack.c.h.b16 %v334
    %v2116 = vunpack.c.l.b16 %v335
    %v2117 = vunpack.c.h.b16 %v335
    %v2118 = vunpack.c.l.b16 %v336
    %v2119 = vunpack.c.h.b16 %v336
    %v2120 = vunpack.c.l.b16 %v337
    %v2121 = vunpack.c.h.b16 %v337
    %v2122 = vunpack.c.l.b16 %v338
    %v2123 = vunpack.c.h.b16 %v338
    %v2124 = vunpack.c.l.b16 %v339
    %v2125 = vunpack.c.h.b16 %v339
    %v2126 = vunpack.c.l.b16 %v340
    %v2127 = vunpack.c.h.b16 %v340
    %v2128 = vunpack.c.l.b16 %v341
    %v2129 = vunpack.c.h.b16 %v341
    %v2130 = vunpack.c.l.b16 %v342
    %v2131 = vunpack.c.h.b16 %v342
    %v2132 = vunpack.c.l.b16 %v343
    %v2133 = vunpack.c.h.b16 %v343
    %v2134 = vunpack.c.l.b16 %v344
    %v2135 = vunpack.c.h.b16 %v344
    %v2136 = vunpack.c.l.b16 %v345
    %v2137 = vunpack.c.h.b16 %v345
    %v2138 = vunpack.c.l.b16 %v346
    %v2139 = vunpack.c.h.b16 %v346
    %v2140 = vunpack.c.l.b16 %v347
    %v2141 = vunpack.c.h.b16 %v347
    %v2142 = vunpack.c.l.b16 %v348
    %v2143 = vunpack.c.h.b16 %v348
    %v2144 = vunpack.c.l.b16 %v349
    %v2145 = vunpack.c.h.b16 %v349
    %v2146 = vunpack.c.l.b16 %v350
    %v2147 = vunpack.c.h.b16 %v350
    %v2148 = vunpack.c.l.b16 %v351
    %v2149 = vunpack.c.h.b16 %v351
    %v2150 = vunpack.c.l.b16 %v352
    %v2151 = vunpack.c.h.b16 %v352
    %v2152 = vunpack.c.l.b16 %v353
    %v2153 = vunpack.c.h.b16 %v353
    %v2154 = vunpack.c.l.b16 %v354
    %v2155 = vunpack.c.h.b16 %v354
    %v2156 = vunpack.c.l.b16 %v355
    %v2157 = vunpack.c.h.b16 %v355
    %v2158 = vunpack.c.l.b16 %v356
    %v2159 = vunpack.c.h.b16 %v356
    %v2160 = vunpack.c.l.b16 %v357
    %v2161 = vunpack.c.h.b16 %v357
    %v2162 = vunpack.c.l.b16 %v358
    %v2163 = vunpack.c.h.b16 %v358
    %v2164 = vunpack.c.l.b16 %v359
    %v2165 = vunpack.c.h.b16 %v359
    %v2166 = vunpack.c.l.b16 %v360
    %v2167 = vunpack.c.h.b16 %v360
    %v2168 = vunpack.c.l.b16 %v361
    %v2169 = vunpack.c.h.b16 %v361
    %v2170 = vunpack.c.l.b16 %v362
    %v2171 = vunpack.c.h.b16 %v362
    %v2172 = vunpack.c.l.b16 %v363
    %v2173 = vunpack.c.h.b16 %v363
    %v2174 = vunpack.c.l.b16 %v364
    %v2175 = vunpack.c.h.b16 %v364
    %v2176 = vunpack.c.l.b16 %v365
    %v2177 = vunpack.c.h.b16 %v365
    %v2178 = vunpack.c.l.b16 %v366
    %v2179 = vunpack.c.h.b16 %v366
    %v2180 = vunpack.c.l.b16 %v367
    %v2181 = vunpack.c.h.b16 %v367
    %v2182 = vunpack.c.l.b16 %v368
    %v2183 = vunpack.c.h.b16 %v368
    %v2184 = vunpack.c.l.b16 %v369
    %v2185 = vunpack.c.h.b16 %v369
    %v2186 = vunpack.c.l.b16 %v370
    %v2187 = vunpack.c.h.b16 %v370
    %v2188 = vunpack.c.l.b16 %v371
    %v2189 = vunpack.c.h.b16 %v371
    %v2190 = vunpack.c.l.b16 %v372
    %v2191 = vunpack.c.h.b16 %v372
    %v2192 = vunpack.c.l.b16 %v373
    %v2193 = vunpack.c.h.b16 %v373
    %v2194 = vunpack.c.l.b16 %v374
    %v2195 = vunpack.c.h.b16 %v374
    %v2196 = vunpack.c.l.b16 %v375
    %v2197 = vunpack.c.h.b16 %v375
    %v2198 = vunpack.c.l.b16 %v376
    %v2199 = vunpack.c.h.b16 %v376
    %v2200 = vunpack.c.l.b16 %v377
    %v2201 = vunpack.c.h.b16 %v377
    %v2202 = vunpack.c.l.b16 %v378
    %v2203 = vunpack.c.h.b16 %v378
    %v2204 = vunpack.c.l.b16 %v379
    %v2205 = vunpack.c.h.b16 %v379
    %v2206 = vunpack.c.l.b16 %v380
    %v2207 = vunpack.c.h.b16 %v380
    %v2208 = vunpack.c.l.b16 %v381
    %v2209 = vunpack.c.h.b16 %v381
    %v2210 = vunpack.c.l.b16 %v382
    %v2211 = vunpack.c.h.b16 %v382
    %v2212 = vunpack.c.l.b16 %v383
    %v2213 = vunpack.c.h.b16 %v383
    %v2214 = vunpack.c.l.b16 %v384
    %v2215 = vunpack.c.h.b16 %v384
    %v2216 = vunpack.c.l.b16 %v385
    %v2217 = vunpack.c.h.b16 %v385
    %v2218 = vunpack.c.l.b16 %v386
    %v2219 = vunpack.c.h.b16 %v386
    %v2220 = vunpack.c.l.b16 %v387
    %v2221 = vunpack.c.h.b16 %v387
    %v2222 = vunpack.c.l.b16 %v388
    %v2223 = vunpack.c.h.b16 %v388
    %v2224 = vunpack.c.l.b16 %v389
    %v2225 = vunpack.c.h.b16 %v389
    %v2226 = vunpack.c.l.b16 %v390
    %v2227 = vunpack.c.h.b16 %v390
    %v2228 = vunpack.c.l.b16 %v391
    %v2229 = vunpack.c.h.b16 %v391
    %v2230 = vunpack.c.l.b16 %v392
    %v2231 = vunpack.c.h.b16 %v392
    %v2232 = vunpack.c.l.b16 %v393
    %v2233 = vunpack.c.h.b16 %v393
    %v2234 = vunpack.c.l.b16 %v394
    %v2235 = vunpack.c.h.b16 %v394
    %v2236 = vunpack.c.l.b16 %v395
    %v2237 = vunpack.c.h.b16 %v395
    %v2238 = vunpack.c.l.b16 %v396
    %v2239 = vunpack.c.h.b16 %v396
    %v2240 = vunpack.c.l.b16 %v397
    %v2241 = vunpack.c.h.b16 %v397
    %v2242 = vunpack.c.l.b16 %v398
    %v2243 = vunpack.c.h.b16 %v398
    %v2244 = vunpack.c.l.b16 %v399
    %v2245 = vunpack.c.h.b16 %v399
    %v2246 = vunpack.c.l.b16 %v400
    %v2247 = vunpack.c.h.b16 %v400
    %v2248 = vunpack.c.l.b16 %v401
    %v2249 = vunpack.c.h.b16 %v401
    %v2250 = vunpack.c.l.b16 %v402
    %v2251 = vunpack.c.h.b16 %v402
    %v2252 = vunpack.c.l.b16 %v403
    %v2253 = vunpack.c.h.b16 %v403
    %v2254 = vunpack.c.l.b16 %v404
    %v2255 = vunpack.c.h.b16 %v404
    %v2256 = vunpack.c.l.b16 %v405
    %v2257 = vunpack.c.h.b16 %v405
    %v2258 = vunpack.c.l.b16 %v406
    %v2259 = vunpack.c.h.b16 %v406
    %v2260 = vunpack.c.l.b16 %v407
    %v2261 = vunpack.c.h.b16 %v407
    %v2262 = vunpack.c.l.b16 %v408
    %v2263 = vunpack.c.h.b16 %v408
    %v2264 = vunpack.c.l.b16 %v409
    %v2265 = vunpack.c.h.b16 %v409
    %v2266 = vunpack.c.l.b16 %v410
    %v2267 = vunpack.c.h.b16 %v410
    %v2268 = vunpack.c.l.b16 %v411
    %v2269 = vunpack.c.h.b16 %v411
    %v2270 = vunpack.c.l.b16 %v412
    %v2271 = vunpack.c.h.b16 %v412
    %v2272 = vunpack.c.l.b16 %v413
    %v2273 = vunpack.c.h.b16 %v413
    %v2274 = vunpack.c.l.b16 %v414
    %v2275 = vunpack.c.h.b16 %v414
    %v2276 = vunpack.c.l.b16 %v415
    %v2277 = vunpack.c.h.b16 %v415
    %v2278 = vunpack.c.l.b16 %v416
    %v2279 = vunpack.c.h.b16 %v416
    %v2280 = vunpack.c.l.b16 %v417
    %v2281 = vunpack.c.h.b16 %v417
    %v2282 = vunpack.c.l.b16 %v418
    %v2283 = vunpack.c.h.b16 %v418
    %v2284 = vunpack.c.l.b16 %v419
    %v2285 = vunpack.c.h.b16 %v419
    %v2286 = vunpack.c.l.b16 %v420
    %v2287 = vunpack.c.h.b16 %v420
    %v2288 = vunpack.c.l.b16 %v421
    %v2289 = vunpack.c.h.b16 %v421
    %v2290 = vunpack.c.l.b16 %v422
    %v2291 = vunpack.c.h.b16 %v422
    %v2292 = vunpack.c.l.b16 %v423
    %v2293 = vunpack.c.h.b16 %v423
    %v2294 = vunpack.c.l.b16 %v424
    %v2295 = vunpack.c.h.b16 %v424
    %v2296 = vunpack.c.l.b16 %v425
    %v2297 = vunpack.c.h.b16 %v425
    %v2298 = vunpack.c.l.b16 %v426
    %v2299 = vunpack.c.h.b16 %v426
    %v2300 = vunpack.c.l.b16 %v427
    %v2301 = vunpack.c.h.b16 %v427
    %v2302 = vunpack.c.l.b16 %v428
    %v2303 = vunpack.c.h.b16 %v428
    %v2304 = vunpack.c.l.b16 %v429
    %v2305 = vunpack.c.h.b16 %v429
    %v2306 = vunpack.c.l.b16 %v430
    %v2307 = vunpack.c.h.b16 %v430
    %v2308 = vunpack.c.l.b16 %v431
    %v2309 = vunpack.c.h.b16 %v431
    %v2310 = vunpack.c.l.b16 %v432
    %v2311 = vunpack.c.h.b16 %v432
    %v2312 = vunpack.c.l.b16 %v433
    %v2313 = vunpack.c.h.b16 %v433
    %v2314 = vunpack.c.l.b16 %v434
    %v2315 = vunpack.c.h.b16 %v434
    %v2316 = vunpack.c.l.b16 %v435
    %v2317 = vunpack.c.h.b16 %v435
    %v2318 = vunpack.c.l.b16 %v436
    %v2319 = vunpack.c.h.b16 %v436
    %v2320 = vunpack.c.l.b16 %v437
    %v2321 = vunpack.c.h.b16 %v437
    %v2322 = vunpack.c.l.b16 %v438
    %v2323 = vunpack.c.h.b16 %v438
    %v2324 = vunpack.c.l.b16 %v439
    %v2325 = vunpack.c.h.b16 %v439
    %v2326 = vunpack.c.l.b16 %v440
    %v2327 = vunpack.c.h.b16 %v440
    %v2328 = vunpack.c.l.b16 %v441
    %v2329 = vunpack.c.h.b16 %v441
    %v2330 = vunpack.c.l.b16 %v442
    %v2331 = vunpack.c.h.b16 %v442
    %v2332 = vunpack.c.l.b16 %v443
    %v2333 = vunpack.c.h.b16 %v443
    %v2334 = vunpack.c.l.b16 %v444
    %v2335 = vunpack.c.h.b16 %v444
    %v2336 = vunpack.c.l.b16 %v445
    %v2337 = vunpack.c.h.b16 %v445
    %v2338 = vunpack.c.l.b16 %v446
    %v2339 = vunpack.c.h.b16 %v446
    %v2340 = vunpack.c.l.b16 %v447
    %v2341 = vunpack.c.h.b16 %v447
    %v2342 = vunpack.c.l.b16 %v448
    %v2343 = vunpack.c.h.b16 %v448
    %v2344 = vunpack.c.l.b16 %v449
    %v2345 = vunpack.c.h.b16 %v449
    %v2346 = vunpack.c.l.b16 %v450
    %v2347 = vunpack.c.h.b16 %v450
    %v2348 = vunpack.c.l.b16 %v451
    %v2349 = vunpack.c.h.b16 %v451
    %v2350 = vunpack.c.l.b16 %v452
    %v2351 = vunpack.c.h.b16 %v452
    %v2352 = vunpack.c.l.b16 %v453
    %v2353 = vunpack.c.h.b16 %v453
    %v2354 = vunpack.c.l.b16 %v454
    %v2355 = vunpack.c.h.b16 %v454
    %v2356 = vunpack.c.l.b16 %v455
    %v2357 = vunpack.c.h.b16 %v455
    %v2358 = vunpack.c.l.b16 %v456
    %v2359 = vunpack.c.h.b16 %v456
    %v2360 = vunpack.c.l.b16 %v457
    %v2361 = vunpack.c.h.b16 %v457
    %v2362 = vunpack.c.l.b16 %v458
    %v2363 = vunpack.c.h.b16 %v458
    %v2364 = vunpack.c.l.b16 %v459
    %v2365 = vunpack.c.h.b16 %v459
    %v2366 = vunpack.c.l.b16 %v460
    %v2367 = vunpack.c.h.b16 %v460
    %v2368 = vunpack.c.l.b16 %v461
    %v2369 = vunpack.c.h.b16 %v461
    %v2370 = vunpack.c.l.b16 %v462
    %v2371 = vunpack.c.h.b16 %v462
    %v2372 = vunpack.c.l.b16 %v463
    %v2373 = vunpack.c.h.b16 %v463
    %v2374 = vunpack.c.l.b16 %v464
    %v2375 = vunpack.c.h.b16 %v464
    %v2376 = vunpack.c.l.b16 %v465
    %v2377 = vunpack.c.h.b16 %v465
    %v2378 = vunpack.c.l.b16 %v466
    %v2379 = vunpack.c.h.b16 %v466
    %v2380 = vunpack.c.l.b16 %v467
    %v2381 = vunpack.c.h.b16 %v467
    %v2382 = vunpack.c.l.b16 %v468
    %v2383 = vunpack.c.h.b16 %v468
    %v2384 = vunpack.c.l.b16 %v469
    %v2385 = vunpack.c.h.b16 %v469
    %v2386 = vunpack.c.l.b16 %v470
    %v2387 = vunpack.c.h.b16 %v470
    %v2388 = vunpack.c.l.b16 %v471
    %v2389 = vunpack.c.h.b16 %v471
    %v2390 = vunpack.c.l.b16 %v472
    %v2391 = vunpack.c.h.b16 %v472
    %v2392 = vunpack.c.l.b16 %v473
    %v2393 = vunpack.c.h.b16 %v473
    %v2394 = vunpack.c.l.b16 %v474
    %v2395 = vunpack.c.h.b16 %v474
    %v2396 = vunpack.c.l.b16 %v475
    %v2397 = vunpack.c.h.b16 %v475
    %v2398 = vunpack.c.l.b16 %v476
    %v2399 = vunpack.c.h.b16 %v476
    %v2400 = vunpack.c.l.b16 %v477
    %v2401 = vunpack.c.h.b16 %v477
    %v2402 = vunpack.c.l.b16 %v478
    %v2403 = vunpack.c.h.b16 %v478
    %v2404 = vunpack.c.l.b16 %v479
    %v2405 = vunpack.c.h.b16 %v479
    %v2406 = vunpack.c.l.b16 %v480
    %v2407 = vunpack.c.h.b16 %v480
    %v2408 = vunpack.c.l.b16 %v481
    %v2409 = vunpack.c.h.b16 %v481
    %v2410 = vunpack.c.l.b16 %v482
    %v2411 = vunpack.c.h.b16 %v482
    %v2412 = vunpack.c.l.b16 %v483
    %v2413 = vunpack.c.h.b16 %v483
    %v2414 = vunpack.c.l.b16 %v484
    %v2415 = vunpack.c.h.b16 %v484
    %v2416 = vunpack.c.l.b16 %v485
    %v2417 = vunpack.c.h.b16 %v485
    %v2418 = vunpack.c.l.b16 %v486
    %v2419 = vunpack.c.h.b16 %v486
    %v2420 = vunpack.c.l.b16 %v487
    %v2421 = vunpack.c.h.b16 %v487
    %v2422 = vunpack.c.l.b16 %v488
    %v2423 = vunpack.c.h.b16 %v488
    %v2424 = vunpack.c.l.b16 %v489
    %v2425 = vunpack.c.h.b16 %v489
    %v2426 = vunpack.c.l.b16 %v490
    %v2427 = vunpack.c.h.b16 %v490
    %v2428 = vunpack.c.l.b16 %v491
    %v2429 = vunpack.c.h.b16 %v491
    %v2430 = vunpack.c.l.b16 %v492
    %v2431 = vunpack.c.h.b16 %v492
    %v2432 = vunpack.c.l.b16 %v493
    %v2433 = vunpack.c.h.b16 %v493
    %v2434 = vunpack.c.l.b16 %v494
    %v2435 = vunpack.c.h.b16 %v494
    %v2436 = vunpack.c.l.b16 %v495
    %v2437 = vunpack.c.h.b16 %v495
    %v2438 = vunpack.c.l.b16 %v496
    %v2439 = vunpack.c.h.b16 %v496
    %v2440 = vunpack.c.l.b16 %v497
    %v2441 = vunpack.c.h.b16 %v497
    %v2442 = vunpack.c.l.b16 %v498
    %v2443 = vunpack.c.h.b16 %v498
    %v2444 = vunpack.c.l.b16 %v499
    %v2445 = vunpack.c.h.b16 %v499
    %v2446 = vunpack.c.l.b16 %v500
    %v2447 = vunpack.c.h.b16 %v500
    %v2448 = vunpack.c.l.b16 %v501
    %v2449 = vunpack.c.h.b16 %v501
    %v2450 = vunpack.c.l.b16 %v502
    %v2451 = vunpack.c.h.b16 %v502
    %v2452 = vunpack.c.l.b16 %v503
    %v2453 = vunpack.c.h.b16 %v503
    %v2454 = vunpack.c.l.b16 %v504
    %v2455 = vunpack.c.h.b16 %v504
    %v2456 = vunpack.c.l.b16 %v505
    %v2457 = vunpack.c.h.b16 %v505
    %v2458 = vunpack.c.l.b16 %v506
    %v2459 = vunpack.c.h.b16 %v506
    %v2460 = vunpack.c.l.b16 %v507
    %v2461 = vunpack.c.h.b16 %v507
    %v2462 = vunpack.c.l.b16 %v508
    %v2463 = vunpack.c.h.b16 %v508
    %v2464 = vunpack.c.l.b16 %v509
    %v2465 = vunpack.c.h.b16 %v509
    %v2466 = vunpack.c.l.b16 %v510
    %v2467 = vunpack.c.h.b16 %v510
    %v2468 = vunpack.c.l.b16 %v511
    %v2469 = vunpack.c.h.b16 %v511
    %v2470 = vunpack.c.l.b16 %v512
    %v2471 = vunpack.c.h.b16 %v512
    %v2472 = vunpack.c.l.b16 %v513
    %v2473 = vunpack.c.h.b16 %v513
    %v2474 = vunpack.c.l.b16 %v514
    %v2475 = vunpack.c.h.b16 %v514
    %v2476 = vunpack.c.l.b16 %v515
    %v2477 = vunpack.c.h.b16 %v515
    %v2478 = vunpack.c.l.b16 %v516
    %v2479 = vunpack.c.h.b16 %v516
    %v2480 = vunpack.c.l.b16 %v517
    %v2481 = vunpack.c.h.b16 %v517
    %v2482 = vunpack.c.l.b16 %v518
    %v2483 = vunpack.c.h.b16 %v518
    %v2484 = vunpack.c.l.b16 %v519
    %v2485 = vunpack.c.h.b16 %v519
    %v2486 = vunpack.c.l.b16 %v520
    %v2487 = vunpack.c.h.b16 %v520
    %v2488 = vunpack.c.l.b16 %v521
    %v2489 = vunpack.c.h.b16 %v521
    %v2490 = vunpack.c.l.b16 %v522
    %v2491 = vunpack.c.h.b16 %v522
    %v2492 = vunpack.c.l.b16 %v523
    %v2493 = vunpack.c.h.b16 %v523
    %v2494 = vunpack.c.l.b16 %v524
    %v2495 = vunpack.c.h.b16 %v524
    %v2496 = vunpack.c.l.b16 %v525
    %v2497 = vunpack.c.h.b16 %v525
    %v2498 = vunpack.c.l.b16 %v526
    %v2499 = vunpack.c.h.b16 %v526
    %v2500 = vunpack.c.l.b16 %v527
    %v2501 = vunpack.c.h.b16 %v527
    %v2502 = vunpack.c.l.b16 %v528
    %v2503 = vunpack.c.h.b16 %v528
    %v2504 = vunpack.c.l.b16 %v529
    %v2505 = vunpack.c.h.b16 %v529
    %v2506 = vunpack.c.l.b16 %v530
    %v2507 = vunpack.c.h.b16 %v530
    %v2508 = vunpack.c.l.b16 %v531
    %v2509 = vunpack.c.h.b16 %v531
    %v2510 = vunpack.c.l.b16 %v532
    %v2511 = vunpack.c.h.b16 %v532
    %v2512 = vunpack.c.l.b16 %v533
    %v2513 = vunpack.c.h.b16 %v533
    %v2514 = vunpack.c.l.b16 %v534
    %v2515 = vunpack.c.h.b16 %v534
    %v2516 = vunpack.c.l.b16 %v535
    %v2517 = vunpack.c.h.b16 %v535
    %v2518 = vunpack.c.l.b16 %v536
    %v2519 = vunpack.c.h.b16 %v536
    %v2520 = vunpack.c.l.b16 %v537
    %v2521 = vunpack.c.h.b16 %v537
    %v2522 = vunpack.c.l.b16 %v538
    %v2523 = vunpack.c.h.b16 %v538
    %v2524 = vunpack.c.l.b16 %v539
    %v2525 = vunpack.c.h.b16 %v539
    %v2526 = vunpack.c.l.b16 %v540
    %v2527 = vunpack.c.h.b16 %v540
    %v2528 = vunpack.c.l.b16 %v541
    %v2529 = vunpack.c.h.b16 %v541
    %v2530 = vunpack.c.l.b16 %v542
    %v2531 = vunpack.c.h.b16 %v542
    %v2532 = vunpack.c.l.b16 %v543
    %v2533 = vunpack.c.h.b16 %v543
    %v2534 = vunpack.c.l.b16 %v544
    %v2535 = vunpack.c.h.b16 %v544
    %v2536 = vunpack.c.l.b16 %v545
    %v2537 = vunpack.c.h.b16 %v545
    %v2538 = vunpack.c.l.b16 %v546
    %v2539 = vunpack.c.h.b16 %v546
    %v2540 = vunpack.c.l.b16 %v547
    %v2541 = vunpack.c.h.b16 %v547
    %v2542 = vunpack.c.l.b16 %v548
    %v2543 = vunpack.c.h.b16 %v548
    %v2544 = vunpack.c.l.b16 %v549
    %v2545 = vunpack.c.h.b16 %v549
    %v2546 = vunpack.c.l.b16 %v550
    %v2547 = vunpack.c.h.b16 %v550
    %v2548 = vunpack.c.l.b16 %v551
    %v2549 = vunpack.c.h.b16 %v551
    %v2550 = vunpack.c.l.b16 %v552
    %v2551 = vunpack.c.h.b16 %v552
    %v2552 = vunpack.c.l.b16 %v553
    %v2553 = vunpack.c.h.b16 %v553
    %v2554 = vunpack.c.l.b16 %v554
    %v2555 = vunpack.c.h.b16 %v554
    %v2556 = vunpack.c.l.b16 %v555
    %v2557 = vunpack.c.h.b16 %v555
    %v2558 = vunpack.c.l.b16 %v556
    %v2559 = vunpack.c.h.b16 %v556
    %v2560 = vunpack.c.l.b16 %v557
    %v2561 = vunpack.c.h.b16 %v557
    %v2562 = vunpack.c.l.b16 %v558
    %v2563 = vunpack.c.h.b16 %v558
    %v2564 = vunpack.c.l.b16 %v559
    %v2565 = vunpack.c.h.b16 %v559
    %v2566 = vunpack.c.l.b16 %v560
    %v2567 = vunpack.c.h.b16 %v560
    %v2568 = vunpack.c.l.b16 %v561
    %v2569 = vunpack.c.h.b16 %v561
    %v2570 = vunpack.c.l.b16 %v562
    %v2571 = vunpack.c.h.b16 %v562
    %v2572 = vunpack.c.l.b16 %v563
    %v2573 = vunpack.c.h.b16 %v563
    %v2574 = vunpack.c.l.b16 %v564
    %v2575 = vunpack.c.h.b16 %v564
    %v2576 = vunpack.c.l.b16 %v565
    %v2577 = vunpack.c.h.b16 %v565
    %v2578 = vunpack.c.l.b16 %v566
    %v2579 = vunpack.c.h.b16 %v566
    %v2580 = vunpack.c.l.b16 %v567
    %v2581 = vunpack.c.h.b16 %v567
    %v2582 = vunpack.c.l.b16 %v568
    %v2583 = vunpack.c.h.b16 %v568
    %v2584 = vunpack.c.l.b16 %v569
    %v2585 = vunpack.c.h.b16 %v569
    %v2586 = vunpack.c.l.b16 %v570
    %v2587 = vunpack.c.h.b16 %v570
    %v2588 = vunpack.c.l.b16 %v571
    %v2589 = vunpack.c.h.b16 %v571
    %v2590 = vunpack.c.l.b16 %v572
    %v2591 = vunpack.c.h.b16 %v572
    %v2592 = vunpack.c.l.b16 %v573
    %v2593 = vunpack.c.h.b16 %v573
    %v2594 = vunpack.c.l.b16 %v574
    %v2595 = vunpack.c.h.b16 %v574
    %v2596 = vunpack.c.l.b16 %v575
    %v2597 = vunpack.c.h.b16 %v575
    %v2598 = vunpack.c.l.b16 %v576
    %v2599 = vunpack.c.h.b16 %v576
    %v2600 = vunpack.c.l.b16 %v577
    %v2601 = vunpack.c.h.b16 %v577
    %v2602 = vunpack.c.l.b16 %v578
    %v2603 = vunpack.c.h.b16 %v578
    %v2604 = vunpack.c.l.b16 %v579
    %v2605 = vunpack.c.h.b16 %v579
    %v2606 = vunpack.c.l.b16 %v580
    %v2607 = vunpack.c.h.b16 %v580
    %v2608 = vunpack.c.l.b16 %v581
    %v2609 = vunpack.c.h.b16 %v581
    %v2610 = vunpack.c.l.b16 %v582
    %v2611 = vunpack.c.h.b16 %v582
    %v2612 = vunpack.c.l.b16 %v583
    %v2613 = vunpack.c.h.b16 %v583
    %v2614 = vunpack.c.l.b16 %v584
    %v2615 = vunpack.c.h.b16 %v584
    %v2616 = vunpack.c.l.b16 %v585
    %v2617 = vunpack.c.h.b16 %v585
    %v2618 = vunpack.c.l.b16 %v586
    %v2619 = vunpack.c.h.b16 %v586
    %v2620 = vunpack.c.l.b16 %v587
    %v2621 = vunpack.c.h.b16 %v587
    %v2622 = vunpack.c.l.b16 %v588
    %v2623 = vunpack.c.h.b16 %v588
    %v2624 = vunpack.c.l.b16 %v589
    %v2625 = vunpack.c.h.b16 %v589
    %v2626 = vunpack.c.l.b16 %v590
    %v2627 = vunpack.c.h.b16 %v590
    %v2628 = vunpack.c.l.b16 %v591
    %v2629 = vunpack.c.h.b16 %v591
    %v2630 = vunpack.c.l.b16 %v592
    %v2631 = vunpack.c.h.b16 %v592
    %v2632 = vunpack.c.l.b16 %v593
    %v2633 = vunpack.c.h.b16 %v593
    %v2634 = vunpack.c.l.b16 %v594
    %v2635 = vunpack.c.h.b16 %v594
    %v2636 = vunpack.c.l.b16 %v595
    %v2637 = vunpack.c.h.b16 %v595
    %v2638 = vunpack.c.l.b16 %v596
    %v2639 = vunpack.c.h.b16 %v596
    %v2640 = vunpack.c.l.b16 %v597
    %v2641 = vunpack.c.h.b16 %v597
    %v2642 = vunpack.c.l.b16 %v598
    %v2643 = vunpack.c.h.b16 %v598
    %v2644 = vunpack.c.l.b16 %v599
    %v2645 = vunpack.c.h.b16 %v599
    %v2646 = vunpack.c.l.b16 %v600
    %v2647 = vunpack.c.h.b16 %v600
    %v2648 = vunpack.c.l.b16 %v601
    %v2649 = vunpack.c.h.b16 %v601
    %v2650 = vunpack.c.l.b16 %v602
    %v2651 = vunpack.c.h.b16 %v602
    %v2652 = vunpack.c.l.b16 %v603
    %v2653 = vunpack.c.h.b16 %v603
    %v2654 = vunpack.c.l.b16 %v604
    %v2655 = vunpack.c.h.b16 %v604
    %v2656 = vunpack.c.l.b16 %v605
    %v2657 = vunpack.c.h.b16 %v605
    %v2658 = vunpack.c.l.b16 %v606
    %v2659 = vunpack.c.h.b16 %v606
    %v2660 = vunpack.c.l.b16 %v607
    %v2661 = vunpack.c.h.b16 %v607
    %v2662 = vunpack.c.l.b16 %v608
    %v2663 = vunpack.c.h.b16 %v608
    %v2664 = vunpack.c.l.b16 %v609
    %v2665 = vunpack.c.h.b16 %v609
    %v2666 = vunpack.c.l.b16 %v610
    %v2667 = vunpack.c.h.b16 %v610
    %v2668 = vunpack.c.l.b16 %v611
    %v2669 = vunpack.c.h.b16 %v611
    %v2670 = vunpack.c.l.b16 %v612
    %v2671 = vunpack.c.h.b16 %v612
    %v2672 = vunpack.c.l.b16 %v613
    %v2673 = vunpack.c.h.b16 %v613
    %v2674 = vunpack.c.l.b16 %v614
    %v2675 = vunpack.c.h.b16 %v614
    %v2676 = vunpack.c.l.b16 %v615
    %v2677 = vunpack.c.h.b16 %v615
    %v2678 = vunpack.c.l.b16 %v616
    %v2679 = vunpack.c.h.b16 %v616
    %v2680 = vunpack.c.l.b16 %v617
    %v2681 = vunpack.c.h.b16 %v617
    %v2682 = vunpack.c.l.b16 %v618
    %v2683 = vunpack.c.h.b16 %v618
    %v2684 = vunpack.c.l.b16 %v619
    %v2685 = vunpack.c.h.b16 %v619
    %v2686 = vunpack.c.l.b16 %v620
    %v2687 = vunpack.c.h.b16 %v620
    %v2688 = vunpack.c.l.b16 %v621
    %v2689 = vunpack.c.h.b16 %v621
    %v2690 = vunpack.c.l.b16 %v622
    %v2691 = vunpack.c.h.b16 %v622
    %v2692 = vunpack.c.l.b16 %v623
    %v2693 = vunpack.c.h.b16 %v623
    %v2694 = vunpack.c.l.b16 %v624
    %v2695 = vunpack.c.h.b16 %v624
    %v2696 = vunpack.c.l.b16 %v625
    %v2697 = vunpack.c.h.b16 %v625
    %v2698 = vunpack.c.l.b16 %v626
    %v2699 = vunpack.c.h.b16 %v626
    %v2700 = vunpack.c.l.b16 %v627
    %v2701 = vunpack.c.h.b16 %v627
    %v2702 = vunpack.c.l.b16 %v628
    %v2703 = vunpack.c.h.b16 %v628
    %v2704 = vunpack.c.l.b16 %v629
    %v2705 = vunpack.c.h.b16 %v629
    %v2706 = vunpack.c.l.b16 %v630
    %v2707 = vunpack.c.h.b16 %v630
    %v2708 = vunpack.c.l.b16 %v631
    %v2709 = vunpack.c.h.b16 %v631
    %v2710 = vunpack.c.l.b16 %v632
    %v2711 = vunpack.c.h.b16 %v632
    %v2712 = vunpack.c.l.b16 %v633
    %v2713 = vunpack.c.h.b16 %v633
    %v2714 = vunpack.c.l.b16 %v634
    %v2715 = vunpack.c.h.b16 %v634
    %v2716 = vunpack.c.l.b16 %v635
    %v2717 = vunpack.c.h.b16 %v635
    %v2718 = vunpack.c.l.b16 %v636
    %v2719 = vunpack.c.h.b16 %v636
    %v2720 = vunpack.c.l.b16 %v637
    %v2721 = vunpack.c.h.b16 %v637
    %v2722 = vunpack.c.l.b16 %v638
    %v2723 = vunpack.c.h.b16 %v638
    %v2724 = vunpack.c.l.b16 %v639
    %v2725 = vunpack.c.h.b16 %v639
    %v2726 = vunpack.c.l.b16 %v640
    %v2727 = vunpack.c.h.b16 %v640
    %v2728 = vunpack.c.l.b16 %v641
    %v2729 = vunpack.c.h.b16 %v641
    %v2730 = vunpack.c.l.b16 %v642
    %v2731 = vunpack.c.h.b16 %v642
    %v2732 = vunpack.c.l.b16 %v643
    %v2733 = vunpack.c.h.b16 %v643
    %v2734 = vunpack.c.l.b16 %v644
    %v2735 = vunpack.c.h.b16 %v644
    %v2736 = vunpack.c.l.b16 %v645
    %v2737 = vunpack.c.h.b16 %v645
    %v2738 = vunpack.c.l.b16 %v646
    %v2739 = vunpack.c.h.b16 %v646
    %v2740 = vunpack.c.l.b16 %v647
    %v2741 = vunpack.c.h.b16 %v647
    %v2742 = vunpack.c.l.b16 %v648
    %v2743 = vunpack.c.h.b16 %v648
    %v2744 = vunpack.c.l.b16 %v649
    %v2745 = vunpack.c.h.b16 %v649
    %v2746 = vunpack.c.l.b16 %v650
    %v2747 = vunpack.c.h.b16 %v650
    %v2748 = vunpack.c.l.b16 %v651
    %v2749 = vunpack.c.h.b16 %v651
    %v2750 = vunpack.c.l.b16 %v652
    %v2751 = vunpack.c.h.b16 %v652
    %v2752 = vunpack.c.l.b16 %v653
    %v2753 = vunpack.c.h.b16 %v653
    %v2754 = vunpack.c.l.b16 %v654
    %v2755 = vunpack.c.h.b16 %v654
    %v2756 = vunpack.c.l.b16 %v655
    %v2757 = vunpack.c.h.b16 %v655
    %v2758 = vunpack.c.l.b16 %v656
    %v2759 = vunpack.c.h.b16 %v656
    %v2760 = vunpack.c.l.b16 %v657
    %v2761 = vunpack.c.h.b16 %v657
    %v2762 = vunpack.c.l.b16 %v658
    %v2763 = vunpack.c.h.b16 %v658
    %v2764 = vunpack.c.l.b16 %v659
    %v2765 = vunpack.c.h.b16 %v659
    %v2766 = vunpack.c.l.b16 %v660
    %v2767 = vunpack.c.h.b16 %v660
    %v2768 = vunpack.c.l.b16 %v661
    %v2769 = vunpack.c.h.b16 %v661
    %v2770 = vunpack.c.l.b16 %v662
    %v2771 = vunpack.c.h.b16 %v662
    %v2772 = vunpack.c.l.b16 %v663
    %v2773 = vunpack.c.h.b16 %v663
    %v2774 = vunpack.c.l.b16 %v664
    %v2775 = vunpack.c.h.b16 %v664
    %v2776 = vunpack.c.l.b16 %v665
    %v2777 = vunpack.c.h.b16 %v665
    %v2778 = vunpack.c.l.b16 %v666
    %v2779 = vunpack.c.h.b16 %v666
    %v2780 = vunpack.c.l.b16 %v667
    %v2781 = vunpack.c.h.b16 %v667
    %v2782 = vunpack.c.l.b16 %v668
    %v2783 = vunpack.c.h.b16 %v668
    %v2784 = vunpack.c.l.b16 %v669
    %v2785 = vunpack.c.h.b16 %v669
    %v2786 = vunpack.c.l.b16 %v670
    %v2787 = vunpack.c.h.b16 %v670
    %v2788 = vunpack.c.l.b16 %v671
    %v2789 = vunpack.c.h.b16 %v671
    %v2790 = vunpack.c.l.b16 %v672
    %v2791 = vunpack.c.h.b16 %v672
    %v2792 = vunpack.c.l.b16 %v673
    %v2793 = vunpack.c.h.b16 %v673
    %v2794 = vunpack.c.l.b16 %v674
    %v2795 = vunpack.c.h.b16 %v674
    %v2796 = vunpack.c.l.b16 %v675
    %v2797 = vunpack.c.h.b16 %v675
    %v2798 = vunpack.c.l.b16 %v676
    %v2799 = vunpack.c.h.b16 %v676
    %v2800 = vunpack.c.l.b16 %v677
    %v2801 = vunpack.c.h.b16 %v677
    %v2802 = vunpack.c.l.b16 %v678
    %v2803 = vunpack.c.h.b16 %v678
    %v2804 = vunpack.c.l.b16 %v679
    %v2805 = vunpack.c.h.b16 %v679
    %v2806 = vunpack.c.l.b16 %v680
    %v2807 = vunpack.c.h.b16 %v680
    %v2808 = vunpack.c.l.b16 %v681
    %v2809 = vunpack.c.h.b16 %v681
    %v2810 = vunpack.c.l.b16 %v682
    %v2811 = vunpack.c.h.b16 %v682
    %v2812 = vunpack.c.l.b16 %v683
    %v2813 = vunpack.c.h.b16 %v683
    %v2814 = vunpack.c.l.b16 %v684
    %v2815 = vunpack.c.h.b16 %v684
    %v2816 = vunpack.c.l.b16 %v685
    %v2817 = vunpack.c.h.b16 %v685
    %v2818 = vunpack.c.l.b16 %v686
    %v2819 = vunpack.c.h.b16 %v686
    %v2820 = vunpack.c.l.b16 %v687
    %v2821 = vunpack.c.h.b16 %v687
    %v2822 = vunpack.c.l.b16 %v688
    %v2823 = vunpack.c.h.b16 %v688
    %v2824 = vunpack.c.l.b16 %v689
    %v2825 = vunpack.c.h.b16 %v689
    %v2826 = vunpack.c.l.b16 %v690
    %v2827 = vunpack.c.h.b16 %v690
    %v2828 = vunpack.c.l.b16 %v691
    %v2829 = vunpack.c.h.b16 %v691
    %v2830 = vunpack.c.l.b16 %v692
    %v2831 = vunpack.c.h.b16 %v692
    %v2832 = vunpack.c.l.b16 %v693
    %v2833 = vunpack.c.h.b16 %v693
    %v2834 = vunpack.c.l.b16 %v694
    %v2835 = vunpack.c.h.b16 %v694
    %v2836 = vunpack.c.l.b16 %v695
    %v2837 = vunpack.c.h.b16 %v695
    %v2838 = vunpack.c.l.b16 %v696
    %v2839 = vunpack.c.h.b16 %v696
    %v2840 = vunpack.c.l.b16 %v697
    %v2841 = vunpack.c.h.b16 %v697
    %v2842 = vunpack.c.l.b16 %v698
    %v2843 = vunpack.c.h.b16 %v698
    %v2844 = vunpack.c.l.b16 %v699
    %v2845 = vunpack.c.h.b16 %v699
    %v2846 = vunpack.c.l.b16 %v700
    %v2847 = vunpack.c.h.b16 %v700
    %v2848 = vunpack.c.l.b16 %v701
    %v2849 = vunpack.c.h.b16 %v701
    %v2850 = vunpack.c.l.b16 %v702
    %v2851 = vunpack.c.h.b16 %v702
    %v2852 = vunpack.c.l.b16 %v703
    %v2853 = vunpack.c.h.b16 %v703
    %v2854 = vunpack.c.l.b16 %v704
    %v2855 = vunpack.c.h.b16 %v704
    %v2856 = vunpack.c.l.b16 %v705
    %v2857 = vunpack.c.h.b16 %v705
    %v2858 = vunpack.c.l.b16 %v706
    %v2859 = vunpack.c.h.b16 %v706
    %v2860 = vunpack.c.l.b16 %v707
    %v2861 = vunpack.c.h.b16 %v707
    %v2862 = vunpack.c.l.b16 %v708
    %v2863 = vunpack.c.h.b16 %v708
    %v2864 = vunpack.c.l.b16 %v709
    %v2865 = vunpack.c.h.b16 %v709
    %v2866 = vunpack.c.l.b16 %v710
    %v2867 = vunpack.c.h.b16 %v710
    %v2868 = vunpack.c.l.b16 %v711
    %v2869 = vunpack.c.h.b16 %v711
    %v2870 = vunpack.c.l.b16 %v712
    %v2871 = vunpack.c.h.b16 %v712
    %v2872 = vunpack.c.l.b16 %v713
    %v2873 = vunpack.c.h.b16 %v713
    %v2874 = vunpack.c.l.b16 %v714
    %v2875 = vunpack.c.h.b16 %v714
    %v2876 = vunpack.c.l.b16 %v715
    %v2877 = vunpack.c.h.b16 %v715
    %v2878 = vunpack.c.l.b16 %v716
    %v2879 = vunpack.c.h.b16 %v716
    %v2880 = vunpack.c.l.b16 %v717
    %v2881 = vunpack.c.h.b16 %v717
    %v2882 = vunpack.c.l.b16 %v718
    %v2883 = vunpack.c.h.b16 %v718
    %v2884 = vunpack.c.l.b16 %v719
    %v2885 = vunpack.c.h.b16 %v719
    %v2886 = vunpack.c.l.b16 %v720
    %v2887 = vunpack.c.h.b16 %v720
    %v2888 = vunpack.c.l.b16 %v721
    %v2889 = vunpack.c.h.b16 %v721
    %v2890 = vunpack.c.l.b16 %v722
    %v2891 = vunpack.c.h.b16 %v722
    %v2892 = vunpack.c.l.b16 %v723
    %v2893 = vunpack.c.h.b16 %v723
    %v2894 = vunpack.c.l.b16 %v724
    %v2895 = vunpack.c.h.b16 %v724
    %v2896 = vunpack.c.l.b16 %v725
    %v2897 = vunpack.c.h.b16 %v725
    %v2898 = vunpack.c.l.b16 %v726
    %v2899 = vunpack.c.h.b16 %v726
    %v2900 = vunpack.c.l.b16 %v727
    %v2901 = vunpack.c.h.b16 %v727
    %v2902 = vunpack.c.l.b16 %v728
    %v2903 = vunpack.c.h.b16 %v728
    %v2904 = vunpack.c.l.b16 %v729
    %v2905 = vunpack.c.h.b16 %v729
    %v2906 = vunpack.c.l.b16 %v730
    %v2907 = vunpack.c.h.b16 %v730
    %v2908 = vunpack.c.l.b16 %v731
    %v2909 = vunpack.c.h.b16 %v731
    %v2910 = vunpack.c.l.b16 %v732
    %v2911 = vunpack.c.h.b16 %v732
    %v2912 = vunpack.c.l.b16 %v733
    %v2913 = vunpack.c.h.b16 %v733
    %v2914 = vunpack.c.l.b16 %v734
    %v2915 = vunpack.c.h.b16 %v734
    %v2916 = vunpack.c.l.b16 %v735
    %v2917 = vunpack.c.h.b16 %v735
    %v2918 = vunpack.c.l.b16 %v736
    %v2919 = vunpack.c.h.b16 %v736
    %v2920 = vunpack.c.l.b16 %v737
    %v2921 = vunpack.c.h.b16 %v737
    %v2922 = vunpack.c.l.b16 %v738
    %v2923 = vunpack.c.h.b16 %v738
    %v2924 = vunpack.c.l.b16 %v739
    %v2925 = vunpack.c.h.b16 %v739
    %v2926 = vunpack.c.l.b16 %v740
    %v2927 = vunpack.c.h.b16 %v740
    %v2928 = vunpack.c.l.b16 %v741
    %v2929 = vunpack.c.h.b16 %v741
    %v2930 = vunpack.c.l.b16 %v742
    %v2931 = vunpack.c.h.b16 %v742
    %v2932 = vunpack.c.l.b16 %v743
    %v2933 = vunpack.c.h.b16 %v743
    %v2934 = vunpack.c.l.b16 %v744
    %v2935 = vunpack.c.h.b16 %v744
    %v2936 = vunpack.c.l.b16 %v745
    %v2937 = vunpack.c.h.b16 %v745
    %v2938 = vunpack.c.l.b16 %v746
    %v2939 = vunpack.c.h.b16 %v746
    %v2940 = vunpack.c.l.b16 %v747
    %v2941 = vunpack.c.h.b16 %v747
    %v2942 = vunpack.c.l.b16 %v748
    %v2943 = vunpack.c.h.b16 %v748
    %v2944 = vunpack.c.l.b16 %v749
    %v2945 = vunpack.c.h.b16 %v749
    %v2946 = vunpack.c.l.b16 %v750
    %v2947 = vunpack.c.h.b16 %v750
    %v2948 = vunpack.c.l.b16 %v751
    %v2949 = vunpack.c.h.b16 %v751
    %v2950 = vunpack.c.l.b16 %v752
    %v2951 = vunpack.c.h.b16 %v752
    %v2952 = vunpack.c.l.b16 %v753
    %v2953 = vunpack.c.h.b16 %v753
    %v2954 = vunpack.c.l.b16 %v754
    %v2955 = vunpack.c.h.b16 %v754
    %v2956 = vunpack.c.l.b16 %v755
    %v2957 = vunpack.c.h.b16 %v755
    %v2958 = vunpack.c.l.b16 %v756
    %v2959 = vunpack.c.h.b16 %v756
    %v2960 = vunpack.c.l.b16 %v757
    %v2961 = vunpack.c.h.b16 %v757
    %v2962 = vunpack.c.l.b16 %v758
    %v2963 = vunpack.c.h.b16 %v758
    %v2964 = vunpack.c.l.b16 %v759
    %v2965 = vunpack.c.h.b16 %v759
    %v2966 = vunpack.c.l.b16 %v760
    %v2967 = vunpack.c.h.b16 %v760
    %v2968 = vunpack.c.l.b16 %v761
    %v2969 = vunpack.c.h.b16 %v761
    %v2970 = vunpack.c.l.b16 %v762
    %v2971 = vunpack.c.h.b16 %v762
    %v2972 = vunpack.c.l.b16 %v763
    %v2973 = vunpack.c.h.b16 %v763
    %v2974 = vunpack.c.l.b16 %v764
    %v2975 = vunpack.c.h.b16 %v764
    %v2976 = vunpack.c.l.b16 %v765
    %v2977 = vunpack.c.h.b16 %v765
    %v2978 = vunpack.c.l.b16 %v766
    %v2979 = vunpack.c.h.b16 %v766
    %v2980 = vunpack.c.l.b16 %v767
    %v2981 = vunpack.c.h.b16 %v767
    %v2982 = vunpack.c.l.b16 %v768
    %v2983 = vunpack.c.h.b16 %v768
    %v2984 = vunpack.c.l.b16 %v769
    %v2985 = vunpack.c.h.b16 %v769
    %v2986 = vunpack.c.l.b16 %v770
    %v2987 = vunpack.c.h.b16 %v770
    %v2988 = vunpack.c.l.b16 %v771
    %v2989 = vunpack.c.h.b16 %v771
    %v2990 = vunpack.c.l.b16 %v772
    %v2991 = vunpack.c.h.b16 %v772
    %v2992 = vunpack.c.l.b16 %v773
    %v2993 = vunpack.c.h.b16 %v773
    %v2994 = vunpack.c.l.b16 %v774
    %v2995 = vunpack.c.h.b16 %v774
    %v2996 = vunpack.c.l.b16 %v775
    %v2997 = vunpack.c.h.b16 %v775
    %v2998 = vunpack.c.l.b16 %v776
    %v2999 = vunpack.c.h.b16 %v776
    %v3000 = vunpack.c.l.b16 %v777
    %v3001 = vunpack.c.h.b16 %v777
    %v3002 = vunpack.c.l.b16 %v778
    %v3003 = vunpack.c.h.b16 %v778
    %v3004 = vunpack.c.l.b16 %v779
    %v3005 = vunpack.c.h.b16 %v779
    %v3006 = vunpack.c.l.b16 %v780
    %v3007 = vunpack.c.h.b16 %v780
    %v3008 = vunpack.c.l.b16 %v781
    %v3009 = vunpack.c.h.b16 %v781
    %v3010 = vunpack.c.l.b16 %v782
    %v3011 = vunpack.c.h.b16 %v782
    %v3012 = vunpack.c.l.b16 %v783
    %v3013 = vunpack.c.h.b16 %v783
    %v3014 = vunpack.c.l.b16 %v784
    %v3015 = vunpack.c.h.b16 %v784
    %v3016 = vunpack.c.l.b16 %v785
    %v3017 = vunpack.c.h.b16 %v785
    %v3018 = vunpack.c.l.b16 %v786
    %v3019 = vunpack.c.h.b16 %v786
    %v3020 = vunpack.c.l.b16 %v787
    %v3021 = vunpack.c.h.b16 %v787
    %v3022 = vunpack.c.l.b16 %v788
    %v3023 = vunpack.c.h.b16 %v788
    %v3024 = vunpack.c.l.b16 %v789
    %v3025 = vunpack.c.h.b16 %v789
    %v3026 = vunpack.c.l.b16 %v790
    %v3027 = vunpack.c.h.b16 %v790
    %v3028 = vunpack.c.l.b16 %v791
    %v3029 = vunpack.c.h.b16 %v791
    %v3030 = vunpack.c.l.b16 %v792
    %v3031 = vunpack.c.h.b16 %v792
    %v3032 = vunpack.c.l.b16 %v793
    %v3033 = vunpack.c.h.b16 %v793
    %v3034 = vunpack.c.l.b16 %v794
    %v3035 = vunpack.c.h.b16 %v794
    %v3036 = vunpack.c.l.b16 %v795
    %v3037 = vunpack.c.h.b16 %v795
    %v3038 = vunpack.c.l.b16 %v796
    %v3039 = vunpack.c.h.b16 %v796
    %v3040 = vunpack.c.l.b16 %v797
    %v3041 = vunpack.c.h.b16 %v797
    %v3042 = vunpack.c.l.b16 %v798
    %v3043 = vunpack.c.h.b16 %v798
    %v3044 = vunpack.c.l.b16 %v799
    %v3045 = vunpack.c.h.b16 %v799
    %v3046 = vunpack.c.l.b16 %v800
    %v3047 = vunpack.c.h.b16 %v800
    %v3048 = vunpack.c.l.b16 %v801
    %v3049 = vunpack.c.h.b16 %v801
    %v3050 = vunpack.c.l.b16 %v802
    %v3051 = vunpack.c.h.b16 %v802
    %v3052 = vunpack.c.l.b16 %v803
    %v3053 = vunpack.c.h.b16 %v803
    %v3054 = vunpack.c.l.b16 %v804
    %v3055 = vunpack.c.h.b16 %v804
    %v3056 = vunpack.c.l.b16 %v805
    %v3057 = vunpack.c.h.b16 %v805
    %v3058 = vunpack.c.l.b16 %v806
    %v3059 = vunpack.c.h.b16 %v806
    %v3060 = vunpack.c.l.b16 %v807
    %v3061 = vunpack.c.h.b16 %v807
    %v3062 = vunpack.c.l.b16 %v808
    %v3063 = vunpack.c.h.b16 %v808
    %v3064 = vunpack.c.l.b16 %v809
    %v3065 = vunpack.c.h.b16 %v809
    %v3066 = vunpack.c.l.b16 %v810
    %v3067 = vunpack.c.h.b16 %v810
    %v3068 = vunpack.c.l.b16 %v811
    %v3069 = vunpack.c.h.b16 %v811
    %v3070 = vunpack.c.l.b16 %v812
    %v3071 = vunpack.c.h.b16 %v812
    %v3072 = vunpack.c.l.b16 %v813
    %v3073 = vunpack.c.h.b16 %v813
    %v3074 = vunpack.c.l.b16 %v814
    %v3075 = vunpack.c.h.b16 %v814
    %v3076 = vunpack.c.l.b16 %v815
    %v3077 = vunpack.c.h.b16 %v815
    %v3078 = vunpack.c.l.b16 %v816
    %v3079 = vunpack.c.h.b16 %v816
    %v3080 = vunpack.c.l.b16 %v817
    %v3081 = vunpack.c.h.b16 %v817
    %v3082 = vunpack.c.l.b16 %v818
    %v3083 = vunpack.c.h.b16 %v818
    %v3084 = vunpack.c.l.b16 %v819
    %v3085 = vunpack.c.h.b16 %v819
    %v3086 = vunpack.c.l.b16 %v820
    %v3087 = vunpack.c.h.b16 %v820
    %v3088 = vunpack.c.l.b16 %v821
    %v3089 = vunpack.c.h.b16 %v821
    %v3090 = vunpack.c.l.b16 %v822
    %v3091 = vunpack.c.h.b16 %v822
    %v3092 = vunpack.c.l.b16 %v823
    %v3093 = vunpack.c.h.b16 %v823
    %v3094 = vunpack.c.l.b16 %v824
    %v3095 = vunpack.c.h.b16 %v824
    %v3096 = vunpack.c.l.b16 %v825
    %v3097 = vunpack.c.h.b16 %v825
    %v3098 = vunpack.c.l.b16 %v826
    %v3099 = vunpack.c.h.b16 %v826
    %v3100 = vunpack.c.l.b16 %v827
    %v3101 = vunpack.c.h.b16 %v827
    %v3102 = vunpack.c.l.b16 %v828
    %v3103 = vunpack.c.h.b16 %v828
    %v3104 = vunpack.c.l.b16 %v829
    %v3105 = vunpack.c.h.b16 %v829
    %v3106 = vunpack.c.l.b16 %v830
    %v3107 = vunpack.c.h.b16 %v830
    %v3108 = vunpack.c.l.b16 %v831
    %v3109 = vunpack.c.h.b16 %v831
    %v3110 = vunpack.c.l.b16 %v832
    %v3111 = vunpack.c.h.b16 %v832
    %v3112 = vunpack.c.l.b16 %v833
    %v3113 = vunpack.c.h.b16 %v833
    %v3114 = vunpack.c.l.b16 %v834
    %v3115 = vunpack.c.h.b16 %v834
    %v3116 = vunpack.c.l.b16 %v835
    %v3117 = vunpack.c.h.b16 %v835
    %v3118 = vunpack.c.l.b16 %v836
    %v3119 = vunpack.c.h.b16 %v836
    %v3120 = vunpack.c.l.b16 %v837
    %v3121 = vunpack.c.h.b16 %v837
    %v3122 = vunpack.c.l.b16 %v838
    %v3123 = vunpack.c.h.b16 %v838
    %v3124 = vunpack.c.l.b16 %v839
    %v3125 = vunpack.c.h.b16 %v839
    %v3126 = vunpack.c.l.b16 %v840
    %v3127 = vunpack.c.h.b16 %v840
    %v3128 = vunpack.c.l.b16 %v841
    %v3129 = vunpack.c.h.b16 %v841
    %v3130 = vunpack.c.l.b16 %v842
    %v3131 = vunpack.c.h.b16 %v842
    %v3132 = vunpack.c.l.b16 %v843
    %v3133 = vunpack.c.h.b16 %v843
    %v3134 = vunpack.c.l.b16 %v844
    %v3135 = vunpack.c.h.b16 %v844
    %v3136 = vunpack.c.l.b16 %v845
    %v3137 = vunpack.c.h.b16 %v845
    %v3138 = vunpack.c.l.b16 %v846
    %v3139 = vunpack.c.h.b16 %v846
    %v3140 = vunpack.c.l.b16 %v847
    %v3141 = vunpack.c.h.b16 %v847
    %v3142 = vunpack.c.l.b16 %v848
    %v3143 = vunpack.c.h.b16 %v848
    %v3144 = vunpack.c.l.b16 %v849
    %v3145 = vunpack.c.h.b16 %v849
    %v3146 = vunpack.c.l.b16 %v850
    %v3147 = vunpack.c.h.b16 %v850
    %v3148 = vunpack.c.l.b16 %v851
    %v3149 = vunpack.c.h.b16 %v851
    %v3150 = vunpack.c.l.b16 %v852
    %v3151 = vunpack.c.h.b16 %v852
    %v3152 = vunpack.c.l.b16 %v853
    %v3153 = vunpack.c.h.b16 %v853
    %v3154 = vunpack.c.l.b16 %v854
    %v3155 = vunpack.c.h.b16 %v854
    %v3156 = vunpack.c.l.b16 %v855
    %v3157 = vunpack.c.h.b16 %v855
    %v3158 = vunpack.c.l.b16 %v856
    %v3159 = vunpack.c.h.b16 %v856
    %v3160 = vunpack.c.l.b16 %v857
    %v3161 = vunpack.c.h.b16 %v857
    %v3162 = vunpack.c.l.b16 %v858
    %v3163 = vunpack.c.h.b16 %v858
    %v3164 = vunpack.c.l.b16 %v859
    %v3165 = vunpack.c.h.b16 %v859
    %v3166 = vunpack.c.l.b16 %v860
    %v3167 = vunpack.c.h.b16 %v860
    %v3168 = vunpack.c.l.b16 %v861
    %v3169 = vunpack.c.h.b16 %v861
    %v3170 = vunpack.c.l.b16 %v862
    %v3171 = vunpack.c.h.b16 %v862
    %v3172 = vunpack.c.l.b16 %v863
    %v3173 = vunpack.c.h.b16 %v863
    %v3174 = vunpack.c.l.b16 %v864
    %v3175 = vunpack.c.h.b16 %v864
    %v3176 = vunpack.c.l.b16 %v865
    %v3177 = vunpack.c.h.b16 %v865
    %v3178 = vunpack.c.l.b16 %v866
    %v3179 = vunpack.c.h.b16 %v866
    %v3180 = vunpack.c.l.b16 %v867
    %v3181 = vunpack.c.h.b16 %v867
    %v3182 = vunpack.c.l.b16 %v868
    %v3183 = vunpack.c.h.b16 %v868
    %v3184 = vunpack.c.l.b16 %v869
    %v3185 = vunpack.c.h.b16 %v869
    %v3186 = vunpack.c.l.b16 %v870
    %v3187 = vunpack.c.h.b16 %v870
    %v3188 = vunpack.c.l.b16 %v871
    %v3189 = vunpack.c.h.b16 %v871
    %v3190 = vunpack.c.l.b16 %v872
    %v3191 = vunpack.c.h.b16 %v872
    %v3192 = vunpack.c.l.b16 %v873
    %v3193 = vunpack.c.h.b16 %v873
    %v3194 = vunpack.c.l.b16 %v874
    %v3195 = vunpack.c.h.b16 %v874
    %v3196 = vunpack.c.l.b16 %v875
    %v3197 = vunpack.c.h.b16 %v875
    %v3198 = vunpack.c.l.b16 %v876
    %v3199 = vunpack.c.h.b16 %v876
    %v3200 = vunpack.c.l.b16 %v877
    %v3201 = vunpack.c.h.b16 %v877
    %v3202 = vunpack.c.l.b16 %v878
    %v3203 = vunpack.c.h.b16 %v878
    %v3204 = vunpack.c.l.b16 %v879
    %v3205 = vunpack.c.h.b16 %v879
    %v3206 = vunpack.c.l.b16 %v880
    %v3207 = vunpack.c.h.b16 %v880
    %v3208 = vunpack.c.l.b16 %v881
    %v3209 = vunpack.c.h.b16 %v881
    %v3210 = vunpack.c.l.b16 %v882
    %v3211 = vunpack.c.h.b16 %v882
    %v3212 = vunpack.c.l.b16 %v883
    %v3213 = vunpack.c.h.b16 %v883
    %v3214 = vunpack.c.l.b16 %v884
    %v3215 = vunpack.c.h.b16 %v884
    %v3216 = vunpack.c.l.b16 %v885
    %v3217 = vunpack.c.h.b16 %v885
    %v3218 = vunpack.c.l.b16 %v886
    %v3219 = vunpack.c.h.b16 %v886
    %v3220 = vunpack.c.l.b16 %v887
    %v3221 = vunpack.c.h.b16 %v887
    %v3222 = vunpack.c.l.b16 %v888
    %v3223 = vunpack.c.h.b16 %v888
    %v3224 = vunpack.c.l.b16 %v889
    %v3225 = vunpack.c.h.b16 %v889
    %v3226 = vunpack.c.l.b16 %v890
    %v3227 = vunpack.c.h.b16 %v890
    %v3228 = vunpack.c.l.b16 %v891
    %v3229 = vunpack.c.h.b16 %v891
    %v3230 = vunpack.c.l.b16 %v892
    %v3231 = vunpack.c.h.b16 %v892
    %v3232 = vunpack.c.l.b16 %v893
    %v3233 = vunpack.c.h.b16 %v893
    %v3234 = vunpack.c.l.b16 %v894
    %v3235 = vunpack.c.h.b16 %v894
    %v3236 = vunpack.c.l.b16 %v895
    %v3237 = vunpack.c.h.b16 %v895
    %v3238 = vunpack.c.l.b16 %v896
    %v3239 = vunpack.c.h.b16 %v896
    %v3240 = vunpack.c.l.b16 %v897
    %v3241 = vunpack.c.h.b16 %v897
    %v3242 = vunpack.c.l.b16 %v898
    %v3243 = vunpack.c.h.b16 %v898
    %v3244 = vunpack.c.l.b16 %v899
    %v3245 = vunpack.c.h.b16 %v899
    %v3246 = vunpack.c.l.b16 %v900
    %v3247 = vunpack.c.h.b16 %v900
    %v3248 = vunpack.c.l.b16 %v901
    %v3249 = vunpack.c.h.b16 %v901
    %v3250 = vunpack.c.l.b16 %v902
    %v3251 = vunpack.c.h.b16 %v902
    %v3252 = vunpack.c.l.b16 %v903
    %v3253 = vunpack.c.h.b16 %v903
    %v3254 = vunpack.c.l.b16 %v904
    %v3255 = vunpack.c.h.b16 %v904
    %v3256 = vunpack.c.l.b16 %v905
    %v3257 = vunpack.c.h.b16 %v905
    %v3258 = vpack.c.b16 %v1694, %v1690
    %v3259 = vpack.c.b16 %v1695, %v1691
    %v3260 = vpack.c.b16 %v1696, %v1692
    %v3261 = vpack.c.b16 %v1697, %v1693
    %v3262 = vpack.c.b16 %v1702, %v1698
    %v3263 = vpack.c.b16 %v1703, %v1699
    %v3264 = vpack.c.b16 %v1704, %v1700
    %v3265 = vpack.c.b16 %v1705, %v1701
    %v3266 = vpack.c.b16 %v1710, %v1706
    %v3267 = vpack.c.b16 %v1711, %v1707
    %v3268 = vpack.c.b16 %v1712, %v1708
    %v3269 = vpack.c.b16 %v1713, %v1709
    %v3270 = vpack.c.b16 %v1718, %v1714
    %v3271 = vpack.c.b16 %v1719, %v1715
    %v3272 = vpack.c.b16 %v1720, %v1716
    %v3273 = vpack.c.b16 %v1721, %v1717
    %v3274 = vpack.c.b16 %v1726, %v1722
    %v3275 = vpack.c.b16 %v1727, %v1723
    %v3276 = vpack.c.b16 %v1728, %v1724
    %v3277 = vpack.c.b16 %v1729, %v1725
    %v3278 = vpack.c.b16 %v1734, %v1730
    %v3279 = vpack.c.b16 %v1735, %v1731
    %v3280 = vpack.c.b16 %v1736, %v1732
    %v3281 = vpack.c.b16 %v1737, %v1733
    %v3282 = vpack.c.b16 %v1742, %v1738
    %v3283 = vpack.c.b16 %v1743, %v1739
    %v3284 = vpack.c.b16 %v1744, %v1740
    %v3285 = vpack.c.b16 %v1745, %v1741
    %v3286 = vpack.c.b16 %v1750, %v1746
    %v3287 = vpack.c.b16 %v1751, %v1747
    %v3288 = vpack.c.b16 %v1752, %v1748
    %v3289 = vpack.c.b16 %v1753, %v1749
    %v3290 = vpack.c.b16 %v1758, %v1754
    %v3291 = vpack.c.b16 %v1759, %v1755
    %v3292 = vpack.c.b16 %v1760, %v1756
    %v3293 = vpack.c.b16 %v1761, %v1757
    %v3294 = vpack.c.b16 %v1766, %v1762
    %v3295 = vpack.c.b16 %v1767, %v1763
    %v3296 = vpack.c.b16 %v1768, %v1764
    %v3297 = vpack.c.b16 %v1769, %v1765
    %v3298 = vpack.c.b16 %v1774, %v1770
    %v3299 = vpack.c.b16 %v1775, %v1771
    %v3300 = vpack.c.b16 %v1776, %v1772
    %v3301 = vpack.c.b16 %v1777, %v1773
    %v3302 = vpack.c.b16 %v1782, %v1778
    %v3303 = vpack.c.b16 %v1783, %v1779
    %v3304 = vpack.c.b16 %v1784, %v1780
    %v3305 = vpack.c.b16 %v1785, %v1781
    %v3306 = vpack.c.b16 %v1790, %v1786
    %v3307 = vpack.c.b16 %v1791, %v1787
    %v3308 = vpack.c.b16 %v1792, %v1788
    %v3309 = vpack.c.b16 %v1793, %v1789
    %v3310 = vpack.c.b16 %v1798, %v1794
    %v3311 = vpack.c.b16 %v1799, %v1795
    %v3312 = vpack.c.b16 %v1800, %v1796
    %v3313 = vpack.c.b16 %v1801, %v1797
    %v3314 = vpack.c.b16 %v1806, %v1802
    %v3315 = vpack.c.b16 %v1807, %v1803
    %v3316 = vpack.c.b16 %v1808, %v1804
    %v3317 = vpack.c.b16 %v1809, %v1805
    %v3318 = vpack.c.b16 %v1814, %v1810
    %v3319 = vpack.c.b16 %v1815, %v1811
    %v3320 = vpack.c.b16 %v1816, %v1812
    %v3321 = vpack.c.b16 %v1817, %v1813
    %v3322 = vpack.c.b16 %v1822, %v1818
    %v3323 = vpack.c.b16 %v1823, %v1819
    %v3324 = vpack.c.b16 %v1824, %v1820
    %v3325 = vpack.c.b16 %v1825, %v1821
    %v3326 = vpack.c.b16 %v1830, %v1826
    %v3327 = vpack.c.b16 %v1831, %v1827
    %v3328 = vpack.c.b16 %v1832, %v1828
    %v3329 = vpack.c.b16 %v1833, %v1829
    %v3330 = vpack.c.b16 %v1838, %v1834
    %v3331 = vpack.c.b16 %v1839, %v1835
    %v3332 = vpack.c.b16 %v1840, %v1836
    %v3333 = vpack.c.b16 %v1841, %v1837
    %v3334 = vpack.c.b16 %v1846, %v1842
    %v3335 = vpack.c.b16 %v1847, %v1843
    %v3336 = vpack.c.b16 %v1848, %v1844
    %v3337 = vpack.c.b16 %v1849, %v1845
    %v3338 = vpack.c.b16 %v1854, %v1850
    %v3339 = vpack.c.b16 %v1855, %v1851
    %v3340 = vpack.c.b16 %v1856, %v1852
    %v3341 = vpack.c.b16 %v1857, %v1853
    %v3342 = vpack.c.b16 %v1862, %v1858
    %v3343 = vpack.c.b16 %v1863, %v1859
    %v3344 = vpack.c.b16 %v1864, %v1860
    %v3345 = vpack.c.b16 %v1865, %v1861
    %v3346 = vpack.c.b16 %v1870, %v1866
    %v3347 = vpack.c.b16 %v1871, %v1867
    %v3348 = vpack.c.b16 %v1872, %v1868
    %v3349 = vpack.c.b16 %v1873, %v1869
    %v3350 = vpack.c.b16 %v1878, %v1874
    %v3351 = vpack.c.b16 %v1879, %v1875
    %v3352 = vpack.c.b16 %v1880, %v1876
    %v3353 = vpack.c.b16 %v1881, %v1877
    %v3354 = vpack.c.b16 %v1886, %v1882
    %v3355 = vpack.c.b16 %v1887, %v1883
    %v3356 = vpack.c.b16 %v1888, %v1884
    %v3357 = vpack.c.b16 %v1889, %v1885
    %v3358 = vpack.c.b16 %v1894, %v1890
    %v3359 = vpack.c.b16 %v1895, %v1891
    %v3360 = vpack.c.b16 %v1896, %v1892
    %v3361 = vpack.c.b16 %v1897, %v1893
    %v3362 = vpack.c.b16 %v1902, %v1898
    %v3363 = vpack.c.b16 %v1903, %v1899
    %v3364 = vpack.c.b16 %v1904, %v1900
    %v3365 = vpack.c.b16 %v1905, %v1901
    %v3366 = vpack.c.b16 %v1910, %v1906
    %v3367 = vpack.c.b16 %v1911, %v1907
    %v3368 = vpack.c.b16 %v1912, %v1908
    %v3369 = vpack.c.b16 %v1913, %v1909
    %v3370 = vpack.c.b16 %v1918, %v1914
    %v3371 = vpack.c.b16 %v1919, %v1915
    %v3372 = vpack.c.b16 %v1920, %v1916
    %v3373 = vpack.c.b16 %v1921, %v1917
    %v3374 = vpack.c.b16 %v1926, %v1922
    %v3375 = vpack.c.b16 %v1927, %v1923
    %v3376 = vpack.c.b16 %v1928, %v1924
    %v3377 = vpack.c.b16 %v1929, %v1925
    %v3378 = vpack.c.b16 %v1934, %v1930
    %v3379 = vpack.c.b16 %v1935, %v1931
    %v3380 = vpack.c.b16 %v1936, %v1932
    %v3381 = vpack.c.b16 %v1937, %v1933
    %v3382 = vpack.c.b16 %v1942, %v1938
    %v3383 = vpack.c.b16 %v1943, %v1939
    %v3384 = vpack.c.b16 %v1944, %v1940
    %v3385 = vpack.c.b16 %v1945, %v1941
    %v3386 = vpack.c.b16 %v1950, %v1946
    %v3387 = vpack.c.b16 %v1951, %v1947
    %v3388 = vpack.c.b16 %v1952, %v1948
    %v3389 = vpack.c.b16 %v1953, %v1949
    %v3390 = vpack.c.b16 %v1958, %v1954
    %v3391 = vpack.c.b16 %v1959, %v1955
    %v3392 = vpack.c.b16 %v1960, %v1956
    %v3393 = vpack.c.b16 %v1961, %v1957
    %v3394 = vpack.c.b16 %v1966, %v1962
    %v3395 = vpack.c.b16 %v1967, %v1963
    %v3396 = vpack.c.b16 %v1968, %v1964
    %v3397 = vpack.c.b16 %v1969, %v1965
    %v3398 = vpack.c.b16 %v1974, %v1970
    %v3399 = vpack.c.b16 %v1975, %v1971
    %v3400 = vpack.c.b16 %v1976, %v1972
    %v3401 = vpack.c.b16 %v1977, %v1973
    %v3402 = vpack.c.b16 %v1982, %v1978
    %v3403 = vpack.c.b16 %v1983, %v1979
    %v3404 = vpack.c.b16 %v1984, %v1980
    %v3405 = vpack.c.b16 %v1985, %v1981
    %v3406 = vpack.c.b16 %v1990, %v1986
    %v3407 = vpack.c.b16 %v1991, %v1987
    %v3408 = vpack.c.b16 %v1992, %v1988
    %v3409 = vpack.c.b16 %v1993, %v1989
    %v3410 = vpack.c.b16 %v1998, %v1994
    %v3411 = vpack.c.b16 %v1999, %v1995
    %v3412 = vpack.c.b16 %v2000, %v1996
    %v3413 = vpack.c.b16 %v2001, %v1997
    %v3414 = vpack.c.b16 %v2006, %v2002
    %v3415 = vpack.c.b16 %v2007, %v2003
    %v3416 = vpack.c.b16 %v2008, %v2004
    %v3417 = vpack.c.b16 %v2009, %v2005
    %v3418 = vpack.c.b16 %v2014, %v2010
    %v3419 = vpack.c.b16 %v2015, %v2011
    %v3420 = vpack.c.b16 %v2016, %v2012
    %v3421 = vpack.c.b16 %v2017, %v2013
    %v3422 = vpack.c.b16 %v2022, %v2018
    %v3423 = vpack.c.b16 %v2023, %v2019
    %v3424 = vpack.c.b16 %v2024, %v2020
    %v3425 = vpack.c.b16 %v2025, %v2021
    %v3426 = vpack.c.b16 %v2030, %v2026
    %v3427 = vpack.c.b16 %v2031, %v2027
    %v3428 = vpack.c.b16 %v2032, %v2028
    %v3429 = vpack.c.b16 %v2033, %v2029
    %v3430 = vpack.c.b16 %v2038, %v2034
    %v3431 = vpack.c.b16 %v2039, %v2035
    %v3432 = vpack.c.b16 %v2040, %v2036
    %v3433 = vpack.c.b16 %v2041, %v2037
    %v3434 = vpack.c.b16 %v2046, %v2042
    %v3435 = vpack.c.b16 %v2047, %v2043
    %v3436 = vpack.c.b16 %v2048, %v2044
    %v3437 = vpack.c.b16 %v2049, %v2045
    %v3438 = vpack.c.b16 %v2054, %v2050
    %v3439 = vpack.c.b16 %v2055, %v2051
    %v3440 = vpack.c.b16 %v2056, %v2052
    %v3441 = vpack.c.b16 %v2057, %v2053
    %v3442 = vpack.c.b16 %v2062, %v2058
    %v3443 = vpack.c.b16 %v2063, %v2059
    %v3444 = vpack.c.b16 %v2064, %v2060
    %v3445 = vpack.c.b16 %v2065, %v2061
    %v3446 = vpack.c.b16 %v2070, %v2066
    %v3447 = vpack.c.b16 %v2071, %v2067
    %v3448 = vpack.c.b16 %v2072, %v2068
    %v3449 = vpack.c.b16 %v2073, %v2069
    %v3450 = vpack.c.b16 %v2078, %v2074
    %v3451 = vpack.c.b16 %v2079, %v2075
    %v3452 = vpack.c.b16 %v2080, %v2076
    %v3453 = vpack.c.b16 %v2081, %v2077
    %v3454 = vpack.c.b16 %v2086, %v2082
    %v3455 = vpack.c.b16 %v2087, %v2083
    %v3456 = vpack.c.b16 %v2088, %v2084
    %v3457 = vpack.c.b16 %v2089, %v2085
    %v3458 = vpack.c.b16 %v2094, %v2090
    %v3459 = vpack.c.b16 %v2095, %v2091
    %v3460 = vpack.c.b16 %v2096, %v2092
    %v3461 = vpack.c.b16 %v2097, %v2093
    %v3462 = vpack.c.b16 %v2102, %v2098
    %v3463 = vpack.c.b16 %v2103, %v2099
    %v3464 = vpack.c.b16 %v2104, %v2100
    %v3465 = vpack.c.b16 %v2105, %v2101
    %v3466 = vpack.c.b16 %v2110, %v2106
    %v3467 = vpack.c.b16 %v2111, %v2107
    %v3468 = vpack.c.b16 %v2112, %v2108
    %v3469 = vpack.c.b16 %v2113, %v2109
    %v3470 = vpack.c.b16 %v2118, %v2114
    %v3471 = vpack.c.b16 %v2119, %v2115
    %v3472 = vpack.c.b16 %v2120, %v2116
    %v3473 = vpack.c.b16 %v2121, %v2117
    %v3474 = vpack.c.b16 %v2126, %v2122
    %v3475 = vpack.c.b16 %v2127, %v2123
    %v3476 = vpack.c.b16 %v2128, %v2124
    %v3477 = vpack.c.b16 %v2129, %v2125
    %v3478 = vpack.c.b16 %v2134, %v2130
    %v3479 = vpack.c.b16 %v2135, %v2131
    %v3480 = vpack.c.b16 %v2136, %v2132
    %v3481 = vpack.c.b16 %v2137, %v2133
    %v3482 = vpack.c.b16 %v2142, %v2138
    %v3483 = vpack.c.b16 %v2143, %v2139
    %v3484 = vpack.c.b16 %v2144, %v2140
    %v3485 = vpack.c.b16 %v2145, %v2141
    %v3486 = vpack.c.b16 %v2150, %v2146
    %v3487 = vpack.c.b16 %v2151, %v2147
    %v3488 = vpack.c.b16 %v2152, %v2148
    %v3489 = vpack.c.b16 %v2153, %v2149
    %v3490 = vpack.c.b16 %v2158, %v2154
    %v3491 = vpack.c.b16 %v2159, %v2155
    %v3492 = vpack.c.b16 %v2160, %v2156
    %v3493 = vpack.c.b16 %v2161, %v2157
    %v3494 = vpack.c.b16 %v2166, %v2162
    %v3495 = vpack.c.b16 %v2167, %v2163
    %v3496 = vpack.c.b16 %v2168, %v2164
    %v3497 = vpack.c.b16 %v2169, %v2165
    %v3498 = vpack.c.b16 %v2174, %v2170
    %v3499 = vpack.c.b16 %v2175, %v2171
    %v3500 = vpack.c.b16 %v2176, %v2172
    %v3501 = vpack.c.b16 %v2177, %v2173
    %v3502 = vpack.c.b16 %v2182, %v2178
    %v3503 = vpack.c.b16 %v2183, %v2179
    %v3504 = vpack.c.b16 %v2184, %v2180
    %v3505 = vpack.c.b16 %v2185, %v2181
    %v3506 = vpack.c.b16 %v2190, %v2186
    %v3507 = vpack.c.b16 %v2191, %v2187
    %v3508 = vpack.c.b16 %v2192, %v2188
    %v3509 = vpack.c.b16 %v2193, %v2189
    %v3510 = vpack.c.b16 %v2198, %v2194
    %v3511 = vpack.c.b16 %v2199, %v2195
    %v3512 = vpack.c.b16 %v2200, %v2196
    %v3513 = vpack.c.b16 %v2201, %v2197
    %v3514 = vpack.c.b16 %v2206, %v2202
    %v3515 = vpack.c.b16 %v2207, %v2203
    %v3516 = vpack.c.b16 %v2208, %v2204
    %v3517 = vpack.c.b16 %v2209, %v2205
    %v3518 = vpack.c.b16 %v2214, %v2210
    %v3519 = vpack.c.b16 %v2215, %v2211
    %v3520 = vpack.c.b16 %v2216, %v2212
    %v3521 = vpack.c.b16 %v2217, %v2213
    %v3522 = vpack.c.b16 %v2222, %v2218
    %v3523 = vpack.c.b16 %v2223, %v2219
    %v3524 = vpack.c.b16 %v2224, %v2220
    %v3525 = vpack.c.b16 %v2225, %v2221
    %v3526 = vpack.c.b16 %v2230, %v2226
    %v3527 = vpack.c.b16 %v2231, %v2227
    %v3528 = vpack.c.b16 %v2232, %v2228
    %v3529 = vpack.c.b16 %v2233, %v2229
    %v3530 = vpack.c.b16 %v2238, %v2234
    %v3531 = vpack.c.b16 %v2239, %v2235
    %v3532 = vpack.c.b16 %v2240, %v2236
    %v3533 = vpack.c.b16 %v2241, %v2237
    %v3534 = vpack.c.b16 %v2246, %v2242
    %v3535 = vpack.c.b16 %v2247, %v2243
    %v3536 = vpack.c.b16 %v2248, %v2244
    %v3537 = vpack.c.b16 %v2249, %v2245
    %v3538 = vpack.c.b16 %v2254, %v2250
    %v3539 = vpack.c.b16 %v2255, %v2251
    %v3540 = vpack.c.b16 %v2256, %v2252
    %v3541 = vpack.c.b16 %v2257, %v2253
    %v3542 = vpack.c.b16 %v2262, %v2258
    %v3543 = vpack.c.b16 %v2263, %v2259
    %v3544 = vpack.c.b16 %v2264, %v2260
    %v3545 = vpack.c.b16 %v2265, %v2261
    %v3546 = vpack.c.b16 %v2270, %v2266
    %v3547 = vpack.c.b16 %v2271, %v2267
    %v3548 = vpack.c.b16 %v2272, %v2268
    %v3549 = vpack.c.b16 %v2273, %v2269
    %v3550 = vpack.c.b16 %v2278, %v2274
    %v3551 = vpack.c.b16 %v2279, %v2275
    %v3552 = vpack.c.b16 %v2280, %v2276
    %v3553 = vpack.c.b16 %v2281, %v2277
    %v3554 = vpack.c.b16 %v2286, %v2282
    %v3555 = vpack.c.b16 %v2287, %v2283
    %v3556 = vpack.c.b16 %v2288, %v2284
    %v3557 = vpack.c.b16 %v2289, %v2285
    %v3558 = vpack.c.b16 %v2294, %v2290
    %v3559 = vpack.c.b16 %v2295, %v2291
    %v3560 = vpack.c.b16 %v2296, %v2292
    %v3561 = vpack.c.b16 %v2297, %v2293
    %v3562 = vpack.c.b16 %v2302, %v2298
    %v3563 = vpack.c.b16 %v2303, %v2299
    %v3564 = vpack.c.b16 %v2304, %v2300
    %v3565 = vpack.c.b16 %v2305, %v2301
    %v3566 = vpack.c.b16 %v2310, %v2306
    %v3567 = vpack.c.b16 %v2311, %v2307
    %v3568 = vpack.c.b16 %v2312, %v2308
    %v3569 = vpack.c.b16 %v2313, %v2309
    %v3570 = vpack.c.b16 %v2318, %v2314
    %v3571 = vpack.c.b16 %v2319, %v2315
    %v3572 = vpack.c.b16 %v2320, %v2316
    %v3573 = vpack.c.b16 %v2321, %v2317
    %v3574 = vpack.c.b16 %v2326, %v2322
    %v3575 = vpack.c.b16 %v2327, %v2323
    %v3576 = vpack.c.b16 %v2328, %v2324
    %v3577 = vpack.c.b16 %v2329, %v2325
    %v3578 = vpack.c.b16 %v2334, %v2330
    %v3579 = vpack.c.b16 %v2335, %v2331
    %v3580 = vpack.c.b16 %v2336, %v2332
    %v3581 = vpack.c.b16 %v2337, %v2333
    %v3582 = vpack.c.b16 %v2342, %v2338
    %v3583 = vpack.c.b16 %v2343, %v2339
    %v3584 = vpack.c.b16 %v2344, %v2340
    %v3585 = vpack.c.b16 %v2345, %v2341
    %v3586 = vpack.c.b16 %v2350, %v2346
    %v3587 = vpack.c.b16 %v2351, %v2347
    %v3588 = vpack.c.b16 %v2352, %v2348
    %v3589 = vpack.c.b16 %v2353, %v2349
    %v3590 = vpack.c.b16 %v2358, %v2354
    %v3591 = vpack.c.b16 %v2359, %v2355
    %v3592 = vpack.c.b16 %v2360, %v2356
    %v3593 = vpack.c.b16 %v2361, %v2357
    %v3594 = vpack.c.b16 %v2366, %v2362
    %v3595 = vpack.c.b16 %v2367, %v2363
    %v3596 = vpack.c.b16 %v2368, %v2364
    %v3597 = vpack.c.b16 %v2369, %v2365
    %v3598 = vpack.c.b16 %v2374, %v2370
    %v3599 = vpack.c.b16 %v2375, %v2371
    %v3600 = vpack.c.b16 %v2376, %v2372
    %v3601 = vpack.c.b16 %v2377, %v2373
    %v3602 = vpack.c.b16 %v2382, %v2378
    %v3603 = vpack.c.b16 %v2383, %v2379
    %v3604 = vpack.c.b16 %v2384, %v2380
    %v3605 = vpack.c.b16 %v2385, %v2381
    %v3606 = vpack.c.b16 %v2390, %v2386
    %v3607 = vpack.c.b16 %v2391, %v2387
    %v3608 = vpack.c.b16 %v2392, %v2388
    %v3609 = vpack.c.b16 %v2393, %v2389
    %v3610 = vpack.c.b16 %v2398, %v2394
    %v3611 = vpack.c.b16 %v2399, %v2395
    %v3612 = vpack.c.b16 %v2400, %v2396
    %v3613 = vpack.c.b16 %v2401, %v2397
    %v3614 = vpack.c.b16 %v2406, %v2402
    %v3615 = vpack.c.b16 %v2407, %v2403
    %v3616 = vpack.c.b16 %v2408, %v2404
    %v3617 = vpack.c.b16 %v2409, %v2405
    %v3618 = vpack.c.b16 %v2414, %v2410
    %v3619 = vpack.c.b16 %v2415, %v2411
    %v3620 = vpack.c.b16 %v2416, %v2412
    %v3621 = vpack.c.b16 %v2417, %v2413
    %v3622 = vpack.c.b16 %v2422, %v2418
    %v3623 = vpack.c.b16 %v2423, %v2419
    %v3624 = vpack.c.b16 %v2424, %v2420
    %v3625 = vpack.c.b16 %v2425, %v2421
    %v3626 = vpack.c.b16 %v2430, %v2426
    %v3627 = vpack.c.b16 %v2431, %v2427
    %v3628 = vpack.c.b16 %v2432, %v2428
    %v3629 = vpack.c.b16 %v2433, %v2429
    %v3630 = vpack.c.b16 %v2438, %v2434
    %v3631 = vpack.c.b16 %v2439, %v2435
    %v3632 = vpack.c.b16 %v2440, %v2436
    %v3633 = vpack.c.b16 %v2441, %v2437
    %v3634 = vpack.c.b16 %v2446, %v2442
    %v3635 = vpack.c.b16 %v2447, %v2443
    %v3636 = vpack.c.b16 %v2448, %v2444
    %v3637 = vpack.c.b16 %v2449, %v2445
    %v3638 = vpack.c.b16 %v2454, %v2450
    %v3639 = vpack.c.b16 %v2455, %v2451
    %v3640 = vpack.c.b16 %v2456, %v2452
    %v3641 = vpack.c.b16 %v2457, %v2453
    %v3642 = vpack.c.b16 %v2462, %v2458
    %v3643 = vpack.c.b16 %v2463, %v2459
    %v3644 = vpack.c.b16 %v2464, %v2460
    %v3645 = vpack.c.b16 %v2465, %v2461
    %v3646 = vpack.c.b16 %v2470, %v2466
    %v3647 = vpack.c.b16 %v2471, %v2467
    %v3648 = vpack.c.b16 %v2472, %v2468
    %v3649 = vpack.c.b16 %v2473, %v2469
    %v3650 = vpack.c.b16 %v2478, %v2474
    %v3651 = vpack.c.b16 %v2479, %v2475
    %v3652 = vpack.c.b16 %v2480, %v2476
    %v3653 = vpack.c.b16 %v2481, %v2477
    %v3654 = vpack.c.b16 %v2486, %v2482
    %v3655 = vpack.c.b16 %v2487, %v2483
    %v3656 = vpack.c.b16 %v2488, %v2484
    %v3657 = vpack.c.b16 %v2489, %v2485
    %v3658 = vpack.c.b16 %v2494, %v2490
    %v3659 = vpack.c.b16 %v2495, %v2491
    %v3660 = vpack.c.b16 %v2496, %v2492
    %v3661 = vpack.c.b16 %v2497, %v2493
    %v3662 = vpack.c.b16 %v2502, %v2498
    %v3663 = vpack.c.b16 %v2503, %v2499
    %v3664 = vpack.c.b16 %v2504, %v2500
    %v3665 = vpack.c.b16 %v2505, %v2501
    %v3666 = vpack.c.b16 %v2510, %v2506
    %v3667 = vpack.c.b16 %v2511, %v2507
    %v3668 = vpack.c.b16 %v2512, %v2508
    %v3669 = vpack.c.b16 %v2513, %v2509
    %v3670 = vpack.c.b16 %v2518, %v2514
    %v3671 = vpack.c.b16 %v2519, %v2515
    %v3672 = vpack.c.b16 %v2520, %v2516
    %v3673 = vpack.c.b16 %v2521, %v2517
    %v3674 = vpack.c.b16 %v2526, %v2522
    %v3675 = vpack.c.b16 %v2527, %v2523
    %v3676 = vpack.c.b16 %v2528, %v2524
    %v3677 = vpack.c.b16 %v2529, %v2525
    %v3678 = vpack.c.b16 %v2534, %v2530
    %v3679 = vpack.c.b16 %v2535, %v2531
    %v3680 = vpack.c.b16 %v2536, %v2532
    %v3681 = vpack.c.b16 %v2537, %v2533
    %v3682 = vpack.c.b16 %v2542, %v2538
    %v3683 = vpack.c.b16 %v2543, %v2539
    %v3684 = vpack.c.b16 %v2544, %v2540
    %v3685 = vpack.c.b16 %v2545, %v2541
    %v3686 = vpack.c.b16 %v2550, %v2546
    %v3687 = vpack.c.b16 %v2551, %v2547
    %v3688 = vpack.c.b16 %v2552, %v2548
    %v3689 = vpack.c.b16 %v2553, %v2549
    %v3690 = vpack.c.b16 %v2558, %v2554
    %v3691 = vpack.c.b16 %v2559, %v2555
    %v3692 = vpack.c.b16 %v2560, %v2556
    %v3693 = vpack.c.b16 %v2561, %v2557
    %v3694 = vpack.c.b16 %v2566, %v2562
    %v3695 = vpack.c.b16 %v2567, %v2563
    %v3696 = vpack.c.b16 %v2568, %v2564
    %v3697 = vpack.c.b16 %v2569, %v2565
    %v3698 = vpack.c.b16 %v2574, %v2570
    %v3699 = vpack.c.b16 %v2575, %v2571
    %v3700 = vpack.c.b16 %v2576, %v2572
    %v3701 = vpack.c.b16 %v2577, %v2573
    %v3702 = vpack.c.b16 %v2582, %v2578
    %v3703 = vpack.c.b16 %v2583, %v2579
    %v3704 = vpack.c.b16 %v2584, %v2580
    %v3705 = vpack.c.b16 %v2585, %v2581
    %v3706 = vpack.c.b16 %v2590, %v2586
    %v3707 = vpack.c.b16 %v2591, %v2587
    %v3708 = vpack.c.b16 %v2592, %v2588
    %v3709 = vpack.c.b16 %v2593, %v2589
    %v3710 = vpack.c.b16 %v2598, %v2594
    %v3711 = vpack.c.b16 %v2599, %v2595
    %v3712 = vpack.c.b16 %v2600, %v2596
    %v3713 = vpack.c.b16 %v2601, %v2597
    %v3714 = vpack.c.b16 %v2606, %v2602
    %v3715 = vpack.c.b16 %v2607, %v2603
    %v3716 = vpack.c.b16 %v2608, %v2604
    %v3717 = vpack.c.b16 %v2609, %v2605
    %v3718 = vpack.c.b16 %v2614, %v2610
    %v3719 = vpack.c.b16 %v2615, %v2611
    %v3720 = vpack.c.b16 %v2616, %v2612
    %v3721 = vpack.c.b16 %v2617, %v2613
    %v3722 = vpack.c.b16 %v2622, %v2618
    %v3723 = vpack.c.b16 %v2623, %v2619
    %v3724 = vpack.c.b16 %v2624, %v2620
    %v3725 = vpack.c.b16 %v2625, %v2621
    %v3726 = vpack.c.b16 %v2630, %v2626
    %v3727 = vpack.c.b16 %v2631, %v2627
    %v3728 = vpack.c.b16 %v2632, %v2628
    %v3729 = vpack.c.b16 %v2633, %v2629
    %v3730 = vpack.c.b16 %v2638, %v2634
    %v3731 = vpack.c.b16 %v2639, %v2635
    %v3732 = vpack.c.b16 %v2640, %v2636
    %v3733 = vpack.c.b16 %v2641, %v2637
    %v3734 = vpack.c.b16 %v2646, %v2642
    %v3735 = vpack.c.b16 %v2647, %v2643
    %v3736 = vpack.c.b16 %v2648, %v2644
    %v3737 = vpack.c.b16 %v2649, %v2645
    %v3738 = vpack.c.b16 %v2654, %v2650
    %v3739 = vpack.c.b16 %v2655, %v2651
    %v3740 = vpack.c.b16 %v2656, %v2652
    %v3741 = vpack.c.b16 %v2657, %v2653
    %v3742 = vpack.c.b16 %v2662, %v2658
    %v3743 = vpack.c.b16 %v2663, %v2659
    %v3744 = vpack.c.b16 %v2664, %v2660
    %v3745 = vpack.c.b16 %v2665, %v2661
    %v3746 = vpack.c.b16 %v2670, %v2666
    %v3747 = vpack.c.b16 %v2671, %v2667
    %v3748 = vpack.c.b16 %v2672, %v2668
    %v3749 = vpack.c.b16 %v2673, %v2669
    %v3750 = vpack.c.b16 %v2678, %v2674
    %v3751 = vpack.c.b16 %v2679, %v2675
    %v3752 = vpack.c.b16 %v2680, %v2676
    %v3753 = vpack.c.b16 %v2681, %v2677
    %v3754 = vpack.c.b16 %v2686, %v2682
    %v3755 = vpack.c.b16 %v2687, %v2683
    %v3756 = vpack.c.b16 %v2688, %v2684
    %v3757 = vpack.c.b16 %v2689, %v2685
    %v3758 = vpack.c.b16 %v2694, %v2690
    %v3759 = vpack.c.b16 %v2695, %v2691
    %v3760 = vpack.c.b16 %v2696, %v2692
    %v3761 = vpack.c.b16 %v2697, %v2693
    %v3762 = vpack.c.b16 %v2702, %v2698
    %v3763 = vpack.c.b16 %v2703, %v2699
    %v3764 = vpack.c.b16 %v2704, %v2700
    %v3765 = vpack.c.b16 %v2705, %v2701
    %v3766 = vpack.c.b16 %v2710, %v2706
    %v3767 = vpack.c.b16 %v2711, %v2707
    %v3768 = vpack.c.b16 %v2712, %v2708
    %v3769 = vpack.c.b16 %v2713, %v2709
    %v3770 = vpack.c.b16 %v2718, %v2714
    %v3771 = vpack.c.b16 %v2719, %v2715
    %v3772 = vpack.c.b16 %v2720, %v2716
    %v3773 = vpack.c.b16 %v2721, %v2717
    %v3774 = vpack.c.b16 %v2726, %v2722
    %v3775 = vpack.c.b16 %v2727, %v2723
    %v3776 = vpack.c.b16 %v2728, %v2724
    %v3777 = vpack.c.b16 %v2729, %v2725
    %v3778 = vpack.c.b16 %v2734, %v2730
    %v3779 = vpack.c.b16 %v2735, %v2731
    %v3780 = vpack.c.b16 %v2736, %v2732
    %v3781 = vpack.c.b16 %v2737, %v2733
    %v3782 = vpack.c.b16 %v2742, %v2738
    %v3783 = vpack.c.b16 %v2743, %v2739
    %v3784 = vpack.c.b16 %v2744, %v2740
    %v3785 = vpack.c.b16 %v2745, %v2741
    %v3786 = vpack.c.b16 %v2750, %v2746
    %v3787 = vpack.c.b16 %v2751, %v2747
    %v3788 = vpack.c.b16 %v2752, %v2748
    %v3789 = vpack.c.b16 %v2753, %v2749
    %v3790 = vpack.c.b16 %v2758, %v2754
    %v3791 = vpack.c.b16 %v2759, %v2755
    %v3792 = vpack.c.b16 %v2760, %v2756
    %v3793 = vpack.c.b16 %v2761, %v2757
    %v3794 = vpack.c.b16 %v2766, %v2762
    %v3795 = vpack.c.b16 %v2767, %v2763
    %v3796 = vpack.c.b16 %v2768, %v2764
    %v3797 = vpack.c.b16 %v2769, %v2765
    %v3798 = vpack.c.b16 %v2774, %v2770
    %v3799 = vpack.c.b16 %v2775, %v2771
    %v3800 = vpack.c.b16 %v2776, %v2772
    %v3801 = vpack.c.b16 %v2777, %v2773
    %v3802 = vpack.c.b16 %v2782, %v2778
    %v3803 = vpack.c.b16 %v2783, %v2779
    %v3804 = vpack.c.b16 %v2784, %v2780
    %v3805 = vpack.c.b16 %v2785, %v2781
    %v3806 = vpack.c.b16 %v2790, %v2786
    %v3807 = vpack.c.b16 %v2791, %v2787
    %v3808 = vpack.c.b16 %v2792, %v2788
    %v3809 = vpack.c.b16 %v2793, %v2789
    %v3810 = vpack.c.b16 %v2798, %v2794
    %v3811 = vpack.c.b16 %v2799, %v2795
    %v3812 = vpack.c.b16 %v2800, %v2796
    %v3813 = vpack.c.b16 %v2801, %v2797
    %v3814 = vpack.c.b16 %v2806, %v2802
    %v3815 = vpack.c.b16 %v2807, %v2803
    %v3816 = vpack.c.b16 %v2808, %v2804
    %v3817 = vpack.c.b16 %v2809, %v2805
    %v3818 = vpack.c.b16 %v2814, %v2810
    %v3819 = vpack.c.b16 %v2815, %v2811
    %v3820 = vpack.c.b16 %v2816, %v2812
    %v3821 = vpack.c.b16 %v2817, %v2813
    %v3822 = vpack.c.b16 %v2822, %v2818
    %v3823 = vpack.c.b16 %v2823, %v2819
    %v3824 = vpack.c.b16 %v2824, %v2820
    %v3825 = vpack.c.b16 %v2825, %v2821
    %v3826 = vpack.c.b16 %v2830, %v2826
    %v3827 = vpack.c.b16 %v2831, %v2827
    %v3828 = vpack.c.b16 %v2832, %v2828
    %v3829 = vpack.c.b16 %v2833, %v2829
    %v3830 = vpack.c.b16 %v2838, %v2834
    %v3831 = vpack.c.b16 %v2839, %v2835
    %v3832 = vpack.c.b16 %v2840, %v2836
    %v3833 = vpack.c.b16 %v2841, %v2837
    %v3834 = vpack.c.b16 %v2846, %v2842
    %v3835 = vpack.c.b16 %v2847, %v2843
    %v3836 = vpack.c.b16 %v2848, %v2844
    %v3837 = vpack.c.b16 %v2849, %v2845
    %v3838 = vpack.c.b16 %v2854, %v2850
    %v3839 = vpack.c.b16 %v2855, %v2851
    %v3840 = vpack.c.b16 %v2856, %v2852
    %v3841 = vpack.c.b16 %v2857, %v2853
    %v3842 = vpack.c.b16 %v2862, %v2858
    %v3843 = vpack.c.b16 %v2863, %v2859
    %v3844 = vpack.c.b16 %v2864, %v2860
    %v3845 = vpack.c.b16 %v2865, %v2861
    %v3846 = vpack.c.b16 %v2870, %v2866
    %v3847 = vpack.c.b16 %v2871, %v2867
    %v3848 = vpack.c.b16 %v2872, %v2868
    %v3849 = vpack.c.b16 %v2873, %v2869
    %v3850 = vpack.c.b16 %v2878, %v2874
    %v3851 = vpack.c.b16 %v2879, %v2875
    %v3852 = vpack.c.b16 %v2880, %v2876
    %v3853 = vpack.c.b16 %v2881, %v2877
    %v3854 = vpack.c.b16 %v2886, %v2882
    %v3855 = vpack.c.b16 %v2887, %v2883
    %v3856 = vpack.c.b16 %v2888, %v2884
    %v3857 = vpack.c.b16 %v2889, %v2885
    %v3858 = vpack.c.b16 %v2894, %v2890
    %v3859 = vpack.c.b16 %v2895, %v2891
    %v3860 = vpack.c.b16 %v2896, %v2892
    %v3861 = vpack.c.b16 %v2897, %v2893
    %v3862 = vpack.c.b16 %v2902, %v2898
    %v3863 = vpack.c.b16 %v2903, %v2899
    %v3864 = vpack.c.b16 %v2904, %v2900
    %v3865 = vpack.c.b16 %v2905, %v2901
    %v3866 = vpack.c.b16 %v2910, %v2906
    %v3867 = vpack.c.b16 %v2911, %v2907
    %v3868 = vpack.c.b16 %v2912, %v2908
    %v3869 = vpack.c.b16 %v2913, %v2909
    %v3870 = vpack.c.b16 %v2918, %v2914
    %v3871 = vpack.c.b16 %v2919, %v2915
    %v3872 = vpack.c.b16 %v2920, %v2916
    %v3873 = vpack.c.b16 %v2921, %v2917
    %v3874 = vpack.c.b16 %v2926, %v2922
    %v3875 = vpack.c.b16 %v2927, %v2923
    %v3876 = vpack.c.b16 %v2928, %v2924
    %v3877 = vpack.c.b16 %v2929, %v2925
    %v3878 = vpack.c.b16 %v2934, %v2930
    %v3879 = vpack.c.b16 %v2935, %v2931
    %v3880 = vpack.c.b16 %v2936, %v2932
    %v3881 = vpack.c.b16 %v2937, %v2933
    %v3882 = vpack.c.b16 %v2942, %v2938
    %v3883 = vpack.c.b16 %v2943, %v2939
    %v3884 = vpack.c.b16 %v2944, %v2940
    %v3885 = vpack.c.b16 %v2945, %v2941
    %v3886 = vpack.c.b16 %v2950, %v2946
    %v3887 = vpack.c.b16 %v2951, %v2947
    %v3888 = vpack.c.b16 %v2952, %v2948
    %v3889 = vpack.c.b16 %v2953, %v2949
    %v3890 = vpack.c.b16 %v2958, %v2954
    %v3891 = vpack.c.b16 %v2959, %v2955
    %v3892 = vpack.c.b16 %v2960, %v2956
    %v3893 = vpack.c.b16 %v2961, %v2957
    %v3894 = vpack.c.b16 %v2966, %v2962
    %v3895 = vpack.c.b16 %v2967, %v2963
    %v3896 = vpack.c.b16 %v2968, %v2964
    %v3897 = vpack.c.b16 %v2969, %v2965
    %v3898 = vpack.c.b16 %v2974, %v2970
    %v3899 = vpack.c.b16 %v2975, %v2971
    %v3900 = vpack.c.b16 %v2976, %v2972
    %v3901 = vpack.c.b16 %v2977, %v2973
    %v3902 = vpack.c.b16 %v2982, %v2978
    %v3903 = vpack.c.b16 %v2983, %v2979
    %v3904 = vpack.c.b16 %v2984, %v2980
    %v3905 = vpack.c.b16 %v2985, %v2981
    %v3906 = vpack.c.b16 %v2990, %v2986
    %v3907 = vpack.c.b16 %v2991, %v2987
    %v3908 = vpack.c.b16 %v2992, %v2988
    %v3909 = vpack.c.b16 %v2993, %v2989
    %v3910 = vpack.c.b16 %v2998, %v2994
    %v3911 = vpack.c.b16 %v2999, %v2995
    %v3912 = vpack.c.b16 %v3000, %v2996
    %v3913 = vpack.c.b16 %v3001, %v2997
    %v3914 = vpack.c.b16 %v3006, %v3002
    %v3915 = vpack.c.b16 %v3007, %v3003
    %v3916 = vpack.c.b16 %v3008, %v3004
    %v3917 = vpack.c.b16 %v3009, %v3005
    %v3918 = vpack.c.b16 %v3014, %v3010
    %v3919 = vpack.c.b16 %v3015, %v3011
    %v3920 = vpack.c.b16 %v3016, %v3012
    %v3921 = vpack.c.b16 %v3017, %v3013
    %v3922 = vpack.c.b16 %v3022, %v3018
    %v3923 = vpack.c.b16 %v3023, %v3019
    %v3924 = vpack.c.b16 %v3024, %v3020
    %v3925 = vpack.c.b16 %v3025, %v3021
    %v3926 = vpack.c.b16 %v3030, %v3026
    %v3927 = vpack.c.b16 %v3031, %v3027
    %v3928 = vpack.c.b16 %v3032, %v3028
    %v3929 = vpack.c.b16 %v3033, %v3029
    %v3930 = vpack.c.b16 %v3038, %v3034
    %v3931 = vpack.c.b16 %v3039, %v3035
    %v3932 = vpack.c.b16 %v3040, %v3036
    %v3933 = vpack.c.b16 %v3041, %v3037
    %v3934 = vpack.c.b16 %v3046, %v3042
    %v3935 = vpack.c.b16 %v3047, %v3043
    %v3936 = vpack.c.b16 %v3048, %v3044
    %v3937 = vpack.c.b16 %v3049, %v3045
    %v3938 = vpack.c.b16 %v3054, %v3050
    %v3939 = vpack.c.b16 %v3055, %v3051
    %v3940 = vpack.c.b16 %v3056, %v3052
    %v3941 = vpack.c.b16 %v3057, %v3053
    %v3942 = vpack.c.b16 %v3062, %v3058
    %v3943 = vpack.c.b16 %v3063, %v3059
    %v3944 = vpack.c.b16 %v3064, %v3060
    %v3945 = vpack.c.b16 %v3065, %v3061
    %v3946 = vpack.c.b16 %v3070, %v3066
    %v3947 = vpack.c.b16 %v3071, %v3067
    %v3948 = vpack.c.b16 %v3072, %v3068
    %v3949 = vpack.c.b16 %v3073, %v3069
    %v3950 = vpack.c.b16 %v3078, %v3074
    %v3951 = vpack.c.b16 %v3079, %v3075
    %v3952 = vpack.c.b16 %v3080, %v3076
    %v3953 = vpack.c.b16 %v3081, %v3077
    %v3954 = vpack.c.b16 %v3086, %v3082
    %v3955 = vpack.c.b16 %v3087, %v3083
    %v3956 = vpack.c.b16 %v3088, %v3084
    %v3957 = vpack.c.b16 %v3089, %v3085
    %v3958 = vpack.c.b16 %v3094, %v3090
    %v3959 = vpack.c.b16 %v3095, %v3091
    %v3960 = vpack.c.b16 %v3096, %v3092
    %v3961 = vpack.c.b16 %v3097, %v3093
    %v3962 = vpack.c.b16 %v3102, %v3098
    %v3963 = vpack.c.b16 %v3103, %v3099
    %v3964 = vpack.c.b16 %v3104, %v3100
    %v3965 = vpack.c.b16 %v3105, %v3101
    %v3966 = vpack.c.b16 %v3110, %v3106
    %v3967 = vpack.c.b16 %v3111, %v3107
    %v3968 = vpack.c.b16 %v3112, %v3108
    %v3969 = vpack.c.b16 %v3113, %v3109
    %v3970 = vpack.c.b16 %v3118, %v3114
    %v3971 = vpack.c.b16 %v3119, %v3115
    %v3972 = vpack.c.b16 %v3120, %v3116
    %v3973 = vpack.c.b16 %v3121, %v3117
    %v3974 = vpack.c.b16 %v3126, %v3122
    %v3975 = vpack.c.b16 %v3127, %v3123
    %v3976 = vpack.c.b16 %v3128, %v3124
    %v3977 = vpack.c.b16 %v3129, %v3125
    %v3978 = vpack.c.b16 %v3134, %v3130
    %v3979 = vpack.c.b16 %v3135, %v3131
    %v3980 = vpack.c.b16 %v3136, %v3132
    %v3981 = vpack.c.b16 %v3137, %v3133
    %v3982 = vpack.c.b16 %v3142, %v3138
    %v3983 = vpack.c.b16 %v3143, %v3139
    %v3984 = vpack.c.b16 %v3144, %v3140
    %v3985 = vpack.c.b16 %v3145, %v3141
    %v3986 = vpack.c.b16 %v3150, %v3146
    %v3987 = vpack.c.b16 %v3151, %v3147
    %v3988 = vpack.c.b16 %v3152, %v3148
    %v3989 = vpack.c.b16 %v3153, %v3149
    %v3990 = vpack.c.b16 %v3158, %v3154
    %v3991 = vpack.c.b16 %v3159, %v3155
    %v3992 = vpack.c.b16 %v3160, %v3156
    %v3993 = vpack.c.b16 %v3161, %v3157
    %v3994 = vpack.c.b16 %v3166, %v3162
    %v3995 = vpack.c.b16 %v3167, %v3163
    %v3996 = vpack.c.b16 %v3168, %v3164
    %v3997 = vpack.c.b16 %v3169, %v3165
    %v3998 = vpack.c.b16 %v3174, %v3170
    %v3999 = vpack.c.b16 %v3175, %v3171
    %v4000 = vpack.c.b16 %v3176, %v3172
    %v4001 = vpack.c.b16 %v3177, %v3173
    %v4002 = vpack.c.b16 %v3182, %v3178
    %v4003 = vpack.c.b16 %v3183, %v3179
    %v4004 = vpack.c.b16 %v3184, %v3180
    %v4005 = vpack.c.b16 %v3185, %v3181
    %v4006 = vpack.c.b16 %v3190, %v3186
    %v4007 = vpack.c.b16 %v3191, %v3187
    %v4008 = vpack.c.b16 %v3192, %v3188
    %v4009 = vpack.c.b16 %v3193, %v3189
    %v4010 = vpack.c.b16 %v3198, %v3194
    %v4011 = vpack.c.b16 %v3199, %v3195
    %v4012 = vpack.c.b16 %v3200, %v3196
    %v4013 = vpack.c.b16 %v3201, %v3197
    %v4014 = vpack.c.b16 %v3206, %v3202
    %v4015 = vpack.c.b16 %v3207, %v3203
    %v4016 = vpack.c.b16 %v3208, %v3204
    %v4017 = vpack.c.b16 %v3209, %v3205
    %v4018 = vpack.c.b16 %v3214, %v3210
    %v4019 = vpack.c.b16 %v3215, %v3211
    %v4020 = vpack.c.b16 %v3216, %v3212
    %v4021 = vpack.c.b16 %v3217, %v3213
    %v4022 = vpack.c.b16 %v3222, %v3218
    %v4023 = vpack.c.b16 %v3223, %v3219
    %v4024 = vpack.c.b16 %v3224, %v3220
    %v4025 = vpack.c.b16 %v3225, %v3221
    %v4026 = vpack.c.b16 %v3230, %v3226
    %v4027 = vpack.c.b16 %v3231, %v3227
    %v4028 = vpack.c.b16 %v3232, %v3228
    %v4029 = vpack.c.b16 %v3233, %v3229
    %v4030 = vpack.c.b16 %v3238, %v3234
    %v4031 = vpack.c.b16 %v3239, %v3235
    %v4032 = vpack.c.b16 %v3240, %v3236
    %v4033 = vpack.c.b16 %v3241, %v3237
    %v4034 = vpack.c.b16 %v3246, %v3242
    %v4035 = vpack.c.b16 %v3247, %v3243
    %v4036 = vpack.c.b16 %v3248, %v3244
    %v4037 = vpack.c.b16 %v3249, %v3245
    %v4038 = vpack.c.b16 %v3254, %v3250
    %v4039 = vpack.c.b16 %v3255, %v3251
    %v4040 = vpack.c.b16 %v3256, %v3252
    %v4041 = vpack.c.b16 %v3257, %v3253
    %vm4826 = vcmask 523264
    %v4828 = vsel %vm4826, %v121, 0
    %4830 = vmatpush.bf16.msra.mxu0 %v3286
    %4831 = vmatpush.bf16.msra.mxu0 %v3282
    %4832 = vmatpush.bf16.msra.mxu0 %v3278
    %4833 = vmatpush.bf16.msra.mxu0 %v3274
    %4834 = vmatpush.bf16.msra.mxu0 %v3270
    %4835 = vmatpush.bf16.msra.mxu0 %v3266
    %4836 = vmatpush.bf16.msra.mxu0 %v3262
    %4837 = vmatpush.bf16.msra.mxu0 %v3258
    %4838 = vmatmul.bf16.gmra.mxu0 %v97
    %v4839 = vpop.f32.mrf.mxu0
    %v4840 = vadd.f32 0.0, %v4839
    %v4841 = vpop.f32.mrf.mxu0
    %4842 = vdwg.mxu0
    %4843 = vmatpush.bf16.msra.mxu0 %v3318
    %4844 = vmatpush.bf16.msra.mxu0 %v3314
    %4845 = vmatpush.bf16.msra.mxu0 %v3310
    %4846 = vmatpush.bf16.msra.mxu0 %v3306
    %4847 = vmatpush.bf16.msra.mxu0 %v3302
    %4848 = vmatpush.bf16.msra.mxu0 %v3298
    %4849 = vmatpush.bf16.msra.mxu0 %v3294
    %4850 = vmatpush.bf16.msra.mxu0 %v3290
    %4851 = vmatmul.bf16.gmra.mxu0 %v98
    %v4852 = vpop.f32.mrf.mxu0
    %v4853 = vadd.f32 %v4840, %v4852
    %v4854 = vpop.f32.mrf.mxu0
    %4855 = vdwg.mxu0
    %4856 = vmatpush.bf16.msra.mxu0 %v3350
    %4857 = vmatpush.bf16.msra.mxu0 %v3346
    %4858 = vmatpush.bf16.msra.mxu0 %v3342
    %4859 = vmatpush.bf16.msra.mxu0 %v3338
    %4860 = vmatpush.bf16.msra.mxu0 %v3334
    %4861 = vmatpush.bf16.msra.mxu0 %v3330
    %4862 = vmatpush.bf16.msra.mxu0 %v3326
    %4863 = vmatpush.bf16.msra.mxu0 %v3322
    %4864 = vmatmul.bf16.gmra.mxu0 %v99
    %v4865 = vpop.f32.mrf.mxu0
    %v4866 = vadd.f32 %v4853, %v4865
    %v4867 = vpop.f32.mrf.mxu0
    %4868 = vdwg.mxu0
    %4869 = vmatpush.bf16.msra.mxu0 %v3382
    %4870 = vmatpush.bf16.msra.mxu0 %v3378
    %4871 = vmatpush.bf16.msra.mxu0 %v3374
    %4872 = vmatpush.bf16.msra.mxu0 %v3370
    %4873 = vmatpush.bf16.msra.mxu0 %v3366
    %4874 = vmatpush.bf16.msra.mxu0 %v3362
    %4875 = vmatpush.bf16.msra.mxu0 %v3358
    %4876 = vmatpush.bf16.msra.mxu0 %v3354
    %4877 = vmatmul.bf16.gmra.mxu0 %v100
    %v4878 = vpop.f32.mrf.mxu0
    %v4879 = vadd.f32 %v4866, %v4878
    %v4880 = vpop.f32.mrf.mxu0
    %4881 = vdwg.mxu0
    %4882 = vmatpush.bf16.msra.mxu0 %v3414
    %4883 = vmatpush.bf16.msra.mxu0 %v3410
    %4884 = vmatpush.bf16.msra.mxu0 %v3406
    %4885 = vmatpush.bf16.msra.mxu0 %v3402
    %4886 = vmatpush.bf16.msra.mxu0 %v3398
    %4887 = vmatpush.bf16.msra.mxu0 %v3394
    %4888 = vmatpush.bf16.msra.mxu0 %v3390
    %4889 = vmatpush.bf16.msra.mxu0 %v3386
    %4890 = vmatmul.bf16.gmra.mxu0 %v101
    %v4891 = vpop.f32.mrf.mxu0
    %v4892 = vadd.f32 %v4879, %v4891
    %v4893 = vpop.f32.mrf.mxu0
    %4894 = vdwg.mxu0
    %4895 = vmatpush.bf16.msra.mxu0 %v3446
    %4896 = vmatpush.bf16.msra.mxu0 %v3442
    %4897 = vmatpush.bf16.msra.mxu0 %v3438
    %4898 = vmatpush.bf16.msra.mxu0 %v3434
    %4899 = vmatpush.bf16.msra.mxu0 %v3430
    %4900 = vmatpush.bf16.msra.mxu0 %v3426
    %4901 = vmatpush.bf16.msra.mxu0 %v3422
    %4902 = vmatpush.bf16.msra.mxu0 %v3418
    %4903 = vmatmul.bf16.gmra.mxu0 %v102
    %v4904 = vpop.f32.mrf.mxu0
    %v4905 = vadd.f32 %v4892, %v4904
    %v4906 = vpop.f32.mrf.mxu0
    %4907 = vdwg.mxu0
    %4908 = vmatpush.bf16.msra.mxu0 %v3478
    %4909 = vmatpush.bf16.msra.mxu0 %v3474
    %4910 = vmatpush.bf16.msra.mxu0 %v3470
    %4911 = vmatpush.bf16.msra.mxu0 %v3466
    %4912 = vmatpush.bf16.msra.mxu0 %v3462
    %4913 = vmatpush.bf16.msra.mxu0 %v3458
    %4914 = vmatpush.bf16.msra.mxu0 %v3454
    %4915 = vmatpush.bf16.msra.mxu0 %v3450
    %4916 = vmatmul.bf16.gmra.mxu0 %v103
    %v4917 = vpop.f32.mrf.mxu0
    %v4918 = vadd.f32 %v4905, %v4917
    %v4919 = vpop.f32.mrf.mxu0
    %4920 = vdwg.mxu0
    %4921 = vmatpush.bf16.msra.mxu0 %v3510
    %4922 = vmatpush.bf16.msra.mxu0 %v3506
    %4923 = vmatpush.bf16.msra.mxu0 %v3502
    %4924 = vmatpush.bf16.msra.mxu0 %v3498
    %4925 = vmatpush.bf16.msra.mxu0 %v3494
    %4926 = vmatpush.bf16.msra.mxu0 %v3490
    %4927 = vmatpush.bf16.msra.mxu0 %v3486
    %4928 = vmatpush.bf16.msra.mxu0 %v3482
    %4929 = vmatmul.bf16.gmra.mxu0 %v104
    %v4930 = vpop.f32.mrf.mxu0
    %v4931 = vadd.f32 %v4918, %v4930
    %v4932 = vpop.f32.mrf.mxu0
    %4933 = vdwg.mxu0
    %4934 = vmatpush.bf16.msra.mxu0 %v3542
    %4935 = vmatpush.bf16.msra.mxu0 %v3538
    %4936 = vmatpush.bf16.msra.mxu0 %v3534
    %4937 = vmatpush.bf16.msra.mxu0 %v3530
    %4938 = vmatpush.bf16.msra.mxu0 %v3526
    %4939 = vmatpush.bf16.msra.mxu0 %v3522
    %4940 = vmatpush.bf16.msra.mxu0 %v3518
    %4941 = vmatpush.bf16.msra.mxu0 %v3514
    %4942 = vmatmul.bf16.gmra.mxu0 %v105
    %v4943 = vpop.f32.mrf.mxu0
    %v4944 = vadd.f32 %v4931, %v4943
    %v4945 = vpop.f32.mrf.mxu0
    %4946 = vdwg.mxu0
    %4947 = vmatpush.bf16.msra.mxu0 %v3574
    %4948 = vmatpush.bf16.msra.mxu0 %v3570
    %4949 = vmatpush.bf16.msra.mxu0 %v3566
    %4950 = vmatpush.bf16.msra.mxu0 %v3562
    %4951 = vmatpush.bf16.msra.mxu0 %v3558
    %4952 = vmatpush.bf16.msra.mxu0 %v3554
    %4953 = vmatpush.bf16.msra.mxu0 %v3550
    %4954 = vmatpush.bf16.msra.mxu0 %v3546
    %4955 = vmatmul.bf16.gmra.mxu0 %v106
    %v4956 = vpop.f32.mrf.mxu0
    %v4957 = vadd.f32 %v4944, %v4956
    %v4958 = vpop.f32.mrf.mxu0
    %4959 = vdwg.mxu0
    %4960 = vmatpush.bf16.msra.mxu0 %v3606
    %4961 = vmatpush.bf16.msra.mxu0 %v3602
    %4962 = vmatpush.bf16.msra.mxu0 %v3598
    %4963 = vmatpush.bf16.msra.mxu0 %v3594
    %4964 = vmatpush.bf16.msra.mxu0 %v3590
    %4965 = vmatpush.bf16.msra.mxu0 %v3586
    %4966 = vmatpush.bf16.msra.mxu0 %v3582
    %4967 = vmatpush.bf16.msra.mxu0 %v3578
    %4968 = vmatmul.bf16.gmra.mxu0 %v107
    %v4969 = vpop.f32.mrf.mxu0
    %v4970 = vadd.f32 %v4957, %v4969
    %v4971 = vpop.f32.mrf.mxu0
    %4972 = vdwg.mxu0
    %4973 = vmatpush.bf16.msra.mxu0 %v3638
    %4974 = vmatpush.bf16.msra.mxu0 %v3634
    %4975 = vmatpush.bf16.msra.mxu0 %v3630
    %4976 = vmatpush.bf16.msra.mxu0 %v3626
    %4977 = vmatpush.bf16.msra.mxu0 %v3622
    %4978 = vmatpush.bf16.msra.mxu0 %v3618
    %4979 = vmatpush.bf16.msra.mxu0 %v3614
    %4980 = vmatpush.bf16.msra.mxu0 %v3610
    %4981 = vmatmul.bf16.gmra.mxu0 %v108
    %v4982 = vpop.f32.mrf.mxu0
    %v4983 = vadd.f32 %v4970, %v4982
    %v4984 = vpop.f32.mrf.mxu0
    %4985 = vdwg.mxu0
    %4986 = vmatpush.bf16.msra.mxu0 %v3670
    %4987 = vmatpush.bf16.msra.mxu0 %v3666
    %4988 = vmatpush.bf16.msra.mxu0 %v3662
    %4989 = vmatpush.bf16.msra.mxu0 %v3658
    %4990 = vmatpush.bf16.msra.mxu0 %v3654
    %4991 = vmatpush.bf16.msra.mxu0 %v3650
    %4992 = vmatpush.bf16.msra.mxu0 %v3646
    %4993 = vmatpush.bf16.msra.mxu0 %v3642
    %4994 = vmatmul.bf16.gmra.mxu0 %v109
    %v4995 = vpop.f32.mrf.mxu0
    %v4996 = vadd.f32 %v4983, %v4995
    %v4997 = vpop.f32.mrf.mxu0
    %4998 = vdwg.mxu0
    %4999 = vmatpush.bf16.msra.mxu0 %v3702
    %5000 = vmatpush.bf16.msra.mxu0 %v3698
    %5001 = vmatpush.bf16.msra.mxu0 %v3694
    %5002 = vmatpush.bf16.msra.mxu0 %v3690
    %5003 = vmatpush.bf16.msra.mxu0 %v3686
    %5004 = vmatpush.bf16.msra.mxu0 %v3682
    %5005 = vmatpush.bf16.msra.mxu0 %v3678
    %5006 = vmatpush.bf16.msra.mxu0 %v3674
    %5007 = vmatmul.bf16.gmra.mxu0 %v110
    %v5008 = vpop.f32.mrf.mxu0
    %v5009 = vadd.f32 %v4996, %v5008
    %v5010 = vpop.f32.mrf.mxu0
    %5011 = vdwg.mxu0
    %5012 = vmatpush.bf16.msra.mxu0 %v3734
    %5013 = vmatpush.bf16.msra.mxu0 %v3730
    %5014 = vmatpush.bf16.msra.mxu0 %v3726
    %5015 = vmatpush.bf16.msra.mxu0 %v3722
    %5016 = vmatpush.bf16.msra.mxu0 %v3718
    %5017 = vmatpush.bf16.msra.mxu0 %v3714
    %5018 = vmatpush.bf16.msra.mxu0 %v3710
    %5019 = vmatpush.bf16.msra.mxu0 %v3706
    %5020 = vmatmul.bf16.gmra.mxu0 %v111
    %v5021 = vpop.f32.mrf.mxu0
    %v5022 = vadd.f32 %v5009, %v5021
    %v5023 = vpop.f32.mrf.mxu0
    %5024 = vdwg.mxu0
    %5025 = vmatpush.bf16.msra.mxu0 %v3766
    %5026 = vmatpush.bf16.msra.mxu0 %v3762
    %5027 = vmatpush.bf16.msra.mxu0 %v3758
    %5028 = vmatpush.bf16.msra.mxu0 %v3754
    %5029 = vmatpush.bf16.msra.mxu0 %v3750
    %5030 = vmatpush.bf16.msra.mxu0 %v3746
    %5031 = vmatpush.bf16.msra.mxu0 %v3742
    %5032 = vmatpush.bf16.msra.mxu0 %v3738
    %5033 = vmatmul.bf16.gmra.mxu0 %v112
    %v5034 = vpop.f32.mrf.mxu0
    %v5035 = vadd.f32 %v5022, %v5034
    %v5036 = vpop.f32.mrf.mxu0
    %5037 = vdwg.mxu0
    %5038 = vmatpush.bf16.msra.mxu0 %v3798
    %5039 = vmatpush.bf16.msra.mxu0 %v3794
    %5040 = vmatpush.bf16.msra.mxu0 %v3790
    %5041 = vmatpush.bf16.msra.mxu0 %v3786
    %5042 = vmatpush.bf16.msra.mxu0 %v3782
    %5043 = vmatpush.bf16.msra.mxu0 %v3778
    %5044 = vmatpush.bf16.msra.mxu0 %v3774
    %5045 = vmatpush.bf16.msra.mxu0 %v3770
    %5046 = vmatmul.bf16.gmra.mxu0 %v113
    %v5047 = vpop.f32.mrf.mxu0
    %v5048 = vadd.f32 %v5035, %v5047
    %v5049 = vpop.f32.mrf.mxu0
    %5050 = vdwg.mxu0
    %5051 = vmatpush.bf16.msra.mxu0 %v3830
    %5052 = vmatpush.bf16.msra.mxu0 %v3826
    %5053 = vmatpush.bf16.msra.mxu0 %v3822
    %5054 = vmatpush.bf16.msra.mxu0 %v3818
    %5055 = vmatpush.bf16.msra.mxu0 %v3814
    %5056 = vmatpush.bf16.msra.mxu0 %v3810
    %5057 = vmatpush.bf16.msra.mxu0 %v3806
    %5058 = vmatpush.bf16.msra.mxu0 %v3802
    %5059 = vmatmul.bf16.gmra.mxu0 %v114
    %v5060 = vpop.f32.mrf.mxu0
    %v5061 = vadd.f32 %v5048, %v5060
    %v5062 = vpop.f32.mrf.mxu0
    %5063 = vdwg.mxu0
    %5064 = vmatpush.bf16.msra.mxu0 %v3862
    %5065 = vmatpush.bf16.msra.mxu0 %v3858
    %5066 = vmatpush.bf16.msra.mxu0 %v3854
    %5067 = vmatpush.bf16.msra.mxu0 %v3850
    %5068 = vmatpush.bf16.msra.mxu0 %v3846
    %5069 = vmatpush.bf16.msra.mxu0 %v3842
    %5070 = vmatpush.bf16.msra.mxu0 %v3838
    %5071 = vmatpush.bf16.msra.mxu0 %v3834
    %5072 = vmatmul.bf16.gmra.mxu0 %v115
    %v5073 = vpop.f32.mrf.mxu0
    %v5074 = vadd.f32 %v5061, %v5073
    %v5075 = vpop.f32.mrf.mxu0
    %5076 = vdwg.mxu0
    %5077 = vmatpush.bf16.msra.mxu0 %v3894
    %5078 = vmatpush.bf16.msra.mxu0 %v3890
    %5079 = vmatpush.bf16.msra.mxu0 %v3886
    %5080 = vmatpush.bf16.msra.mxu0 %v3882
    %5081 = vmatpush.bf16.msra.mxu0 %v3878
    %5082 = vmatpush.bf16.msra.mxu0 %v3874
    %5083 = vmatpush.bf16.msra.mxu0 %v3870
    %5084 = vmatpush.bf16.msra.mxu0 %v3866
    %5085 = vmatmul.bf16.gmra.mxu0 %v116
    %v5086 = vpop.f32.mrf.mxu0
    %v5087 = vadd.f32 %v5074, %v5086
    %v5088 = vpop.f32.mrf.mxu0
    %5089 = vdwg.mxu0
    %5090 = vmatpush.bf16.msra.mxu0 %v3926
    %5091 = vmatpush.bf16.msra.mxu0 %v3922
    %5092 = vmatpush.bf16.msra.mxu0 %v3918
    %5093 = vmatpush.bf16.msra.mxu0 %v3914
    %5094 = vmatpush.bf16.msra.mxu0 %v3910
    %5095 = vmatpush.bf16.msra.mxu0 %v3906
    %5096 = vmatpush.bf16.msra.mxu0 %v3902
    %5097 = vmatpush.bf16.msra.mxu0 %v3898
    %5098 = vmatmul.bf16.gmra.mxu0 %v117
    %v5099 = vpop.f32.mrf.mxu0
    %v5100 = vadd.f32 %v5087, %v5099
    %v5101 = vpop.f32.mrf.mxu0
    %5102 = vdwg.mxu0
    %5103 = vmatpush.bf16.msra.mxu0 %v3958
    %5104 = vmatpush.bf16.msra.mxu0 %v3954
    %5105 = vmatpush.bf16.msra.mxu0 %v3950
    %5106 = vmatpush.bf16.msra.mxu0 %v3946
    %5107 = vmatpush.bf16.msra.mxu0 %v3942
    %5108 = vmatpush.bf16.msra.mxu0 %v3938
    %5109 = vmatpush.bf16.msra.mxu0 %v3934
    %5110 = vmatpush.bf16.msra.mxu0 %v3930
    %5111 = vmatmul.bf16.gmra.mxu0 %v118
    %v5112 = vpop.f32.mrf.mxu0
    %v5113 = vadd.f32 %v5100, %v5112
    %v5114 = vpop.f32.mrf.mxu0
    %5115 = vdwg.mxu0
    %5116 = vmatpush.bf16.msra.mxu0 %v3990
    %5117 = vmatpush.bf16.msra.mxu0 %v3986
    %5118 = vmatpush.bf16.msra.mxu0 %v3982
    %5119 = vmatpush.bf16.msra.mxu0 %v3978
    %5120 = vmatpush.bf16.msra.mxu0 %v3974
    %5121 = vmatpush.bf16.msra.mxu0 %v3970
    %5122 = vmatpush.bf16.msra.mxu0 %v3966
    %5123 = vmatpush.bf16.msra.mxu0 %v3962
    %5124 = vmatmul.bf16.gmra.mxu0 %v119
    %v5125 = vpop.f32.mrf.mxu0
    %v5126 = vadd.f32 %v5113, %v5125
    %v5127 = vpop.f32.mrf.mxu0
    %5128 = vdwg.mxu0
    %5129 = vmatpush.bf16.msra.mxu0 %v4022
    %5130 = vmatpush.bf16.msra.mxu0 %v4018
    %5131 = vmatpush.bf16.msra.mxu0 %v4014
    %5132 = vmatpush.bf16.msra.mxu0 %v4010
    %5133 = vmatpush.bf16.msra.mxu0 %v4006
    %5134 = vmatpush.bf16.msra.mxu0 %v4002
    %5135 = vmatpush.bf16.msra.mxu0 %v3998
    %5136 = vmatpush.bf16.msra.mxu0 %v3994
    %5137 = vmatmul.bf16.gmra.mxu0 %v120
    %v5138 = vpop.f32.mrf.mxu0
    %v5139 = vadd.f32 %v5126, %v5138
    %v5140 = vpop.f32.mrf.mxu0
    %5141 = vdwg.mxu0
    %5142 = vmatpush.bf16.msra.mxu0 0
    %5143 = vmatpush.bf16.msra.mxu0 0
    %5144 = vmatpush.bf16.msra.mxu0 0
    %5145 = vmatpush.bf16.msra.mxu0 0
    %5146 = vmatpush.bf16.msra.mxu0 %v4038
    %5147 = vmatpush.bf16.msra.mxu0 %v4034
    %5148 = vmatpush.bf16.msra.mxu0 %v4030
    %5149 = vmatpush.bf16.msra.mxu0 %v4026
    %5150 = vmatmul.bf16.gmra.mxu0 %v4828
    %v5151 = vpop.f32.mrf.mxu0
    %v5152 = vadd.f32 %v5139, %v5151
    %v5153 = vpop.f32.mrf.mxu0
    %5154 = vdwg.mxu0
    %5155 = vmatpush.bf16.msra.mxu0 %v3287
    %5156 = vmatpush.bf16.msra.mxu0 %v3283
    %5157 = vmatpush.bf16.msra.mxu0 %v3279
    %5158 = vmatpush.bf16.msra.mxu0 %v3275
    %5159 = vmatpush.bf16.msra.mxu0 %v3271
    %5160 = vmatpush.bf16.msra.mxu0 %v3267
    %5161 = vmatpush.bf16.msra.mxu0 %v3263
    %5162 = vmatpush.bf16.msra.mxu0 %v3259
    %5163 = vmatmul.bf16.gmra.mxu0 %v97
    %v5164 = vpop.f32.mrf.mxu0
    %v5165 = vadd.f32 0.0, %v5164
    %v5166 = vpop.f32.mrf.mxu0
    %5167 = vdwg.mxu0
    %5168 = vmatpush.bf16.msra.mxu0 %v3319
    %5169 = vmatpush.bf16.msra.mxu0 %v3315
    %5170 = vmatpush.bf16.msra.mxu0 %v3311
    %5171 = vmatpush.bf16.msra.mxu0 %v3307
    %5172 = vmatpush.bf16.msra.mxu0 %v3303
    %5173 = vmatpush.bf16.msra.mxu0 %v3299
    %5174 = vmatpush.bf16.msra.mxu0 %v3295
    %5175 = vmatpush.bf16.msra.mxu0 %v3291
    %5176 = vmatmul.bf16.gmra.mxu0 %v98
    %v5177 = vpop.f32.mrf.mxu0
    %v5178 = vadd.f32 %v5165, %v5177
    %v5179 = vpop.f32.mrf.mxu0
    %5180 = vdwg.mxu0
    %5181 = vmatpush.bf16.msra.mxu0 %v3351
    %5182 = vmatpush.bf16.msra.mxu0 %v3347
    %5183 = vmatpush.bf16.msra.mxu0 %v3343
    %5184 = vmatpush.bf16.msra.mxu0 %v3339
    %5185 = vmatpush.bf16.msra.mxu0 %v3335
    %5186 = vmatpush.bf16.msra.mxu0 %v3331
    %5187 = vmatpush.bf16.msra.mxu0 %v3327
    %5188 = vmatpush.bf16.msra.mxu0 %v3323
    %5189 = vmatmul.bf16.gmra.mxu0 %v99
    %v5190 = vpop.f32.mrf.mxu0
    %v5191 = vadd.f32 %v5178, %v5190
    %v5192 = vpop.f32.mrf.mxu0
    %5193 = vdwg.mxu0
    %5194 = vmatpush.bf16.msra.mxu0 %v3383
    %5195 = vmatpush.bf16.msra.mxu0 %v3379
    %5196 = vmatpush.bf16.msra.mxu0 %v3375
    %5197 = vmatpush.bf16.msra.mxu0 %v3371
    %5198 = vmatpush.bf16.msra.mxu0 %v3367
    %5199 = vmatpush.bf16.msra.mxu0 %v3363
    %5200 = vmatpush.bf16.msra.mxu0 %v3359
    %5201 = vmatpush.bf16.msra.mxu0 %v3355
    %5202 = vmatmul.bf16.gmra.mxu0 %v100
    %v5203 = vpop.f32.mrf.mxu0
    %v5204 = vadd.f32 %v5191, %v5203
    %v5205 = vpop.f32.mrf.mxu0
    %5206 = vdwg.mxu0
    %5207 = vmatpush.bf16.msra.mxu0 %v3415
    %5208 = vmatpush.bf16.msra.mxu0 %v3411
    %5209 = vmatpush.bf16.msra.mxu0 %v3407
    %5210 = vmatpush.bf16.msra.mxu0 %v3403
    %5211 = vmatpush.bf16.msra.mxu0 %v3399
    %5212 = vmatpush.bf16.msra.mxu0 %v3395
    %5213 = vmatpush.bf16.msra.mxu0 %v3391
    %5214 = vmatpush.bf16.msra.mxu0 %v3387
    %5215 = vmatmul.bf16.gmra.mxu0 %v101
    %v5216 = vpop.f32.mrf.mxu0
    %v5217 = vadd.f32 %v5204, %v5216
    %v5218 = vpop.f32.mrf.mxu0
    %5219 = vdwg.mxu0
    %5220 = vmatpush.bf16.msra.mxu0 %v3447
    %5221 = vmatpush.bf16.msra.mxu0 %v3443
    %5222 = vmatpush.bf16.msra.mxu0 %v3439
    %5223 = vmatpush.bf16.msra.mxu0 %v3435
    %5224 = vmatpush.bf16.msra.mxu0 %v3431
    %5225 = vmatpush.bf16.msra.mxu0 %v3427
    %5226 = vmatpush.bf16.msra.mxu0 %v3423
    %5227 = vmatpush.bf16.msra.mxu0 %v3419
    %5228 = vmatmul.bf16.gmra.mxu0 %v102
    %v5229 = vpop.f32.mrf.mxu0
    %v5230 = vadd.f32 %v5217, %v5229
    %v5231 = vpop.f32.mrf.mxu0
    %5232 = vdwg.mxu0
    %5233 = vmatpush.bf16.msra.mxu0 %v3479
    %5234 = vmatpush.bf16.msra.mxu0 %v3475
    %5235 = vmatpush.bf16.msra.mxu0 %v3471
    %5236 = vmatpush.bf16.msra.mxu0 %v3467
    %5237 = vmatpush.bf16.msra.mxu0 %v3463
    %5238 = vmatpush.bf16.msra.mxu0 %v3459
    %5239 = vmatpush.bf16.msra.mxu0 %v3455
    %5240 = vmatpush.bf16.msra.mxu0 %v3451
    %5241 = vmatmul.bf16.gmra.mxu0 %v103
    %v5242 = vpop.f32.mrf.mxu0
    %v5243 = vadd.f32 %v5230, %v5242
    %v5244 = vpop.f32.mrf.mxu0
    %5245 = vdwg.mxu0
    %5246 = vmatpush.bf16.msra.mxu0 %v3511
    %5247 = vmatpush.bf16.msra.mxu0 %v3507
    %5248 = vmatpush.bf16.msra.mxu0 %v3503
    %5249 = vmatpush.bf16.msra.mxu0 %v3499
    %5250 = vmatpush.bf16.msra.mxu0 %v3495
    %5251 = vmatpush.bf16.msra.mxu0 %v3491
    %5252 = vmatpush.bf16.msra.mxu0 %v3487
    %5253 = vmatpush.bf16.msra.mxu0 %v3483
    %5254 = vmatmul.bf16.gmra.mxu0 %v104
    %v5255 = vpop.f32.mrf.mxu0
    %v5256 = vadd.f32 %v5243, %v5255
    %v5257 = vpop.f32.mrf.mxu0
    %5258 = vdwg.mxu0
    %5259 = vmatpush.bf16.msra.mxu0 %v3543
    %5260 = vmatpush.bf16.msra.mxu0 %v3539
    %5261 = vmatpush.bf16.msra.mxu0 %v3535
    %5262 = vmatpush.bf16.msra.mxu0 %v3531
    %5263 = vmatpush.bf16.msra.mxu0 %v3527
    %5264 = vmatpush.bf16.msra.mxu0 %v3523
    %5265 = vmatpush.bf16.msra.mxu0 %v3519
    %5266 = vmatpush.bf16.msra.mxu0 %v3515
    %5267 = vmatmul.bf16.gmra.mxu0 %v105
    %v5268 = vpop.f32.mrf.mxu0
    %v5269 = vadd.f32 %v5256, %v5268
    %v5270 = vpop.f32.mrf.mxu0
    %5271 = vdwg.mxu0
    %5272 = vmatpush.bf16.msra.mxu0 %v3575
    %5273 = vmatpush.bf16.msra.mxu0 %v3571
    %5274 = vmatpush.bf16.msra.mxu0 %v3567
    %5275 = vmatpush.bf16.msra.mxu0 %v3563
    %5276 = vmatpush.bf16.msra.mxu0 %v3559
    %5277 = vmatpush.bf16.msra.mxu0 %v3555
    %5278 = vmatpush.bf16.msra.mxu0 %v3551
    %5279 = vmatpush.bf16.msra.mxu0 %v3547
    %5280 = vmatmul.bf16.gmra.mxu0 %v106
    %v5281 = vpop.f32.mrf.mxu0
    %v5282 = vadd.f32 %v5269, %v5281
    %v5283 = vpop.f32.mrf.mxu0
    %5284 = vdwg.mxu0
    %5285 = vmatpush.bf16.msra.mxu0 %v3607
    %5286 = vmatpush.bf16.msra.mxu0 %v3603
    %5287 = vmatpush.bf16.msra.mxu0 %v3599
    %5288 = vmatpush.bf16.msra.mxu0 %v3595
    %5289 = vmatpush.bf16.msra.mxu0 %v3591
    %5290 = vmatpush.bf16.msra.mxu0 %v3587
    %5291 = vmatpush.bf16.msra.mxu0 %v3583
    %5292 = vmatpush.bf16.msra.mxu0 %v3579
    %5293 = vmatmul.bf16.gmra.mxu0 %v107
    %v5294 = vpop.f32.mrf.mxu0
    %v5295 = vadd.f32 %v5282, %v5294
    %v5296 = vpop.f32.mrf.mxu0
    %5297 = vdwg.mxu0
    %5298 = vmatpush.bf16.msra.mxu0 %v3639
    %5299 = vmatpush.bf16.msra.mxu0 %v3635
    %5300 = vmatpush.bf16.msra.mxu0 %v3631
    %5301 = vmatpush.bf16.msra.mxu0 %v3627
    %5302 = vmatpush.bf16.msra.mxu0 %v3623
    %5303 = vmatpush.bf16.msra.mxu0 %v3619
    %5304 = vmatpush.bf16.msra.mxu0 %v3615
    %5305 = vmatpush.bf16.msra.mxu0 %v3611
    %5306 = vmatmul.bf16.gmra.mxu0 %v108
    %v5307 = vpop.f32.mrf.mxu0
    %v5308 = vadd.f32 %v5295, %v5307
    %v5309 = vpop.f32.mrf.mxu0
    %5310 = vdwg.mxu0
    %5311 = vmatpush.bf16.msra.mxu0 %v3671
    %5312 = vmatpush.bf16.msra.mxu0 %v3667
    %5313 = vmatpush.bf16.msra.mxu0 %v3663
    %5314 = vmatpush.bf16.msra.mxu0 %v3659
    %5315 = vmatpush.bf16.msra.mxu0 %v3655
    %5316 = vmatpush.bf16.msra.mxu0 %v3651
    %5317 = vmatpush.bf16.msra.mxu0 %v3647
    %5318 = vmatpush.bf16.msra.mxu0 %v3643
    %5319 = vmatmul.bf16.gmra.mxu0 %v109
    %v5320 = vpop.f32.mrf.mxu0
    %v5321 = vadd.f32 %v5308, %v5320
    %v5322 = vpop.f32.mrf.mxu0
    %5323 = vdwg.mxu0
    %5324 = vmatpush.bf16.msra.mxu0 %v3703
    %5325 = vmatpush.bf16.msra.mxu0 %v3699
    %5326 = vmatpush.bf16.msra.mxu0 %v3695
    %5327 = vmatpush.bf16.msra.mxu0 %v3691
    %5328 = vmatpush.bf16.msra.mxu0 %v3687
    %5329 = vmatpush.bf16.msra.mxu0 %v3683
    %5330 = vmatpush.bf16.msra.mxu0 %v3679
    %5331 = vmatpush.bf16.msra.mxu0 %v3675
    %5332 = vmatmul.bf16.gmra.mxu0 %v110
    %v5333 = vpop.f32.mrf.mxu0
    %v5334 = vadd.f32 %v5321, %v5333
    %v5335 = vpop.f32.mrf.mxu0
    %5336 = vdwg.mxu0
    %5337 = vmatpush.bf16.msra.mxu0 %v3735
    %5338 = vmatpush.bf16.msra.mxu0 %v3731
    %5339 = vmatpush.bf16.msra.mxu0 %v3727
    %5340 = vmatpush.bf16.msra.mxu0 %v3723
    %5341 = vmatpush.bf16.msra.mxu0 %v3719
    %5342 = vmatpush.bf16.msra.mxu0 %v3715
    %5343 = vmatpush.bf16.msra.mxu0 %v3711
    %5344 = vmatpush.bf16.msra.mxu0 %v3707
    %5345 = vmatmul.bf16.gmra.mxu0 %v111
    %v5346 = vpop.f32.mrf.mxu0
    %v5347 = vadd.f32 %v5334, %v5346
    %v5348 = vpop.f32.mrf.mxu0
    %5349 = vdwg.mxu0
    %5350 = vmatpush.bf16.msra.mxu0 %v3767
    %5351 = vmatpush.bf16.msra.mxu0 %v3763
    %5352 = vmatpush.bf16.msra.mxu0 %v3759
    %5353 = vmatpush.bf16.msra.mxu0 %v3755
    %5354 = vmatpush.bf16.msra.mxu0 %v3751
    %5355 = vmatpush.bf16.msra.mxu0 %v3747
    %5356 = vmatpush.bf16.msra.mxu0 %v3743
    %5357 = vmatpush.bf16.msra.mxu0 %v3739
    %5358 = vmatmul.bf16.gmra.mxu0 %v112
    %v5359 = vpop.f32.mrf.mxu0
    %v5360 = vadd.f32 %v5347, %v5359
    %v5361 = vpop.f32.mrf.mxu0
    %5362 = vdwg.mxu0
    %5363 = vmatpush.bf16.msra.mxu0 %v3799
    %5364 = vmatpush.bf16.msra.mxu0 %v3795
    %5365 = vmatpush.bf16.msra.mxu0 %v3791
    %5366 = vmatpush.bf16.msra.mxu0 %v3787
    %5367 = vmatpush.bf16.msra.mxu0 %v3783
    %5368 = vmatpush.bf16.msra.mxu0 %v3779
    %5369 = vmatpush.bf16.msra.mxu0 %v3775
    %5370 = vmatpush.bf16.msra.mxu0 %v3771
    %5371 = vmatmul.bf16.gmra.mxu0 %v113
    %v5372 = vpop.f32.mrf.mxu0
    %v5373 = vadd.f32 %v5360, %v5372
    %v5374 = vpop.f32.mrf.mxu0
    %5375 = vdwg.mxu0
    %5376 = vmatpush.bf16.msra.mxu0 %v3831
    %5377 = vmatpush.bf16.msra.mxu0 %v3827
    %5378 = vmatpush.bf16.msra.mxu0 %v3823
    %5379 = vmatpush.bf16.msra.mxu0 %v3819
    %5380 = vmatpush.bf16.msra.mxu0 %v3815
    %5381 = vmatpush.bf16.msra.mxu0 %v3811
    %5382 = vmatpush.bf16.msra.mxu0 %v3807
    %5383 = vmatpush.bf16.msra.mxu0 %v3803
    %5384 = vmatmul.bf16.gmra.mxu0 %v114
    %v5385 = vpop.f32.mrf.mxu0
    %v5386 = vadd.f32 %v5373, %v5385
    %v5387 = vpop.f32.mrf.mxu0
    %5388 = vdwg.mxu0
    %5389 = vmatpush.bf16.msra.mxu0 %v3863
    %5390 = vmatpush.bf16.msra.mxu0 %v3859
    %5391 = vmatpush.bf16.msra.mxu0 %v3855
    %5392 = vmatpush.bf16.msra.mxu0 %v3851
    %5393 = vmatpush.bf16.msra.mxu0 %v3847
    %5394 = vmatpush.bf16.msra.mxu0 %v3843
    %5395 = vmatpush.bf16.msra.mxu0 %v3839
    %5396 = vmatpush.bf16.msra.mxu0 %v3835
    %5397 = vmatmul.bf16.gmra.mxu0 %v115
    %v5398 = vpop.f32.mrf.mxu0
    %v5399 = vadd.f32 %v5386, %v5398
    %v5400 = vpop.f32.mrf.mxu0
    %5401 = vdwg.mxu0
    %5402 = vmatpush.bf16.msra.mxu0 %v3895
    %5403 = vmatpush.bf16.msra.mxu0 %v3891
    %5404 = vmatpush.bf16.msra.mxu0 %v3887
    %5405 = vmatpush.bf16.msra.mxu0 %v3883
    %5406 = vmatpush.bf16.msra.mxu0 %v3879
    %5407 = vmatpush.bf16.msra.mxu0 %v3875
    %5408 = vmatpush.bf16.msra.mxu0 %v3871
    %5409 = vmatpush.bf16.msra.mxu0 %v3867
    %5410 = vmatmul.bf16.gmra.mxu0 %v116
    %v5411 = vpop.f32.mrf.mxu0
    %v5412 = vadd.f32 %v5399, %v5411
    %v5413 = vpop.f32.mrf.mxu0
    %5414 = vdwg.mxu0
    %5415 = vmatpush.bf16.msra.mxu0 %v3927
    %5416 = vmatpush.bf16.msra.mxu0 %v3923
    %5417 = vmatpush.bf16.msra.mxu0 %v3919
    %5418 = vmatpush.bf16.msra.mxu0 %v3915
    %5419 = vmatpush.bf16.msra.mxu0 %v3911
    %5420 = vmatpush.bf16.msra.mxu0 %v3907
    %5421 = vmatpush.bf16.msra.mxu0 %v3903
    %5422 = vmatpush.bf16.msra.mxu0 %v3899
    %5423 = vmatmul.bf16.gmra.mxu0 %v117
    %v5424 = vpop.f32.mrf.mxu0
    %v5425 = vadd.f32 %v5412, %v5424
    %v5426 = vpop.f32.mrf.mxu0
    %5427 = vdwg.mxu0
    %5428 = vmatpush.bf16.msra.mxu0 %v3959
    %5429 = vmatpush.bf16.msra.mxu0 %v3955
    %5430 = vmatpush.bf16.msra.mxu0 %v3951
    %5431 = vmatpush.bf16.msra.mxu0 %v3947
    %5432 = vmatpush.bf16.msra.mxu0 %v3943
    %5433 = vmatpush.bf16.msra.mxu0 %v3939
    %5434 = vmatpush.bf16.msra.mxu0 %v3935
    %5435 = vmatpush.bf16.msra.mxu0 %v3931
    %5436 = vmatmul.bf16.gmra.mxu0 %v118
    %v5437 = vpop.f32.mrf.mxu0
    %v5438 = vadd.f32 %v5425, %v5437
    %v5439 = vpop.f32.mrf.mxu0
    %5440 = vdwg.mxu0
    %5441 = vmatpush.bf16.msra.mxu0 %v3991
    %5442 = vmatpush.bf16.msra.mxu0 %v3987
    %5443 = vmatpush.bf16.msra.mxu0 %v3983
    %5444 = vmatpush.bf16.msra.mxu0 %v3979
    %5445 = vmatpush.bf16.msra.mxu0 %v3975
    %5446 = vmatpush.bf16.msra.mxu0 %v3971
    %5447 = vmatpush.bf16.msra.mxu0 %v3967
    %5448 = vmatpush.bf16.msra.mxu0 %v3963
    %5449 = vmatmul.bf16.gmra.mxu0 %v119
    %v5450 = vpop.f32.mrf.mxu0
    %v5451 = vadd.f32 %v5438, %v5450
    %v5452 = vpop.f32.mrf.mxu0
    %5453 = vdwg.mxu0
    %5454 = vmatpush.bf16.msra.mxu0 %v4023
    %5455 = vmatpush.bf16.msra.mxu0 %v4019
    %5456 = vmatpush.bf16.msra.mxu0 %v4015
    %5457 = vmatpush.bf16.msra.mxu0 %v4011
    %5458 = vmatpush.bf16.msra.mxu0 %v4007
    %5459 = vmatpush.bf16.msra.mxu0 %v4003
    %5460 = vmatpush.bf16.msra.mxu0 %v3999
    %5461 = vmatpush.bf16.msra.mxu0 %v3995
    %5462 = vmatmul.bf16.gmra.mxu0 %v120
    %v5463 = vpop.f32.mrf.mxu0
    %v5464 = vadd.f32 %v5451, %v5463
    %v5465 = vpop.f32.mrf.mxu0
    %5466 = vdwg.mxu0
    %5467 = vmatpush.bf16.msra.mxu0 0
    %5468 = vmatpush.bf16.msra.mxu0 0
    %5469 = vmatpush.bf16.msra.mxu0 0
    %5470 = vmatpush.bf16.msra.mxu0 0
    %5471 = vmatpush.bf16.msra.mxu0 %v4039
    %5472 = vmatpush.bf16.msra.mxu0 %v4035
    %5473 = vmatpush.bf16.msra.mxu0 %v4031
    %5474 = vmatpush.bf16.msra.mxu0 %v4027
    %5475 = vmatmul.bf16.gmra.mxu0 %v4828
    %v5476 = vpop.f32.mrf.mxu0
    %v5477 = vadd.f32 %v5464, %v5476
    %v5478 = vpop.f32.mrf.mxu0
    %5479 = vdwg.mxu0
    %5480 = vmatpush.bf16.msra.mxu0 %v3288
    %5481 = vmatpush.bf16.msra.mxu0 %v3284
    %5482 = vmatpush.bf16.msra.mxu0 %v3280
    %5483 = vmatpush.bf16.msra.mxu0 %v3276
    %5484 = vmatpush.bf16.msra.mxu0 %v3272
    %5485 = vmatpush.bf16.msra.mxu0 %v3268
    %5486 = vmatpush.bf16.msra.mxu0 %v3264
    %5487 = vmatpush.bf16.msra.mxu0 %v3260
    %5488 = vmatmul.bf16.gmra.mxu0 %v97
    %v5489 = vpop.f32.mrf.mxu0
    %v5490 = vadd.f32 0.0, %v5489
    %v5491 = vpop.f32.mrf.mxu0
    %5492 = vdwg.mxu0
    %5493 = vmatpush.bf16.msra.mxu0 %v3320
    %5494 = vmatpush.bf16.msra.mxu0 %v3316
    %5495 = vmatpush.bf16.msra.mxu0 %v3312
    %5496 = vmatpush.bf16.msra.mxu0 %v3308
    %5497 = vmatpush.bf16.msra.mxu0 %v3304
    %5498 = vmatpush.bf16.msra.mxu0 %v3300
    %5499 = vmatpush.bf16.msra.mxu0 %v3296
    %5500 = vmatpush.bf16.msra.mxu0 %v3292
    %5501 = vmatmul.bf16.gmra.mxu0 %v98
    %v5502 = vpop.f32.mrf.mxu0
    %v5503 = vadd.f32 %v5490, %v5502
    %v5504 = vpop.f32.mrf.mxu0
    %5505 = vdwg.mxu0
    %5506 = vmatpush.bf16.msra.mxu0 %v3352
    %5507 = vmatpush.bf16.msra.mxu0 %v3348
    %5508 = vmatpush.bf16.msra.mxu0 %v3344
    %5509 = vmatpush.bf16.msra.mxu0 %v3340
    %5510 = vmatpush.bf16.msra.mxu0 %v3336
    %5511 = vmatpush.bf16.msra.mxu0 %v3332
    %5512 = vmatpush.bf16.msra.mxu0 %v3328
    %5513 = vmatpush.bf16.msra.mxu0 %v3324
    %5514 = vmatmul.bf16.gmra.mxu0 %v99
    %v5515 = vpop.f32.mrf.mxu0
    %v5516 = vadd.f32 %v5503, %v5515
    %v5517 = vpop.f32.mrf.mxu0
    %5518 = vdwg.mxu0
    %5519 = vmatpush.bf16.msra.mxu0 %v3384
    %5520 = vmatpush.bf16.msra.mxu0 %v3380
    %5521 = vmatpush.bf16.msra.mxu0 %v3376
    %5522 = vmatpush.bf16.msra.mxu0 %v3372
    %5523 = vmatpush.bf16.msra.mxu0 %v3368
    %5524 = vmatpush.bf16.msra.mxu0 %v3364
    %5525 = vmatpush.bf16.msra.mxu0 %v3360
    %5526 = vmatpush.bf16.msra.mxu0 %v3356
    %5527 = vmatmul.bf16.gmra.mxu0 %v100
    %v5528 = vpop.f32.mrf.mxu0
    %v5529 = vadd.f32 %v5516, %v5528
    %v5530 = vpop.f32.mrf.mxu0
    %5531 = vdwg.mxu0
    %5532 = vmatpush.bf16.msra.mxu0 %v3416
    %5533 = vmatpush.bf16.msra.mxu0 %v3412
    %5534 = vmatpush.bf16.msra.mxu0 %v3408
    %5535 = vmatpush.bf16.msra.mxu0 %v3404
    %5536 = vmatpush.bf16.msra.mxu0 %v3400
    %5537 = vmatpush.bf16.msra.mxu0 %v3396
    %5538 = vmatpush.bf16.msra.mxu0 %v3392
    %5539 = vmatpush.bf16.msra.mxu0 %v3388
    %5540 = vmatmul.bf16.gmra.mxu0 %v101
    %v5541 = vpop.f32.mrf.mxu0
    %v5542 = vadd.f32 %v5529, %v5541
    %v5543 = vpop.f32.mrf.mxu0
    %5544 = vdwg.mxu0
    %5545 = vmatpush.bf16.msra.mxu0 %v3448
    %5546 = vmatpush.bf16.msra.mxu0 %v3444
    %5547 = vmatpush.bf16.msra.mxu0 %v3440
    %5548 = vmatpush.bf16.msra.mxu0 %v3436
    %5549 = vmatpush.bf16.msra.mxu0 %v3432
    %5550 = vmatpush.bf16.msra.mxu0 %v3428
    %5551 = vmatpush.bf16.msra.mxu0 %v3424
    %5552 = vmatpush.bf16.msra.mxu0 %v3420
    %5553 = vmatmul.bf16.gmra.mxu0 %v102
    %v5554 = vpop.f32.mrf.mxu0
    %v5555 = vadd.f32 %v5542, %v5554
    %v5556 = vpop.f32.mrf.mxu0
    %5557 = vdwg.mxu0
    %5558 = vmatpush.bf16.msra.mxu0 %v3480
    %5559 = vmatpush.bf16.msra.mxu0 %v3476
    %5560 = vmatpush.bf16.msra.mxu0 %v3472
    %5561 = vmatpush.bf16.msra.mxu0 %v3468
    %5562 = vmatpush.bf16.msra.mxu0 %v3464
    %5563 = vmatpush.bf16.msra.mxu0 %v3460
    %5564 = vmatpush.bf16.msra.mxu0 %v3456
    %5565 = vmatpush.bf16.msra.mxu0 %v3452
    %5566 = vmatmul.bf16.gmra.mxu0 %v103
    %v5567 = vpop.f32.mrf.mxu0
    %v5568 = vadd.f32 %v5555, %v5567
    %v5569 = vpop.f32.mrf.mxu0
    %5570 = vdwg.mxu0
    %5571 = vmatpush.bf16.msra.mxu0 %v3512
    %5572 = vmatpush.bf16.msra.mxu0 %v3508
    %5573 = vmatpush.bf16.msra.mxu0 %v3504
    %5574 = vmatpush.bf16.msra.mxu0 %v3500
    %5575 = vmatpush.bf16.msra.mxu0 %v3496
    %5576 = vmatpush.bf16.msra.mxu0 %v3492
    %5577 = vmatpush.bf16.msra.mxu0 %v3488
    %5578 = vmatpush.bf16.msra.mxu0 %v3484
    %5579 = vmatmul.bf16.gmra.mxu0 %v104
    %v5580 = vpop.f32.mrf.mxu0
    %v5581 = vadd.f32 %v5568, %v5580
    %v5582 = vpop.f32.mrf.mxu0
    %5583 = vdwg.mxu0
    %5584 = vmatpush.bf16.msra.mxu0 %v3544
    %5585 = vmatpush.bf16.msra.mxu0 %v3540
    %5586 = vmatpush.bf16.msra.mxu0 %v3536
    %5587 = vmatpush.bf16.msra.mxu0 %v3532
    %5588 = vmatpush.bf16.msra.mxu0 %v3528
    %5589 = vmatpush.bf16.msra.mxu0 %v3524
    %5590 = vmatpush.bf16.msra.mxu0 %v3520
    %5591 = vmatpush.bf16.msra.mxu0 %v3516
    %5592 = vmatmul.bf16.gmra.mxu0 %v105
    %v5593 = vpop.f32.mrf.mxu0
    %v5594 = vadd.f32 %v5581, %v5593
    %v5595 = vpop.f32.mrf.mxu0
    %5596 = vdwg.mxu0
    %5597 = vmatpush.bf16.msra.mxu0 %v3576
    %5598 = vmatpush.bf16.msra.mxu0 %v3572
    %5599 = vmatpush.bf16.msra.mxu0 %v3568
    %5600 = vmatpush.bf16.msra.mxu0 %v3564
    %5601 = vmatpush.bf16.msra.mxu0 %v3560
    %5602 = vmatpush.bf16.msra.mxu0 %v3556
    %5603 = vmatpush.bf16.msra.mxu0 %v3552
    %5604 = vmatpush.bf16.msra.mxu0 %v3548
    %5605 = vmatmul.bf16.gmra.mxu0 %v106
    %v5606 = vpop.f32.mrf.mxu0
    %v5607 = vadd.f32 %v5594, %v5606
    %v5608 = vpop.f32.mrf.mxu0
    %5609 = vdwg.mxu0
    %5610 = vmatpush.bf16.msra.mxu0 %v3608
    %5611 = vmatpush.bf16.msra.mxu0 %v3604
    %5612 = vmatpush.bf16.msra.mxu0 %v3600
    %5613 = vmatpush.bf16.msra.mxu0 %v3596
    %5614 = vmatpush.bf16.msra.mxu0 %v3592
    %5615 = vmatpush.bf16.msra.mxu0 %v3588
    %5616 = vmatpush.bf16.msra.mxu0 %v3584
    %5617 = vmatpush.bf16.msra.mxu0 %v3580
    %5618 = vmatmul.bf16.gmra.mxu0 %v107
    %v5619 = vpop.f32.mrf.mxu0
    %v5620 = vadd.f32 %v5607, %v5619
    %v5621 = vpop.f32.mrf.mxu0
    %5622 = vdwg.mxu0
    %5623 = vmatpush.bf16.msra.mxu0 %v3640
    %5624 = vmatpush.bf16.msra.mxu0 %v3636
    %5625 = vmatpush.bf16.msra.mxu0 %v3632
    %5626 = vmatpush.bf16.msra.mxu0 %v3628
    %5627 = vmatpush.bf16.msra.mxu0 %v3624
    %5628 = vmatpush.bf16.msra.mxu0 %v3620
    %5629 = vmatpush.bf16.msra.mxu0 %v3616
    %5630 = vmatpush.bf16.msra.mxu0 %v3612
    %5631 = vmatmul.bf16.gmra.mxu0 %v108
    %v5632 = vpop.f32.mrf.mxu0
    %v5633 = vadd.f32 %v5620, %v5632
    %v5634 = vpop.f32.mrf.mxu0
    %5635 = vdwg.mxu0
    %5636 = vmatpush.bf16.msra.mxu0 %v3672
    %5637 = vmatpush.bf16.msra.mxu0 %v3668
    %5638 = vmatpush.bf16.msra.mxu0 %v3664
    %5639 = vmatpush.bf16.msra.mxu0 %v3660
    %5640 = vmatpush.bf16.msra.mxu0 %v3656
    %5641 = vmatpush.bf16.msra.mxu0 %v3652
    %5642 = vmatpush.bf16.msra.mxu0 %v3648
    %5643 = vmatpush.bf16.msra.mxu0 %v3644
    %5644 = vmatmul.bf16.gmra.mxu0 %v109
    %v5645 = vpop.f32.mrf.mxu0
    %v5646 = vadd.f32 %v5633, %v5645
    %v5647 = vpop.f32.mrf.mxu0
    %5648 = vdwg.mxu0
    %5649 = vmatpush.bf16.msra.mxu0 %v3704
    %5650 = vmatpush.bf16.msra.mxu0 %v3700
    %5651 = vmatpush.bf16.msra.mxu0 %v3696
    %5652 = vmatpush.bf16.msra.mxu0 %v3692
    %5653 = vmatpush.bf16.msra.mxu0 %v3688
    %5654 = vmatpush.bf16.msra.mxu0 %v3684
    %5655 = vmatpush.bf16.msra.mxu0 %v3680
    %5656 = vmatpush.bf16.msra.mxu0 %v3676
    %5657 = vmatmul.bf16.gmra.mxu0 %v110
    %v5658 = vpop.f32.mrf.mxu0
    %v5659 = vadd.f32 %v5646, %v5658
    %v5660 = vpop.f32.mrf.mxu0
    %5661 = vdwg.mxu0
    %5662 = vmatpush.bf16.msra.mxu0 %v3736
    %5663 = vmatpush.bf16.msra.mxu0 %v3732
    %5664 = vmatpush.bf16.msra.mxu0 %v3728
    %5665 = vmatpush.bf16.msra.mxu0 %v3724
    %5666 = vmatpush.bf16.msra.mxu0 %v3720
    %5667 = vmatpush.bf16.msra.mxu0 %v3716
    %5668 = vmatpush.bf16.msra.mxu0 %v3712
    %5669 = vmatpush.bf16.msra.mxu0 %v3708
    %5670 = vmatmul.bf16.gmra.mxu0 %v111
    %v5671 = vpop.f32.mrf.mxu0
    %v5672 = vadd.f32 %v5659, %v5671
    %v5673 = vpop.f32.mrf.mxu0
    %5674 = vdwg.mxu0
    %5675 = vmatpush.bf16.msra.mxu0 %v3768
    %5676 = vmatpush.bf16.msra.mxu0 %v3764
    %5677 = vmatpush.bf16.msra.mxu0 %v3760
    %5678 = vmatpush.bf16.msra.mxu0 %v3756
    %5679 = vmatpush.bf16.msra.mxu0 %v3752
    %5680 = vmatpush.bf16.msra.mxu0 %v3748
    %5681 = vmatpush.bf16.msra.mxu0 %v3744
    %5682 = vmatpush.bf16.msra.mxu0 %v3740
    %5683 = vmatmul.bf16.gmra.mxu0 %v112
    %v5684 = vpop.f32.mrf.mxu0
    %v5685 = vadd.f32 %v5672, %v5684
    %v5686 = vpop.f32.mrf.mxu0
    %5687 = vdwg.mxu0
    %5688 = vmatpush.bf16.msra.mxu0 %v3800
    %5689 = vmatpush.bf16.msra.mxu0 %v3796
    %5690 = vmatpush.bf16.msra.mxu0 %v3792
    %5691 = vmatpush.bf16.msra.mxu0 %v3788
    %5692 = vmatpush.bf16.msra.mxu0 %v3784
    %5693 = vmatpush.bf16.msra.mxu0 %v3780
    %5694 = vmatpush.bf16.msra.mxu0 %v3776
    %5695 = vmatpush.bf16.msra.mxu0 %v3772
    %5696 = vmatmul.bf16.gmra.mxu0 %v113
    %v5697 = vpop.f32.mrf.mxu0
    %v5698 = vadd.f32 %v5685, %v5697
    %v5699 = vpop.f32.mrf.mxu0
    %5700 = vdwg.mxu0
    %5701 = vmatpush.bf16.msra.mxu0 %v3832
    %5702 = vmatpush.bf16.msra.mxu0 %v3828
    %5703 = vmatpush.bf16.msra.mxu0 %v3824
    %5704 = vmatpush.bf16.msra.mxu0 %v3820
    %5705 = vmatpush.bf16.msra.mxu0 %v3816
    %5706 = vmatpush.bf16.msra.mxu0 %v3812
    %5707 = vmatpush.bf16.msra.mxu0 %v3808
    %5708 = vmatpush.bf16.msra.mxu0 %v3804
    %5709 = vmatmul.bf16.gmra.mxu0 %v114
    %v5710 = vpop.f32.mrf.mxu0
    %v5711 = vadd.f32 %v5698, %v5710
    %v5712 = vpop.f32.mrf.mxu0
    %5713 = vdwg.mxu0
    %5714 = vmatpush.bf16.msra.mxu0 %v3864
    %5715 = vmatpush.bf16.msra.mxu0 %v3860
    %5716 = vmatpush.bf16.msra.mxu0 %v3856
    %5717 = vmatpush.bf16.msra.mxu0 %v3852
    %5718 = vmatpush.bf16.msra.mxu0 %v3848
    %5719 = vmatpush.bf16.msra.mxu0 %v3844
    %5720 = vmatpush.bf16.msra.mxu0 %v3840
    %5721 = vmatpush.bf16.msra.mxu0 %v3836
    %5722 = vmatmul.bf16.gmra.mxu0 %v115
    %v5723 = vpop.f32.mrf.mxu0
    %v5724 = vadd.f32 %v5711, %v5723
    %v5725 = vpop.f32.mrf.mxu0
    %5726 = vdwg.mxu0
    %5727 = vmatpush.bf16.msra.mxu0 %v3896
    %5728 = vmatpush.bf16.msra.mxu0 %v3892
    %5729 = vmatpush.bf16.msra.mxu0 %v3888
    %5730 = vmatpush.bf16.msra.mxu0 %v3884
    %5731 = vmatpush.bf16.msra.mxu0 %v3880
    %5732 = vmatpush.bf16.msra.mxu0 %v3876
    %5733 = vmatpush.bf16.msra.mxu0 %v3872
    %5734 = vmatpush.bf16.msra.mxu0 %v3868
    %5735 = vmatmul.bf16.gmra.mxu0 %v116
    %v5736 = vpop.f32.mrf.mxu0
    %v5737 = vadd.f32 %v5724, %v5736
    %v5738 = vpop.f32.mrf.mxu0
    %5739 = vdwg.mxu0
    %5740 = vmatpush.bf16.msra.mxu0 %v3928
    %5741 = vmatpush.bf16.msra.mxu0 %v3924
    %5742 = vmatpush.bf16.msra.mxu0 %v3920
    %5743 = vmatpush.bf16.msra.mxu0 %v3916
    %5744 = vmatpush.bf16.msra.mxu0 %v3912
    %5745 = vmatpush.bf16.msra.mxu0 %v3908
    %5746 = vmatpush.bf16.msra.mxu0 %v3904
    %5747 = vmatpush.bf16.msra.mxu0 %v3900
    %5748 = vmatmul.bf16.gmra.mxu0 %v117
    %v5749 = vpop.f32.mrf.mxu0
    %v5750 = vadd.f32 %v5737, %v5749
    %v5751 = vpop.f32.mrf.mxu0
    %5752 = vdwg.mxu0
    %5753 = vmatpush.bf16.msra.mxu0 %v3960
    %5754 = vmatpush.bf16.msra.mxu0 %v3956
    %5755 = vmatpush.bf16.msra.mxu0 %v3952
    %5756 = vmatpush.bf16.msra.mxu0 %v3948
    %5757 = vmatpush.bf16.msra.mxu0 %v3944
    %5758 = vmatpush.bf16.msra.mxu0 %v3940
    %5759 = vmatpush.bf16.msra.mxu0 %v3936
    %5760 = vmatpush.bf16.msra.mxu0 %v3932
    %5761 = vmatmul.bf16.gmra.mxu0 %v118
    %v5762 = vpop.f32.mrf.mxu0
    %v5763 = vadd.f32 %v5750, %v5762
    %v5764 = vpop.f32.mrf.mxu0
    %5765 = vdwg.mxu0
    %5766 = vmatpush.bf16.msra.mxu0 %v3992
    %5767 = vmatpush.bf16.msra.mxu0 %v3988
    %5768 = vmatpush.bf16.msra.mxu0 %v3984
    %5769 = vmatpush.bf16.msra.mxu0 %v3980
    %5770 = vmatpush.bf16.msra.mxu0 %v3976
    %5771 = vmatpush.bf16.msra.mxu0 %v3972
    %5772 = vmatpush.bf16.msra.mxu0 %v3968
    %5773 = vmatpush.bf16.msra.mxu0 %v3964
    %5774 = vmatmul.bf16.gmra.mxu0 %v119
    %v5775 = vpop.f32.mrf.mxu0
    %v5776 = vadd.f32 %v5763, %v5775
    %v5777 = vpop.f32.mrf.mxu0
    %5778 = vdwg.mxu0
    %5779 = vmatpush.bf16.msra.mxu0 %v4024
    %5780 = vmatpush.bf16.msra.mxu0 %v4020
    %5781 = vmatpush.bf16.msra.mxu0 %v4016
    %5782 = vmatpush.bf16.msra.mxu0 %v4012
    %5783 = vmatpush.bf16.msra.mxu0 %v4008
    %5784 = vmatpush.bf16.msra.mxu0 %v4004
    %5785 = vmatpush.bf16.msra.mxu0 %v4000
    %5786 = vmatpush.bf16.msra.mxu0 %v3996
    %5787 = vmatmul.bf16.gmra.mxu0 %v120
    %v5788 = vpop.f32.mrf.mxu0
    %v5789 = vadd.f32 %v5776, %v5788
    %v5790 = vpop.f32.mrf.mxu0
    %5791 = vdwg.mxu0
    %5792 = vmatpush.bf16.msra.mxu0 0
    %5793 = vmatpush.bf16.msra.mxu0 0
    %5794 = vmatpush.bf16.msra.mxu0 0
    %5795 = vmatpush.bf16.msra.mxu0 0
    %5796 = vmatpush.bf16.msra.mxu0 %v4040
    %5797 = vmatpush.bf16.msra.mxu0 %v4036
    %5798 = vmatpush.bf16.msra.mxu0 %v4032
    %5799 = vmatpush.bf16.msra.mxu0 %v4028
    %5800 = vmatmul.bf16.gmra.mxu0 %v4828
    %v5801 = vpop.f32.mrf.mxu0
    %v5802 = vadd.f32 %v5789, %v5801
    %v5803 = vpop.f32.mrf.mxu0
    %5804 = vdwg.mxu0
    %5805 = vmatpush.bf16.msra.mxu0 %v3289
    %5806 = vmatpush.bf16.msra.mxu0 %v3285
    %5807 = vmatpush.bf16.msra.mxu0 %v3281
    %5808 = vmatpush.bf16.msra.mxu0 %v3277
    %5809 = vmatpush.bf16.msra.mxu0 %v3273
    %5810 = vmatpush.bf16.msra.mxu0 %v3269
    %5811 = vmatpush.bf16.msra.mxu0 %v3265
    %5812 = vmatpush.bf16.msra.mxu0 %v3261
    %5813 = vmatmul.bf16.gmra.mxu0 %v97
    %v5814 = vpop.f32.mrf.mxu0
    %v5815 = vadd.f32 0.0, %v5814
    %v5816 = vpop.f32.mrf.mxu0
    %5817 = vdwg.mxu0
    %5818 = vmatpush.bf16.msra.mxu0 %v3321
    %5819 = vmatpush.bf16.msra.mxu0 %v3317
    %5820 = vmatpush.bf16.msra.mxu0 %v3313
    %5821 = vmatpush.bf16.msra.mxu0 %v3309
    %5822 = vmatpush.bf16.msra.mxu0 %v3305
    %5823 = vmatpush.bf16.msra.mxu0 %v3301
    %5824 = vmatpush.bf16.msra.mxu0 %v3297
    %5825 = vmatpush.bf16.msra.mxu0 %v3293
    %5826 = vmatmul.bf16.gmra.mxu0 %v98
    %v5827 = vpop.f32.mrf.mxu0
    %v5828 = vadd.f32 %v5815, %v5827
    %v5829 = vpop.f32.mrf.mxu0
    %5830 = vdwg.mxu0
    %5831 = vmatpush.bf16.msra.mxu0 %v3353
    %5832 = vmatpush.bf16.msra.mxu0 %v3349
    %5833 = vmatpush.bf16.msra.mxu0 %v3345
    %5834 = vmatpush.bf16.msra.mxu0 %v3341
    %5835 = vmatpush.bf16.msra.mxu0 %v3337
    %5836 = vmatpush.bf16.msra.mxu0 %v3333
    %5837 = vmatpush.bf16.msra.mxu0 %v3329
    %5838 = vmatpush.bf16.msra.mxu0 %v3325
    %5839 = vmatmul.bf16.gmra.mxu0 %v99
    %v5840 = vpop.f32.mrf.mxu0
    %v5841 = vadd.f32 %v5828, %v5840
    %v5842 = vpop.f32.mrf.mxu0
    %5843 = vdwg.mxu0
    %5844 = vmatpush.bf16.msra.mxu0 %v3385
    %5845 = vmatpush.bf16.msra.mxu0 %v3381
    %5846 = vmatpush.bf16.msra.mxu0 %v3377
    %5847 = vmatpush.bf16.msra.mxu0 %v3373
    %5848 = vmatpush.bf16.msra.mxu0 %v3369
    %5849 = vmatpush.bf16.msra.mxu0 %v3365
    %5850 = vmatpush.bf16.msra.mxu0 %v3361
    %5851 = vmatpush.bf16.msra.mxu0 %v3357
    %5852 = vmatmul.bf16.gmra.mxu0 %v100
    %v5853 = vpop.f32.mrf.mxu0
    %v5854 = vadd.f32 %v5841, %v5853
    %v5855 = vpop.f32.mrf.mxu0
    %5856 = vdwg.mxu0
    %5857 = vmatpush.bf16.msra.mxu0 %v3417
    %5858 = vmatpush.bf16.msra.mxu0 %v3413
    %5859 = vmatpush.bf16.msra.mxu0 %v3409
    %5860 = vmatpush.bf16.msra.mxu0 %v3405
    %5861 = vmatpush.bf16.msra.mxu0 %v3401
    %5862 = vmatpush.bf16.msra.mxu0 %v3397
    %5863 = vmatpush.bf16.msra.mxu0 %v3393
    %5864 = vmatpush.bf16.msra.mxu0 %v3389
    %5865 = vmatmul.bf16.gmra.mxu0 %v101
    %v5866 = vpop.f32.mrf.mxu0
    %v5867 = vadd.f32 %v5854, %v5866
    %v5868 = vpop.f32.mrf.mxu0
    %5869 = vdwg.mxu0
    %5870 = vmatpush.bf16.msra.mxu0 %v3449
    %5871 = vmatpush.bf16.msra.mxu0 %v3445
    %5872 = vmatpush.bf16.msra.mxu0 %v3441
    %5873 = vmatpush.bf16.msra.mxu0 %v3437
    %5874 = vmatpush.bf16.msra.mxu0 %v3433
    %5875 = vmatpush.bf16.msra.mxu0 %v3429
    %5876 = vmatpush.bf16.msra.mxu0 %v3425
    %5877 = vmatpush.bf16.msra.mxu0 %v3421
    %5878 = vmatmul.bf16.gmra.mxu0 %v102
    %v5879 = vpop.f32.mrf.mxu0
    %v5880 = vadd.f32 %v5867, %v5879
    %v5881 = vpop.f32.mrf.mxu0
    %5882 = vdwg.mxu0
    %5883 = vmatpush.bf16.msra.mxu0 %v3481
    %5884 = vmatpush.bf16.msra.mxu0 %v3477
    %5885 = vmatpush.bf16.msra.mxu0 %v3473
    %5886 = vmatpush.bf16.msra.mxu0 %v3469
    %5887 = vmatpush.bf16.msra.mxu0 %v3465
    %5888 = vmatpush.bf16.msra.mxu0 %v3461
    %5889 = vmatpush.bf16.msra.mxu0 %v3457
    %5890 = vmatpush.bf16.msra.mxu0 %v3453
    %5891 = vmatmul.bf16.gmra.mxu0 %v103
    %v5892 = vpop.f32.mrf.mxu0
    %v5893 = vadd.f32 %v5880, %v5892
    %v5894 = vpop.f32.mrf.mxu0
    %5895 = vdwg.mxu0
    %5896 = vmatpush.bf16.msra.mxu0 %v3513
    %5897 = vmatpush.bf16.msra.mxu0 %v3509
    %5898 = vmatpush.bf16.msra.mxu0 %v3505
    %5899 = vmatpush.bf16.msra.mxu0 %v3501
    %5900 = vmatpush.bf16.msra.mxu0 %v3497
    %5901 = vmatpush.bf16.msra.mxu0 %v3493
    %5902 = vmatpush.bf16.msra.mxu0 %v3489
    %5903 = vmatpush.bf16.msra.mxu0 %v3485
    %5904 = vmatmul.bf16.gmra.mxu0 %v104
    %v5905 = vpop.f32.mrf.mxu0
    %v5906 = vadd.f32 %v5893, %v5905
    %v5907 = vpop.f32.mrf.mxu0
    %5908 = vdwg.mxu0
    %5909 = vmatpush.bf16.msra.mxu0 %v3545
    %5910 = vmatpush.bf16.msra.mxu0 %v3541
    %5911 = vmatpush.bf16.msra.mxu0 %v3537
    %5912 = vmatpush.bf16.msra.mxu0 %v3533
    %5913 = vmatpush.bf16.msra.mxu0 %v3529
    %5914 = vmatpush.bf16.msra.mxu0 %v3525
    %5915 = vmatpush.bf16.msra.mxu0 %v3521
    %5916 = vmatpush.bf16.msra.mxu0 %v3517
    %5917 = vmatmul.bf16.gmra.mxu0 %v105
    %v5918 = vpop.f32.mrf.mxu0
    %v5919 = vadd.f32 %v5906, %v5918
    %v5920 = vpop.f32.mrf.mxu0
    %5921 = vdwg.mxu0
    %5922 = vmatpush.bf16.msra.mxu0 %v3577
    %5923 = vmatpush.bf16.msra.mxu0 %v3573
    %5924 = vmatpush.bf16.msra.mxu0 %v3569
    %5925 = vmatpush.bf16.msra.mxu0 %v3565
    %5926 = vmatpush.bf16.msra.mxu0 %v3561
    %5927 = vmatpush.bf16.msra.mxu0 %v3557
    %5928 = vmatpush.bf16.msra.mxu0 %v3553
    %5929 = vmatpush.bf16.msra.mxu0 %v3549
    %5930 = vmatmul.bf16.gmra.mxu0 %v106
    %v5931 = vpop.f32.mrf.mxu0
    %v5932 = vadd.f32 %v5919, %v5931
    %v5933 = vpop.f32.mrf.mxu0
    %5934 = vdwg.mxu0
    %5935 = vmatpush.bf16.msra.mxu0 %v3609
    %5936 = vmatpush.bf16.msra.mxu0 %v3605
    %5937 = vmatpush.bf16.msra.mxu0 %v3601
    %5938 = vmatpush.bf16.msra.mxu0 %v3597
    %5939 = vmatpush.bf16.msra.mxu0 %v3593
    %5940 = vmatpush.bf16.msra.mxu0 %v3589
    %5941 = vmatpush.bf16.msra.mxu0 %v3585
    %5942 = vmatpush.bf16.msra.mxu0 %v3581
    %5943 = vmatmul.bf16.gmra.mxu0 %v107
    %v5944 = vpop.f32.mrf.mxu0
    %v5945 = vadd.f32 %v5932, %v5944
    %v5946 = vpop.f32.mrf.mxu0
    %5947 = vdwg.mxu0
    %5948 = vmatpush.bf16.msra.mxu0 %v3641
    %5949 = vmatpush.bf16.msra.mxu0 %v3637
    %5950 = vmatpush.bf16.msra.mxu0 %v3633
    %5951 = vmatpush.bf16.msra.mxu0 %v3629
    %5952 = vmatpush.bf16.msra.mxu0 %v3625
    %5953 = vmatpush.bf16.msra.mxu0 %v3621
    %5954 = vmatpush.bf16.msra.mxu0 %v3617
    %5955 = vmatpush.bf16.msra.mxu0 %v3613
    %5956 = vmatmul.bf16.gmra.mxu0 %v108
    %v5957 = vpop.f32.mrf.mxu0
    %v5958 = vadd.f32 %v5945, %v5957
    %v5959 = vpop.f32.mrf.mxu0
    %5960 = vdwg.mxu0
    %5961 = vmatpush.bf16.msra.mxu0 %v3673
    %5962 = vmatpush.bf16.msra.mxu0 %v3669
    %5963 = vmatpush.bf16.msra.mxu0 %v3665
    %5964 = vmatpush.bf16.msra.mxu0 %v3661
    %5965 = vmatpush.bf16.msra.mxu0 %v3657
    %5966 = vmatpush.bf16.msra.mxu0 %v3653
    %5967 = vmatpush.bf16.msra.mxu0 %v3649
    %5968 = vmatpush.bf16.msra.mxu0 %v3645
    %5969 = vmatmul.bf16.gmra.mxu0 %v109
    %v5970 = vpop.f32.mrf.mxu0
    %v5971 = vadd.f32 %v5958, %v5970
    %v5972 = vpop.f32.mrf.mxu0
    %5973 = vdwg.mxu0
    %5974 = vmatpush.bf16.msra.mxu0 %v3705
    %5975 = vmatpush.bf16.msra.mxu0 %v3701
    %5976 = vmatpush.bf16.msra.mxu0 %v3697
    %5977 = vmatpush.bf16.msra.mxu0 %v3693
    %5978 = vmatpush.bf16.msra.mxu0 %v3689
    %5979 = vmatpush.bf16.msra.mxu0 %v3685
    %5980 = vmatpush.bf16.msra.mxu0 %v3681
    %5981 = vmatpush.bf16.msra.mxu0 %v3677
    %5982 = vmatmul.bf16.gmra.mxu0 %v110
    %v5983 = vpop.f32.mrf.mxu0
    %v5984 = vadd.f32 %v5971, %v5983
    %v5985 = vpop.f32.mrf.mxu0
    %5986 = vdwg.mxu0
    %5987 = vmatpush.bf16.msra.mxu0 %v3737
    %5988 = vmatpush.bf16.msra.mxu0 %v3733
    %5989 = vmatpush.bf16.msra.mxu0 %v3729
    %5990 = vmatpush.bf16.msra.mxu0 %v3725
    %5991 = vmatpush.bf16.msra.mxu0 %v3721
    %5992 = vmatpush.bf16.msra.mxu0 %v3717
    %5993 = vmatpush.bf16.msra.mxu0 %v3713
    %5994 = vmatpush.bf16.msra.mxu0 %v3709
    %5995 = vmatmul.bf16.gmra.mxu0 %v111
    %v5996 = vpop.f32.mrf.mxu0
    %v5997 = vadd.f32 %v5984, %v5996
    %v5998 = vpop.f32.mrf.mxu0
    %5999 = vdwg.mxu0
    %6000 = vmatpush.bf16.msra.mxu0 %v3769
    %6001 = vmatpush.bf16.msra.mxu0 %v3765
    %6002 = vmatpush.bf16.msra.mxu0 %v3761
    %6003 = vmatpush.bf16.msra.mxu0 %v3757
    %6004 = vmatpush.bf16.msra.mxu0 %v3753
    %6005 = vmatpush.bf16.msra.mxu0 %v3749
    %6006 = vmatpush.bf16.msra.mxu0 %v3745
    %6007 = vmatpush.bf16.msra.mxu0 %v3741
    %6008 = vmatmul.bf16.gmra.mxu0 %v112
    %v6009 = vpop.f32.mrf.mxu0
    %v6010 = vadd.f32 %v5997, %v6009
    %v6011 = vpop.f32.mrf.mxu0
    %6012 = vdwg.mxu0
    %6013 = vmatpush.bf16.msra.mxu0 %v3801
    %6014 = vmatpush.bf16.msra.mxu0 %v3797
    %6015 = vmatpush.bf16.msra.mxu0 %v3793
    %6016 = vmatpush.bf16.msra.mxu0 %v3789
    %6017 = vmatpush.bf16.msra.mxu0 %v3785
    %6018 = vmatpush.bf16.msra.mxu0 %v3781
    %6019 = vmatpush.bf16.msra.mxu0 %v3777
    %6020 = vmatpush.bf16.msra.mxu0 %v3773
    %6021 = vmatmul.bf16.gmra.mxu0 %v113
    %v6022 = vpop.f32.mrf.mxu0
    %v6023 = vadd.f32 %v6010, %v6022
    %v6024 = vpop.f32.mrf.mxu0
    %6025 = vdwg.mxu0
    %6026 = vmatpush.bf16.msra.mxu0 %v3833
    %6027 = vmatpush.bf16.msra.mxu0 %v3829
    %6028 = vmatpush.bf16.msra.mxu0 %v3825
    %6029 = vmatpush.bf16.msra.mxu0 %v3821
    %6030 = vmatpush.bf16.msra.mxu0 %v3817
    %6031 = vmatpush.bf16.msra.mxu0 %v3813
    %6032 = vmatpush.bf16.msra.mxu0 %v3809
    %6033 = vmatpush.bf16.msra.mxu0 %v3805
    %6034 = vmatmul.bf16.gmra.mxu0 %v114
    %v6035 = vpop.f32.mrf.mxu0
    %v6036 = vadd.f32 %v6023, %v6035
    %v6037 = vpop.f32.mrf.mxu0
    %6038 = vdwg.mxu0
    %6039 = vmatpush.bf16.msra.mxu0 %v3865
    %6040 = vmatpush.bf16.msra.mxu0 %v3861
    %6041 = vmatpush.bf16.msra.mxu0 %v3857
    %6042 = vmatpush.bf16.msra.mxu0 %v3853
    %6043 = vmatpush.bf16.msra.mxu0 %v3849
    %6044 = vmatpush.bf16.msra.mxu0 %v3845
    %6045 = vmatpush.bf16.msra.mxu0 %v3841
    %6046 = vmatpush.bf16.msra.mxu0 %v3837
    %6047 = vmatmul.bf16.gmra.mxu0 %v115
    %v6048 = vpop.f32.mrf.mxu0
    %v6049 = vadd.f32 %v6036, %v6048
    %v6050 = vpop.f32.mrf.mxu0
    %6051 = vdwg.mxu0
    %6052 = vmatpush.bf16.msra.mxu0 %v3897
    %6053 = vmatpush.bf16.msra.mxu0 %v3893
    %6054 = vmatpush.bf16.msra.mxu0 %v3889
    %6055 = vmatpush.bf16.msra.mxu0 %v3885
    %6056 = vmatpush.bf16.msra.mxu0 %v3881
    %6057 = vmatpush.bf16.msra.mxu0 %v3877
    %6058 = vmatpush.bf16.msra.mxu0 %v3873
    %6059 = vmatpush.bf16.msra.mxu0 %v3869
    %6060 = vmatmul.bf16.gmra.mxu0 %v116
    %v6061 = vpop.f32.mrf.mxu0
    %v6062 = vadd.f32 %v6049, %v6061
    %v6063 = vpop.f32.mrf.mxu0
    %6064 = vdwg.mxu0
    %6065 = vmatpush.bf16.msra.mxu0 %v3929
    %6066 = vmatpush.bf16.msra.mxu0 %v3925
    %6067 = vmatpush.bf16.msra.mxu0 %v3921
    %6068 = vmatpush.bf16.msra.mxu0 %v3917
    %6069 = vmatpush.bf16.msra.mxu0 %v3913
    %6070 = vmatpush.bf16.msra.mxu0 %v3909
    %6071 = vmatpush.bf16.msra.mxu0 %v3905
    %6072 = vmatpush.bf16.msra.mxu0 %v3901
    %6073 = vmatmul.bf16.gmra.mxu0 %v117
    %v6074 = vpop.f32.mrf.mxu0
    %v6075 = vadd.f32 %v6062, %v6074
    %v6076 = vpop.f32.mrf.mxu0
    %6077 = vdwg.mxu0
    %6078 = vmatpush.bf16.msra.mxu0 %v3961
    %6079 = vmatpush.bf16.msra.mxu0 %v3957
    %6080 = vmatpush.bf16.msra.mxu0 %v3953
    %6081 = vmatpush.bf16.msra.mxu0 %v3949
    %6082 = vmatpush.bf16.msra.mxu0 %v3945
    %6083 = vmatpush.bf16.msra.mxu0 %v3941
    %6084 = vmatpush.bf16.msra.mxu0 %v3937
    %6085 = vmatpush.bf16.msra.mxu0 %v3933
    %6086 = vmatmul.bf16.gmra.mxu0 %v118
    %v6087 = vpop.f32.mrf.mxu0
    %v6088 = vadd.f32 %v6075, %v6087
    %v6089 = vpop.f32.mrf.mxu0
    %6090 = vdwg.mxu0
    %6091 = vmatpush.bf16.msra.mxu0 %v3993
    %6092 = vmatpush.bf16.msra.mxu0 %v3989
    %6093 = vmatpush.bf16.msra.mxu0 %v3985
    %6094 = vmatpush.bf16.msra.mxu0 %v3981
    %6095 = vmatpush.bf16.msra.mxu0 %v3977
    %6096 = vmatpush.bf16.msra.mxu0 %v3973
    %6097 = vmatpush.bf16.msra.mxu0 %v3969
    %6098 = vmatpush.bf16.msra.mxu0 %v3965
    %6099 = vmatmul.bf16.gmra.mxu0 %v119
    %v6100 = vpop.f32.mrf.mxu0
    %v6101 = vadd.f32 %v6088, %v6100
    %v6102 = vpop.f32.mrf.mxu0
    %6103 = vdwg.mxu0
    %6104 = vmatpush.bf16.msra.mxu0 %v4025
    %6105 = vmatpush.bf16.msra.mxu0 %v4021
    %6106 = vmatpush.bf16.msra.mxu0 %v4017
    %6107 = vmatpush.bf16.msra.mxu0 %v4013
    %6108 = vmatpush.bf16.msra.mxu0 %v4009
    %6109 = vmatpush.bf16.msra.mxu0 %v4005
    %6110 = vmatpush.bf16.msra.mxu0 %v4001
    %6111 = vmatpush.bf16.msra.mxu0 %v3997
    %6112 = vmatmul.bf16.gmra.mxu0 %v120
    %v6113 = vpop.f32.mrf.mxu0
    %v6114 = vadd.f32 %v6101, %v6113
    %v6115 = vpop.f32.mrf.mxu0
    %6116 = vdwg.mxu0
    %6117 = vmatpush.bf16.msra.mxu0 0
    %6118 = vmatpush.bf16.msra.mxu0 0
    %6119 = vmatpush.bf16.msra.mxu0 0
    %6120 = vmatpush.bf16.msra.mxu0 0
    %6121 = vmatpush.bf16.msra.mxu0 %v4041
    %6122 = vmatpush.bf16.msra.mxu0 %v4037
    %6123 = vmatpush.bf16.msra.mxu0 %v4033
    %6124 = vmatpush.bf16.msra.mxu0 %v4029
    %6125 = vmatmul.bf16.gmra.mxu0 %v4828
    %v6126 = vpop.f32.mrf.mxu0
    %v6127 = vadd.f32 %v6114, %v6126
    %v6128 = vpop.f32.mrf.mxu0
    %6129 = vdwg.mxu0
    %vm6130 = vcmp.gt.f32.partialorder %v5152, 0.1
    %vm6131 = vcmp.gt.f32.partialorder %v5477, 0.1
    %vm6132 = vcmp.gt.f32.partialorder %v5802, 0.1
    %vm6133 = vcmp.gt.f32.partialorder %v6127, 0.1
    %v6134 = vsel %vm6130, %v5152, 0.0
    %v6135 = vsel %vm6131, %v5477, 0.0
    %v6136 = vsel %vm6132, %v5802, 0.0
    %v6137 = vsel %vm6133, %v6127, 0.0
    %v6138 = vmul.f32 %v6134, %v6134
    %v6139 = vmul.f32 %v6135, %v6135
    %v6140 = vmul.f32 %v6136, %v6136
    %v6141 = vmul.f32 %v6137, %v6137
    %v6142 = vpack.c.bf16 %v6138, %v6138
    %v6143 = vpack.c.bf16 %v6139, %v6139
    %v6144 = vpack.c.bf16 %v6140, %v6140
    %v6145 = vpack.c.bf16 %v6141, %v6141
    %v6146 = vld [vmem:[%s2] sm:$0xf]
    %v6147 = vld [vmem:[%s2 + $0x4] sm:$0xf]
    %v6148 = vld [vmem:[%s2 + $0x8] sm:$0xf]
    %v6149 = vld [vmem:[%s2 + $0xc] sm:$0xf]
    %v6150 = vld [vmem:[%s2 + $0x10] sm:$0xf]
    %v6151 = vld [vmem:[%s2 + $0x14] sm:$0xf]
    %v6152 = vld [vmem:[%s2 + $0x18] sm:$0xf]
    %v6153 = vld [vmem:[%s2 + $0x1c] sm:$0xf]
    %v6154 = vld [vmem:[%s2 + $0x20] sm:$0xf]
    %v6155 = vld [vmem:[%s2 + $0x24] sm:$0xf]
    %v6156 = vld [vmem:[%s2 + $0x28] sm:$0xf]
    %v6157 = vld [vmem:[%s2 + $0x2c] sm:$0xf]
    %v6158 = vld [vmem:[%s2 + $0x30] sm:$0xf]
    %v6159 = vld [vmem:[%s2 + $0x34] sm:$0xf]
    %v6160 = vld [vmem:[%s2 + $0x38] sm:$0xf]
    %v6161 = vld [vmem:[%s2 + $0x3c] sm:$0xf]
    %v6162 = vld [vmem:[%s2 + $0x40] sm:$0xf]
    %v6163 = vld [vmem:[%s2 + $0x44] sm:$0xf]
    %v6164 = vld [vmem:[%s2 + $0x48] sm:$0xf]
    %v6165 = vld [vmem:[%s2 + $0x4c] sm:$0xf]
    %v6166 = vld [vmem:[%s2 + $0x50] sm:$0xf]
    %v6167 = vld [vmem:[%s2 + $0x54] sm:$0xf]
    %v6168 = vld [vmem:[%s2 + $0x58] sm:$0xf]
    %v6169 = vld [vmem:[%s2 + $0x5c] sm:$0xf]
    %v6170 = vld [vmem:[%s2 + $0x60] sm:$0xf]
    %v6171 = vld [vmem:[%s2 + $0x64] sm:$0xf]
    %v6172 = vld [vmem:[%s2 + $0x68] sm:$0xf]
    %v6173 = vld [vmem:[%s2 + $0x6c] sm:$0xf]
    %v6174 = vld [vmem:[%s2 + $0x70] sm:$0xf]
    %v6175 = vld [vmem:[%s2 + $0x74] sm:$0xf]
    %v6176 = vld [vmem:[%s2 + $0x78] sm:$0xf]
    %v6177 = vld [vmem:[%s2 + $0x7c] sm:$0xf]
    %v6178 = vld [vmem:[%s2 + $0x80] sm:$0xf]
    %v6179 = vld [vmem:[%s2 + $0x84] sm:$0xf]
    %v6180 = vld [vmem:[%s2 + $0x88] sm:$0xf]
    %v6181 = vld [vmem:[%s2 + $0x8c] sm:$0xf]
    %v6182 = vld [vmem:[%s2 + $0x90] sm:$0xf]
    %v6183 = vld [vmem:[%s2 + $0x94] sm:$0xf]
    %v6184 = vld [vmem:[%s2 + $0x98] sm:$0xf]
    %v6185 = vld [vmem:[%s2 + $0x9c] sm:$0xf]
    %v6186 = vld [vmem:[%s2 + $0xa0] sm:$0xf]
    %v6187 = vld [vmem:[%s2 + $0xa4] sm:$0xf]
    %v6188 = vld [vmem:[%s2 + $0xa8] sm:$0xf]
    %v6189 = vld [vmem:[%s2 + $0xac] sm:$0xf]
    %v6190 = vld [vmem:[%s2 + $0xb0] sm:$0xf]
    %v6191 = vld [vmem:[%s2 + $0xb4] sm:$0xf]
    %v6192 = vld [vmem:[%s2 + $0xb8] sm:$0xf]
    %v6193 = vld [vmem:[%s2 + $0xbc] sm:$0xf]
    %v6194 = vld [vmem:[%s2 + $0xc0] sm:$0xf]
    %v6244 = vunpack.c.l.b16 %v6146
    %v6245 = vunpack.c.l.b16 %v6147
    %v6246 = vunpack.c.l.b16 %v6148
    %v6247 = vunpack.c.l.b16 %v6149
    %v6248 = vunpack.c.l.b16 %v6150
    %v6249 = vunpack.c.l.b16 %v6151
    %v6250 = vunpack.c.l.b16 %v6152
    %v6251 = vunpack.c.l.b16 %v6153
    %v6252 = vunpack.c.l.b16 %v6154
    %v6253 = vunpack.c.l.b16 %v6155
    %v6254 = vunpack.c.l.b16 %v6156
    %v6255 = vunpack.c.l.b16 %v6157
    %v6256 = vunpack.c.l.b16 %v6158
    %v6257 = vunpack.c.l.b16 %v6159
    %v6258 = vunpack.c.l.b16 %v6160
    %v6259 = vunpack.c.l.b16 %v6161
    %v6260 = vunpack.c.l.b16 %v6162
    %v6261 = vunpack.c.l.b16 %v6163
    %v6262 = vunpack.c.l.b16 %v6164
    %v6263 = vunpack.c.l.b16 %v6165
    %v6264 = vunpack.c.l.b16 %v6166
    %v6265 = vunpack.c.l.b16 %v6167
    %v6266 = vunpack.c.l.b16 %v6168
    %v6267 = vunpack.c.l.b16 %v6169
    %v6268 = vunpack.c.l.b16 %v6170
    %v6269 = vunpack.c.l.b16 %v6171
    %v6270 = vunpack.c.l.b16 %v6172
    %v6271 = vunpack.c.l.b16 %v6173
    %v6272 = vunpack.c.l.b16 %v6174
    %v6273 = vunpack.c.l.b16 %v6175
    %v6274 = vunpack.c.l.b16 %v6176
    %v6275 = vunpack.c.l.b16 %v6177
    %v6276 = vunpack.c.l.b16 %v6178
    %v6277 = vunpack.c.l.b16 %v6179
    %v6278 = vunpack.c.l.b16 %v6180
    %v6279 = vunpack.c.l.b16 %v6181
    %v6280 = vunpack.c.l.b16 %v6182
    %v6281 = vunpack.c.l.b16 %v6183
    %v6282 = vunpack.c.l.b16 %v6184
    %v6283 = vunpack.c.l.b16 %v6185
    %v6284 = vunpack.c.l.b16 %v6186
    %v6285 = vunpack.c.l.b16 %v6187
    %v6286 = vunpack.c.l.b16 %v6188
    %v6287 = vunpack.c.l.b16 %v6189
    %v6288 = vunpack.c.l.b16 %v6190
    %v6289 = vunpack.c.l.b16 %v6191
    %v6290 = vunpack.c.l.b16 %v6192
    %v6291 = vunpack.c.l.b16 %v6193
    %v6292 = vunpack.c.l.b16 %v6194
    %v6293 = vpack.c.b16 %v6245, %v6244
    %v6294 = vpack.c.b16 %v6247, %v6246
    %v6295 = vpack.c.b16 %v6249, %v6248
    %v6296 = vpack.c.b16 %v6251, %v6250
    %v6297 = vpack.c.b16 %v6253, %v6252
    %v6298 = vpack.c.b16 %v6255, %v6254
    %v6299 = vpack.c.b16 %v6257, %v6256
    %v6300 = vpack.c.b16 %v6259, %v6258
    %v6301 = vpack.c.b16 %v6261, %v6260
    %v6302 = vpack.c.b16 %v6263, %v6262
    %v6303 = vpack.c.b16 %v6265, %v6264
    %v6304 = vpack.c.b16 %v6267, %v6266
    %v6305 = vpack.c.b16 %v6269, %v6268
    %v6306 = vpack.c.b16 %v6271, %v6270
    %v6307 = vpack.c.b16 %v6273, %v6272
    %v6308 = vpack.c.b16 %v6275, %v6274
    %v6309 = vpack.c.b16 %v6277, %v6276
    %v6310 = vpack.c.b16 %v6279, %v6278
    %v6311 = vpack.c.b16 %v6281, %v6280
    %v6312 = vpack.c.b16 %v6283, %v6282
    %v6313 = vpack.c.b16 %v6285, %v6284
    %v6314 = vpack.c.b16 %v6287, %v6286
    %v6315 = vpack.c.b16 %v6289, %v6288
    %v6316 = vpack.c.b16 %v6291, %v6290
    %v6317 = vpack.c.b16 %v6292, %v6292
    %vm6342 = vcmask 64512
    %v6344 = vsel %vm6342, %v6145, 0
    %vm6346 = vcmask 1043456
    %v6348 = vsel %vm6346, %v6317, 0
    %6350 = vmatpush.bf16.msra.mxu0 %v6300
    %6351 = vmatpush.bf16.msra.mxu0 %v6299
    %6352 = vmatpush.bf16.msra.mxu0 %v6298
    %6353 = vmatpush.bf16.msra.mxu0 %v6297
    %6354 = vmatpush.bf16.msra.mxu0 %v6296
    %6355 = vmatpush.bf16.msra.mxu0 %v6295
    %6356 = vmatpush.bf16.msra.mxu0 %v6294
    %6357 = vmatpush.bf16.msra.mxu0 %v6293
    %6358 = vmatmul.bf16.gmra.mxu0 %v6142
    %v6359 = vpop.f32.mrf.mxu0
    %v6360 = vadd.f32 0.0, %v6359
    %v6361 = vpop.f32.mrf.mxu0
    %6362 = vdwg.mxu0
    %6363 = vmatpush.bf16.msra.mxu0 %v6308
    %6364 = vmatpush.bf16.msra.mxu0 %v6307
    %6365 = vmatpush.bf16.msra.mxu0 %v6306
    %6366 = vmatpush.bf16.msra.mxu0 %v6305
    %6367 = vmatpush.bf16.msra.mxu0 %v6304
    %6368 = vmatpush.bf16.msra.mxu0 %v6303
    %6369 = vmatpush.bf16.msra.mxu0 %v6302
    %6370 = vmatpush.bf16.msra.mxu0 %v6301
    %6371 = vmatmul.bf16.gmra.mxu0 %v6143
    %v6372 = vpop.f32.mrf.mxu0
    %v6373 = vadd.f32 %v6360, %v6372
    %v6374 = vpop.f32.mrf.mxu0
    %6375 = vdwg.mxu0
    %6376 = vmatpush.bf16.msra.mxu0 %v6316
    %6377 = vmatpush.bf16.msra.mxu0 %v6315
    %6378 = vmatpush.bf16.msra.mxu0 %v6314
    %6379 = vmatpush.bf16.msra.mxu0 %v6313
    %6380 = vmatpush.bf16.msra.mxu0 %v6312
    %6381 = vmatpush.bf16.msra.mxu0 %v6311
    %6382 = vmatpush.bf16.msra.mxu0 %v6310
    %6383 = vmatpush.bf16.msra.mxu0 %v6309
    %6384 = vmatmul.bf16.gmra.mxu0 %v6144
    %v6385 = vpop.f32.mrf.mxu0
    %v6386 = vadd.f32 %v6373, %v6385
    %v6387 = vpop.f32.mrf.mxu0
    %6388 = vdwg.mxu0
    %6389 = vmatpush.bf16.msra.mxu0 0
    %6390 = vmatpush.bf16.msra.mxu0 0
    %6391 = vmatpush.bf16.msra.mxu0 0
    %6392 = vmatpush.bf16.msra.mxu0 0
    %6393 = vmatpush.bf16.msra.mxu0 0
    %6394 = vmatpush.bf16.msra.mxu0 0
    %6395 = vmatpush.bf16.msra.mxu0 0
    %6396 = vmatpush.bf16.msra.mxu0 %v6348
    %6397 = vmatmul.bf16.gmra.mxu0 %v6344
    %v6398 = vpop.f32.mrf.mxu0
    %v6399 = vadd.f32 %v6386, %v6398
    %v6400 = vpop.f32.mrf.mxu0
    %6401 = vdwg.mxu0
    %v6402 = vmax.f32 %v6399, 1e-24
    %v6403 = vrsqrt.pop %v6402
    %v6404 = vmul.f32 %v6403, %v6402
    %v6405 = vmul.f32 %v6404, %v6403
    %v6406 = vmul.f32 0.5, %v6405
    %v6407 = vsub.f32 1.5, %v6406
    %v6408 = vmul.f32 %v6403, %v6407
    %vm6409 = vweird.f32 %v6402
    %vm6410 = vweird.f32 %v6403
    %vm6411 = vmor %vm6409, %vm6410
    %v6412 = vsel %vm6411, %v6403, %v6408
    %v6413 = vpack.c.bf16 %v6412, %v6412
    %v6414 = vld [vmem:[%s3] sm:$0xff]
    %v6415 = vld [vmem:[%s3 + $0x8] sm:$0xff]
    %v6416 = vld [vmem:[%s3 + $0x10] sm:$0xff]
    %v6417 = vld [vmem:[%s3 + $0x18] sm:$0xff]
    %v6418 = vld [vmem:[%s3 + $0x20] sm:$0xff]
    %v6419 = vld [vmem:[%s3 + $0x28] sm:$0xff]
    %v6420 = vld [vmem:[%s3 + $0x30] sm:$0xff]
    %v6421 = vld [vmem:[%s3 + $0x38] sm:$0xff]
    %v6422 = vld [vmem:[%s3 + $0x40] sm:$0xff]
    %v6423 = vld [vmem:[%s3 + $0x48] sm:$0xff]
    %v6424 = vld [vmem:[%s3 + $0x50] sm:$0xff]
    %v6425 = vld [vmem:[%s3 + $0x58] sm:$0xff]
    %v6426 = vld [vmem:[%s3 + $0x60] sm:$0x11]
    %v6427 = vld [vmem:[%s3 + $0x68] sm:$0x11]
    %v6442 = vunpack.c.l.b16 %v6414
    %v6443 = vunpack.c.h.b16 %v6414
    %v6444 = vunpack.c.l.b16 %v6415
    %v6445 = vunpack.c.h.b16 %v6415
    %v6446 = vunpack.c.l.b16 %v6416
    %v6447 = vunpack.c.h.b16 %v6416
    %v6448 = vunpack.c.l.b16 %v6417
    %v6449 = vunpack.c.h.b16 %v6417
    %v6450 = vunpack.c.l.b16 %v6418
    %v6451 = vunpack.c.h.b16 %v6418
    %v6452 = vunpack.c.l.b16 %v6419
    %v6453 = vunpack.c.h.b16 %v6419
    %v6454 = vunpack.c.l.b16 %v6420
    %v6455 = vunpack.c.h.b16 %v6420
    %v6456 = vunpack.c.l.b16 %v6421
    %v6457 = vunpack.c.h.b16 %v6421
    %v6458 = vunpack.c.l.b16 %v6422
    %v6459 = vunpack.c.h.b16 %v6422
    %v6460 = vunpack.c.l.b16 %v6423
    %v6461 = vunpack.c.h.b16 %v6423
    %v6462 = vunpack.c.l.b16 %v6424
    %v6463 = vunpack.c.h.b16 %v6424
    %v6464 = vunpack.c.l.b16 %v6425
    %v6465 = vunpack.c.h.b16 %v6425
    %v6466 = vunpack.c.l.b16 %v6426
    %v6467 = vunpack.c.h.b16 %v6426
    %v6468 = vunpack.c.l.b16 %v6427
    %v6469 = vunpack.c.h.b16 %v6427
    %v6470 = vpack.c.b16 %v6446, %v6442
    %v6471 = vpack.c.b16 %v6447, %v6443
    %v6472 = vpack.c.b16 %v6448, %v6444
    %v6473 = vpack.c.b16 %v6449, %v6445
    %v6474 = vpack.c.b16 %v6454, %v6450
    %v6475 = vpack.c.b16 %v6455, %v6451
    %v6476 = vpack.c.b16 %v6456, %v6452
    %v6477 = vpack.c.b16 %v6457, %v6453
    %v6478 = vpack.c.b16 %v6462, %v6458
    %v6479 = vpack.c.b16 %v6463, %v6459
    %v6480 = vpack.c.b16 %v6464, %v6460
    %v6481 = vpack.c.b16 %v6465, %v6461
    %v6482 = vpack.c.b16 %v6466, %v6466
    %v6483 = vpack.c.b16 %v6467, %v6467
    %v6484 = vpack.c.b16 %v6468, %v6468
    %v6485 = vpack.c.b16 %v6469, %v6469
    %vm6498 = vcmask 400384
    %v6500 = vsel %vm6498, %v6413, 0
    %vm6502 = vcmask 1040384
    %v6503 = vsel 0, 4294967295, 65535
    %v6504 = vsel %vm6502, %v6503, 0
    %v6506 = vand.u32 %v6482, %v6504
    %v6509 = vand.u32 %v6483, %v6504
    %v6512 = vand.u32 %v6484, %v6504
    %v6515 = vand.u32 %v6485, %v6504
    %6517 = vmatpush.bf16.msra.mxu0 0
    %6518 = vmatpush.bf16.msra.mxu0 0
    %6519 = vmatpush.bf16.msra.mxu0 0
    %6520 = vmatpush.bf16.msra.mxu0 0
    %6521 = vmatpush.bf16.msra.mxu0 %v6506
    %6522 = vmatpush.bf16.msra.mxu0 %v6478
    %6523 = vmatpush.bf16.msra.mxu0 %v6474
    %6524 = vmatpush.bf16.msra.mxu0 %v6470
    %6525 = vmatmul.bf16.gmra.mxu0 %v6500
    %v6526 = vpop.f32.mrf.mxu0
    %v6527 = vadd.f32 0.0, %v6526
    %v6528 = vpop.f32.mrf.mxu0
    %6529 = vdwg.mxu0
    %6530 = vmatpush.bf16.msra.mxu0 0
    %6531 = vmatpush.bf16.msra.mxu0 0
    %6532 = vmatpush.bf16.msra.mxu0 0
    %6533 = vmatpush.bf16.msra.mxu0 0
    %6534 = vmatpush.bf16.msra.mxu0 %v6509
    %6535 = vmatpush.bf16.msra.mxu0 %v6479
    %6536 = vmatpush.bf16.msra.mxu0 %v6475
    %6537 = vmatpush.bf16.msra.mxu0 %v6471
    %6538 = vmatmul.bf16.gmra.mxu0 %v6500
    %v6539 = vpop.f32.mrf.mxu0
    %v6540 = vadd.f32 0.0, %v6539
    %v6541 = vpop.f32.mrf.mxu0
    %6542 = vdwg.mxu0
    %6543 = vmatpush.bf16.msra.mxu0 0
    %6544 = vmatpush.bf16.msra.mxu0 0
    %6545 = vmatpush.bf16.msra.mxu0 0
    %6546 = vmatpush.bf16.msra.mxu0 0
    %6547 = vmatpush.bf16.msra.mxu0 %v6512
    %6548 = vmatpush.bf16.msra.mxu0 %v6480
    %6549 = vmatpush.bf16.msra.mxu0 %v6476
    %6550 = vmatpush.bf16.msra.mxu0 %v6472
    %6551 = vmatmul.bf16.gmra.mxu0 %v6500
    %v6552 = vpop.f32.mrf.mxu0
    %v6553 = vadd.f32 0.0, %v6552
    %v6554 = vpop.f32.mrf.mxu0
    %6555 = vdwg.mxu0
    %6556 = vmatpush.bf16.msra.mxu0 0
    %6557 = vmatpush.bf16.msra.mxu0 0
    %6558 = vmatpush.bf16.msra.mxu0 0
    %6559 = vmatpush.bf16.msra.mxu0 0
    %6560 = vmatpush.bf16.msra.mxu0 %v6515
    %6561 = vmatpush.bf16.msra.mxu0 %v6481
    %6562 = vmatpush.bf16.msra.mxu0 %v6477
    %6563 = vmatpush.bf16.msra.mxu0 %v6473
    %6564 = vmatmul.bf16.gmra.mxu0 %v6500
    %v6565 = vpop.f32.mrf.mxu0
    %v6566 = vadd.f32 0.0, %v6565
    %v6567 = vpop.f32.mrf.mxu0
    %6568 = vdwg.mxu0
    %v6569 = vmul.f32 %v6134, %v6527
    %v6570 = vmul.f32 %v6135, %v6540
    %v6571 = vmul.f32 %v6136, %v6553
    %v6572 = vmul.f32 %v6137, %v6566
    %v6573 = vpack.c.bf16 %v6569, %v6569
    %v6574 = vpack.c.bf16 %v6570, %v6570
    %v6575 = vpack.c.bf16 %v6571, %v6571
    %v6576 = vpack.c.bf16 %v6572, %v6572
    %v6577 = vld [vmem:[%s4] sm:$0xf]
    %v6578 = vld [vmem:[%s4 + $0x4] sm:$0xf]
    %v6579 = vld [vmem:[%s4 + $0x8] sm:$0xf]
    %v6580 = vld [vmem:[%s4 + $0xc] sm:$0xf]
    %v6581 = vld [vmem:[%s4 + $0x10] sm:$0xf]
    %v6582 = vld [vmem:[%s4 + $0x14] sm:$0xf]
    %v6583 = vld [vmem:[%s4 + $0x18] sm:$0xf]
    %v6584 = vld [vmem:[%s4 + $0x1c] sm:$0xf]
    %v6585 = vld [vmem:[%s4 + $0x20] sm:$0xf]
    %v6586 = vld [vmem:[%s4 + $0x24] sm:$0xf]
    %v6587 = vld [vmem:[%s4 + $0x28] sm:$0xf]
    %v6588 = vld [vmem:[%s4 + $0x2c] sm:$0xf]
    %v6589 = vld [vmem:[%s4 + $0x30] sm:$0xf]
    %v6590 = vld [vmem:[%s4 + $0x34] sm:$0xf]
    %v6591 = vld [vmem:[%s4 + $0x38] sm:$0xf]
    %v6592 = vld [vmem:[%s4 + $0x3c] sm:$0xf]
    %v6593 = vld [vmem:[%s4 + $0x40] sm:$0xf]
    %v6594 = vld [vmem:[%s4 + $0x44] sm:$0xf]
    %v6595 = vld [vmem:[%s4 + $0x48] sm:$0xf]
    %v6596 = vld [vmem:[%s4 + $0x4c] sm:$0xf]
    %v6597 = vld [vmem:[%s4 + $0x50] sm:$0xf]
    %v6598 = vld [vmem:[%s4 + $0x54] sm:$0xf]
    %v6599 = vld [vmem:[%s4 + $0x58] sm:$0xf]
    %v6600 = vld [vmem:[%s4 + $0x5c] sm:$0xf]
    %v6601 = vld [vmem:[%s4 + $0x60] sm:$0xf]
    %v6602 = vld [vmem:[%s4 + $0x64] sm:$0xf]
    %v6603 = vld [vmem:[%s4 + $0x68] sm:$0xf]
    %v6604 = vld [vmem:[%s4 + $0x6c] sm:$0xf]
    %v6605 = vld [vmem:[%s4 + $0x70] sm:$0xf]
    %v6606 = vld [vmem:[%s4 + $0x74] sm:$0xf]
    %v6607 = vld [vmem:[%s4 + $0x78] sm:$0xf]
    %v6608 = vld [vmem:[%s4 + $0x7c] sm:$0xf]
    %v6609 = vld [vmem:[%s4 + $0x80] sm:$0xf]
    %v6610 = vld [vmem:[%s4 + $0x84] sm:$0xf]
    %v6611 = vld [vmem:[%s4 + $0x88] sm:$0xf]
    %v6612 = vld [vmem:[%s4 + $0x8c] sm:$0xf]
    %v6613 = vld [vmem:[%s4 + $0x90] sm:$0xf]
    %v6614 = vld [vmem:[%s4 + $0x94] sm:$0xf]
    %v6615 = vld [vmem:[%s4 + $0x98] sm:$0xf]
    %v6616 = vld [vmem:[%s4 + $0x9c] sm:$0xf]
    %v6617 = vld [vmem:[%s4 + $0xa0] sm:$0xf]
    %v6618 = vld [vmem:[%s4 + $0xa4] sm:$0xf]
    %v6619 = vld [vmem:[%s4 + $0xa8] sm:$0xf]
    %v6620 = vld [vmem:[%s4 + $0xac] sm:$0xf]
    %v6621 = vld [vmem:[%s4 + $0xb0] sm:$0xf]
    %v6622 = vld [vmem:[%s4 + $0xb4] sm:$0xf]
    %v6623 = vld [vmem:[%s4 + $0xb8] sm:$0xf]
    %v6624 = vld [vmem:[%s4 + $0xbc] sm:$0xf]
    %v6625 = vld [vmem:[%s4 + $0xc0] sm:$0xf]
    %v6626 = vld [vmem:[%s5] sm:$0x1]
    %v6628 = vperm.slane %v6626, 0
    %v6679 = vunpack.c.l.b16 %v6577
    %v6680 = vunpack.c.l.b16 %v6578
    %v6681 = vunpack.c.l.b16 %v6579
    %v6682 = vunpack.c.l.b16 %v6580
    %v6683 = vunpack.c.l.b16 %v6581
    %v6684 = vunpack.c.l.b16 %v6582
    %v6685 = vunpack.c.l.b16 %v6583
    %v6686 = vunpack.c.l.b16 %v6584
    %v6687 = vunpack.c.l.b16 %v6585
    %v6688 = vunpack.c.l.b16 %v6586
    %v6689 = vunpack.c.l.b16 %v6587
    %v6690 = vunpack.c.l.b16 %v6588
    %v6691 = vunpack.c.l.b16 %v6589
    %v6692 = vunpack.c.l.b16 %v6590
    %v6693 = vunpack.c.l.b16 %v6591
    %v6694 = vunpack.c.l.b16 %v6592
    %v6695 = vunpack.c.l.b16 %v6593
    %v6696 = vunpack.c.l.b16 %v6594
    %v6697 = vunpack.c.l.b16 %v6595
    %v6698 = vunpack.c.l.b16 %v6596
    %v6699 = vunpack.c.l.b16 %v6597
    %v6700 = vunpack.c.l.b16 %v6598
    %v6701 = vunpack.c.l.b16 %v6599
    %v6702 = vunpack.c.l.b16 %v6600
    %v6703 = vunpack.c.l.b16 %v6601
    %v6704 = vunpack.c.l.b16 %v6602
    %v6705 = vunpack.c.l.b16 %v6603
    %v6706 = vunpack.c.l.b16 %v6604
    %v6707 = vunpack.c.l.b16 %v6605
    %v6708 = vunpack.c.l.b16 %v6606
    %v6709 = vunpack.c.l.b16 %v6607
    %v6710 = vunpack.c.l.b16 %v6608
    %v6711 = vunpack.c.l.b16 %v6609
    %v6712 = vunpack.c.l.b16 %v6610
    %v6713 = vunpack.c.l.b16 %v6611
    %v6714 = vunpack.c.l.b16 %v6612
    %v6715 = vunpack.c.l.b16 %v6613
    %v6716 = vunpack.c.l.b16 %v6614
    %v6717 = vunpack.c.l.b16 %v6615
    %v6718 = vunpack.c.l.b16 %v6616
    %v6719 = vunpack.c.l.b16 %v6617
    %v6720 = vunpack.c.l.b16 %v6618
    %v6721 = vunpack.c.l.b16 %v6619
    %v6722 = vunpack.c.l.b16 %v6620
    %v6723 = vunpack.c.l.b16 %v6621
    %v6724 = vunpack.c.l.b16 %v6622
    %v6725 = vunpack.c.l.b16 %v6623
    %v6726 = vunpack.c.l.b16 %v6624
    %v6727 = vunpack.c.l.b16 %v6625
    %v6728 = vpack.c.b16 %v6680, %v6679
    %v6729 = vpack.c.b16 %v6682, %v6681
    %v6730 = vpack.c.b16 %v6684, %v6683
    %v6731 = vpack.c.b16 %v6686, %v6685
    %v6732 = vpack.c.b16 %v6688, %v6687
    %v6733 = vpack.c.b16 %v6690, %v6689
    %v6734 = vpack.c.b16 %v6692, %v6691
    %v6735 = vpack.c.b16 %v6694, %v6693
    %v6736 = vpack.c.b16 %v6696, %v6695
    %v6737 = vpack.c.b16 %v6698, %v6697
    %v6738 = vpack.c.b16 %v6700, %v6699
    %v6739 = vpack.c.b16 %v6702, %v6701
    %v6740 = vpack.c.b16 %v6704, %v6703
    %v6741 = vpack.c.b16 %v6706, %v6705
    %v6742 = vpack.c.b16 %v6708, %v6707
    %v6743 = vpack.c.b16 %v6710, %v6709
    %v6744 = vpack.c.b16 %v6712, %v6711
    %v6745 = vpack.c.b16 %v6714, %v6713
    %v6746 = vpack.c.b16 %v6716, %v6715
    %v6747 = vpack.c.b16 %v6718, %v6717
    %v6748 = vpack.c.b16 %v6720, %v6719
    %v6749 = vpack.c.b16 %v6722, %v6721
    %v6750 = vpack.c.b16 %v6724, %v6723
    %v6751 = vpack.c.b16 %v6726, %v6725
    %v6752 = vpack.c.b16 %v6727, %v6727
    %v6778 = vsel %vm6342, %v6576, 0
    %v6781 = vsel %vm6346, %v6752, 0
    %6783 = vmatpush.bf16.msra.mxu0 %v6735
    %6784 = vmatpush.bf16.msra.mxu0 %v6734
    %6785 = vmatpush.bf16.msra.mxu0 %v6733
    %6786 = vmatpush.bf16.msra.mxu0 %v6732
    %6787 = vmatpush.bf16.msra.mxu0 %v6731
    %6788 = vmatpush.bf16.msra.mxu0 %v6730
    %6789 = vmatpush.bf16.msra.mxu0 %v6729
    %6790 = vmatpush.bf16.msra.mxu0 %v6728
    %6791 = vmatmul.bf16.gmra.mxu0 %v6573
    %v6792 = vpop.f32.mrf.mxu0
    %v6793 = vadd.f32 %v6628, %v6792
    %v6794 = vpop.f32.mrf.mxu0
    %6795 = vdwg.mxu0
    %6796 = vmatpush.bf16.msra.mxu0 %v6743
    %6797 = vmatpush.bf16.msra.mxu0 %v6742
    %6798 = vmatpush.bf16.msra.mxu0 %v6741
    %6799 = vmatpush.bf16.msra.mxu0 %v6740
    %6800 = vmatpush.bf16.msra.mxu0 %v6739
    %6801 = vmatpush.bf16.msra.mxu0 %v6738
    %6802 = vmatpush.bf16.msra.mxu0 %v6737
    %6803 = vmatpush.bf16.msra.mxu0 %v6736
    %6804 = vmatmul.bf16.gmra.mxu0 %v6574
    %v6805 = vpop.f32.mrf.mxu0
    %v6806 = vadd.f32 %v6793, %v6805
    %v6807 = vpop.f32.mrf.mxu0
    %6808 = vdwg.mxu0
    %6809 = vmatpush.bf16.msra.mxu0 %v6751
    %6810 = vmatpush.bf16.msra.mxu0 %v6750
    %6811 = vmatpush.bf16.msra.mxu0 %v6749
    %6812 = vmatpush.bf16.msra.mxu0 %v6748
    %6813 = vmatpush.bf16.msra.mxu0 %v6747
    %6814 = vmatpush.bf16.msra.mxu0 %v6746
    %6815 = vmatpush.bf16.msra.mxu0 %v6745
    %6816 = vmatpush.bf16.msra.mxu0 %v6744
    %6817 = vmatmul.bf16.gmra.mxu0 %v6575
    %v6818 = vpop.f32.mrf.mxu0
    %v6819 = vadd.f32 %v6806, %v6818
    %v6820 = vpop.f32.mrf.mxu0
    %6821 = vdwg.mxu0
    %6822 = vmatpush.bf16.msra.mxu0 0
    %6823 = vmatpush.bf16.msra.mxu0 0
    %6824 = vmatpush.bf16.msra.mxu0 0
    %6825 = vmatpush.bf16.msra.mxu0 0
    %6826 = vmatpush.bf16.msra.mxu0 0
    %6827 = vmatpush.bf16.msra.mxu0 0
    %6828 = vmatpush.bf16.msra.mxu0 0
    %6829 = vmatpush.bf16.msra.mxu0 %v6781
    %6830 = vmatmul.bf16.gmra.mxu0 %v6778
    %v6831 = vpop.f32.mrf.mxu0
    %v6832 = vadd.f32 %v6819, %v6831
    %v6833 = vpop.f32.mrf.mxu0
    %6834 = vdwg.mxu0
    %v6835 = vmax.f32 %v6832, 0.0
    %6836 = vst [vmem:[#allocation2] sm:$0x3] %v6835
    // Predicated region
    $region26: #{tpu_custom_call.1} parent=1 // pred_check
      _
    $region27: #{tpu_custom_call.1} parent=1 // pred_check_branch
      %6838 = sbr.rel (0) target = $region29
    $region28: #{tpu_custom_call.1} parent=1 // pred_region
      %6840 = vsyncadd [#allocation3], 0
      %s6842 = sshll.u32 [#allocation2], 4
      %s6843 = int_to_ptr.vmem [resolvable:$true] %s6842
      %s6844 = sshll.u32 %s6, 4
      %s6845 = int_to_ptr.hbm [resolvable:$true] %s6844
      %6847 = dma.vmem_to_hbm [thread:$0]  %s6843, 32, %s6845, [#allocation3]
    $region29: #{tpu_custom_call.1} parent=1 // pred_fallthru
      _
    // Predicated region
    $region30: #{tpu_custom_call.1} parent=1 // pred_check
      _
    $region31: #{tpu_custom_call.1} parent=1 // pred_check_branch
      %6849 = sbr.rel (0) target = $region33
    $region32: #{tpu_custom_call.1} parent=1 // pred_region
      %6851 = dma.done [#allocation3], 32
    $region33: #{tpu_custom_call.1} parent=1 // pred_fallthru
      _
    %6852 = vsyncpa [#allocation3], 1

</llo_original>
